<compile_context>
chip_gen: v6e
topology: v6e:2x2x1
jax: 0.10.0
libtpu: 0.0.40
codegen_flags: <defaults>
</compile_context>

<pallas_src>
import math
import functools

import jax
import jax.numpy as jnp
from jax.experimental import pallas as pl
from jax.experimental.pallas import tpu as pltpu


# ----------------------------------------------------------------------------
# Fused encoder kernel.
#   grid = (B // bt, n_layers)   -- batch blocks "parallel", layers "arbitrary"
#   Residual stream is carried across the layer axis in the output block.
# ----------------------------------------------------------------------------
def _fused_encoder_kernel(nhead,
                          x_ref, bias_ref, pe_ref,
                          wqkv_ref, bqkv_ref, wo_ref, bo_ref,
                          ln1w_ref, ln1b_ref, w1_ref, b1_ref, w2_ref, b2_ref,
                          ln2w_ref, ln2b_ref, o_ref):
    M, E = x_ref.shape                       # M = Bt * S
    S = pe_ref.shape[0]
    Bt = M // S
    Dh = E // nhead
    BH = Bt * nhead

    def mm(a_bf16, w_ref):                   # [M,K](bf16) @ [K,N](bf16) -> f32 on MXU
        return jnp.dot(a_bf16, w_ref[...], preferred_element_type=jnp.float32)

    def layernorm(y, g, b):                  # y: [M,E] f32; g,b: [1,E] f32
        mu = jnp.mean(y, axis=-1, keepdims=True)
        var = jnp.mean(jnp.square(y - mu), axis=-1, keepdims=True)
        return (y - mu) * jax.lax.rsqrt(var + 1e-5) * g + b

    l = pl.program_id(1)

    @pl.when(l == 0)
    def _():
        # Layer 0: initialize the carried residual stream with emb + positional enc.
        x0 = x_ref[...].reshape(Bt, S, E) + pe_ref[...][None, :, :]
        o_ref[...] = x0.reshape(M, E)

    x2d = o_ref[...]                         # f32 residual stream (resident in VMEM)
    x_bf = x2d.astype(jnp.bfloat16)

    # ---- QKV projection over all Bt*S rows (softmax scale folded into Q) ----
    qkv = mm(x_bf, wqkv_ref) + bqkv_ref[...]                    # [M, 3E] f32
    qkv = qkv.reshape(Bt, S, 3 * nhead, Dh)
    qkv_t = jnp.swapaxes(qkv, 1, 2)                             # [Bt, 3*nhead, S, Dh]
    q = qkv_t[:, :nhead].reshape(BH, S, Dh).astype(jnp.bfloat16)
    k = qkv_t[:, nhead:2 * nhead].reshape(BH, S, Dh).astype(jnp.bfloat16)
    v = qkv_t[:, 2 * nhead:].reshape(BH, S, Dh).astype(jnp.bfloat16)

    # ---- batched-head attention: scores / masked softmax / PV ---------------
    s = jnp.einsum('bqd,bkd->bqk', q, k,
                   preferred_element_type=jnp.float32)          # [BH, S, S] f32
    s = s.reshape(Bt, nhead, S, S) + bias_ref[...][:, :, None, :]
    s = s - jnp.max(s, axis=-1, keepdims=True)
    p = jnp.exp(s)
    p = p * pl.reciprocal(jnp.sum(p, axis=-1, keepdims=True), approx=True)
    ctx = jnp.einsum('bqk,bkd->bqd',
                     p.reshape(BH, S, S).astype(jnp.bfloat16), v,
                     preferred_element_type=jnp.float32)        # [BH, S, Dh] f32
    ctx = jnp.swapaxes(ctx.reshape(Bt, nhead, S, Dh), 1, 2).reshape(M, E)

    # ---- output projection + post-norm ---------------------------------------
    attn = mm(ctx.astype(jnp.bfloat16), wo_ref) + bo_ref[...]   # [M, E] f32
    x1 = layernorm(x2d + attn, ln1w_ref[...], ln1b_ref[...])

    # ---- feed forward (ReLU) + post-norm --------------------------------------
    h1 = jnp.maximum(mm(x1.astype(jnp.bfloat16), w1_ref) + b1_ref[...],
                     0.0).astype(jnp.bfloat16)                  # bf16 right after ReLU
    ff = mm(h1, w2_ref) + b2_ref[...]
    x2 = layernorm(x1 + ff, ln2w_ref[...], ln2b_ref[...])

    o_ref[...] = x2                                             # carried to next layer


# ----------------------------------------------------------------------------
# Tiling helpers
# ----------------------------------------------------------------------------
def _vmem_capacity_bytes():
    try:
        return int(pltpu.get_tpu_info().vmem_capacity_bytes)
    except Exception:
        return 128 << 20  # v5e/v6e default


def _target_rows():
    # Smaller M target on 64 MiB-VMEM parts (v7x), larger on 128 MiB parts.
    return 256 if _vmem_capacity_bytes() <= (64 << 20) else 512


def _pick_block_batch(B, S, E):
    """Largest bt dividing B with (bt*S, E) a legal, VMEM-friendly block."""
    target = _target_rows()
    valid = []
    for bt in range(1, B + 1):
        if B % bt:
            continue
        # (8,128) tiling rule: block last-two dims divisible, or full-extent.
        if bt == B or ((bt * S) % 8 == 0 and E % 128 == 0):
            valid.append(bt)
    under = [bt for bt in valid if bt * S <= target]
    return max(under) if under else min(valid)


def _vmem_limit_bytes(bt, S, E, hidden, nhead):
    M = bt * S
    w_bf16 = 2 * (E * 3 * E + E * E + 2 * E * hidden)          # one layer's bf16 weights
    acts = 4 * (M * 3 * E                                      # qkv f32
                + 4 * M * E                                    # residual/ctx/attn/x1
                + 2 * M * hidden                               # FFN intermediates
                + 2 * bt * nhead * S * S)                      # scores + probs
    est = 3 * w_bf16 + 2 * acts + (4 << 20)
    cap = int(0.85 * _vmem_capacity_bytes())
    return int(min(max(est, 32 << 20), cap))


# ----------------------------------------------------------------------------
# One-time weight prep: stack layers, transpose to [K, N], fold softmax scale.
# ----------------------------------------------------------------------------
def prepare_stacked_params(layers, nhead):
    E = layers[0]['wo'].shape[0]
    Dh = E // nhead
    scale = 1.0 / math.sqrt(Dh)

    def stack(name):
        return jnp.stack([lp[name] for lp in layers], axis=0)

    wqkv = stack('wqkv')                                        # [L, 3E, E]
    bqkv = stack('bqkv')                                        # [L, 1, 3E]
    qscale = jnp.concatenate([jnp.full((E,), scale, jnp.float32),
                              jnp.ones((2 * E,), jnp.float32)])
    wqkv = wqkv * qscale[None, :, None]                         # scale Q output rows
    bqkv = bqkv * qscale[None, None, :]

    return {
        'wqkv_t': jnp.transpose(wqkv, (0, 2, 1)).astype(jnp.bfloat16),        # [L, E, 3E]
        'bqkv':   bqkv.astype(jnp.float32),                                   # [L, 1, 3E]
        'wo_t':   jnp.transpose(stack('wo'), (0, 2, 1)).astype(jnp.bfloat16), # [L, E, E]
        'bo':     stack('bo').astype(jnp.float32),
        'ln1w':   stack('ln1w').astype(jnp.float32),
        'ln1b':   stack('ln1b').astype(jnp.float32),
        'w1_t':   jnp.transpose(stack('w1'), (0, 2, 1)).astype(jnp.bfloat16), # [L, E, hidden]
        'b1':     stack('b1').astype(jnp.float32),
        'w2_t':   jnp.transpose(stack('w2'), (0, 2, 1)).astype(jnp.bfloat16), # [L, hidden, E]
        'b2':     stack('b2').astype(jnp.float32),
        'ln2w':   stack('ln2w').astype(jnp.float32),
        'ln2b':   stack('ln2b').astype(jnp.float32),
    }


# ----------------------------------------------------------------------------
# pallas_call wrapper for the fused stack
# ----------------------------------------------------------------------------
def fused_encoder(x2d, mask_bias, pe, sp, nhead, n_layers, B, S, E):
    hidden = sp['w1_t'].shape[-1]
    bt = _pick_block_batch(B, S, E)
    M = bt * S

    def wspec(shape):  # per-layer weight slice: leading layer dim squeezed
        zeros = (0,) * len(shape)
        return pl.BlockSpec((None,) + shape, lambda b, l: (l,) + zeros)

    in_specs = [
        pl.BlockSpec((M, E), lambda b, l: (b, 0)),          # x (read at layer 0 only)
        pl.BlockSpec((bt, 1, S), lambda b, l: (b, 0, 0)),   # additive key-pad bias
        pl.BlockSpec((S, E), lambda b, l: (0, 0)),          # positional encoding
        wspec((E, 3 * E)), wspec((1, 3 * E)),               # wqkv, bqkv
        wspec((E, E)), wspec((1, E)),                       # wo, bo
        wspec((1, E)), wspec((1, E)),                       # ln1 w, b
        wspec((E, hidden)), wspec((1, hidden)),             # w1, b1
        wspec((hidden, E)), wspec((1, E)),                  # w2, b2
        wspec((1, E)), wspec((1, E)),                       # ln2 w, b
    ]
    inputs = [x2d, mask_bias, pe,
              sp['wqkv_t'], sp['bqkv'], sp['wo_t'], sp['bo'],
              sp['ln1w'], sp['ln1b'], sp['w1_t'], sp['b1'],
              sp['w2_t'], sp['b2'], sp['ln2w'], sp['ln2b']]

    return pl.pallas_call(
        functools.partial(_fused_encoder_kernel, nhead),
        out_shape=jax.ShapeDtypeStruct((B * S, E), jnp.float32),
        grid=(B // bt, n_layers),
        in_specs=in_specs,
        out_specs=pl.BlockSpec((M, E), lambda b, l: (b, 0)),   # carried over layer axis
        compiler_params=pltpu.CompilerParams(
            dimension_semantics=("parallel", "arbitrary"),
            vmem_limit_bytes=_vmem_limit_bytes(bt, S, E, hidden, nhead)),
    )(*inputs)


# ----------------------------------------------------------------------------
# Full forward (embedding gather + mask build kept as XLA glue)
# ----------------------------------------------------------------------------
def transformer_encoder_forward(src, params, nhead, n_layers, pad_token):
    B, S = src.shape
    E = params['embedding'].shape[1]
    # TODO(synk): embedding gather kept as XLA glue (data-dependent row gather).
    emb = params['embedding'][src].astype(jnp.float32)           # [B, S, E]
    x2d = emb.reshape(B * S, E)
    mask_bias = jnp.where(src == pad_token, -1e30, 0.0).astype(jnp.float32)[:, None, :]
    pe = params['pe'][:S].astype(jnp.float32)

    sp = prepare_stacked_params(params['layers'], nhead)
    out2d = fused_encoder(x2d, mask_bias, pe, sp, nhead, n_layers, B, S, E)
    return out2d.reshape(B, S, E)


# ----------------------------------------------------------------------------
# Pure-JAX f32 reference (same math) for correctness check
# ----------------------------------------------------------------------------
def _encoder_layer_ref(x, mask_bias, lp, nhead):
    B, S, E = x.shape
    Dh = E // nhead
    qkv = jnp.einsum('bse,fe->bsf', x, lp['wqkv']) + lp['bqkv']
    q, k, v = qkv[..., :E], qkv[..., E:2 * E], qkv[..., 2 * E:]
    q = q.reshape(B, S, nhead, Dh)
    k = k.reshape(B, S, nhead, Dh)
    v = v.reshape(B, S, nhead, Dh)
    s = jnp.einsum('bqhd,bkhd->bhqk', q, k) / math.sqrt(Dh)
    s = s + mask_bias[:, :, None, :]
    p = jax.nn.softmax(s, axis=-1)
    ctx = jnp.einsum('bhqk,bkhd->bqhd', p, v).reshape(B, S, E)
    attn = jnp.einsum('bse,fe->bsf', ctx, lp['wo']) + lp['bo']

    def ln(y, g, b):
        mu = y.mean(-1, keepdims=True)
        var = ((y - mu) ** 2).mean(-1, keepdims=True)
        return (y - mu) * jax.lax.rsqrt(var + 1e-5) * g + b

    x1 = ln(x + attn, lp['ln1w'], lp['ln1b'])
    h1 = jax.nn.relu(jnp.einsum('bse,fe->bsf', x1, lp['w1']) + lp['b1'])
    ff = jnp.einsum('bsf,ef->bse', h1, lp['w2']) + lp['b2']
    return ln(x1 + ff, lp['ln2w'], lp['ln2b'])


def reference_forward(src, params, nhead, n_layers, pad_token):
    x = params['embedding'][src] + params['pe'][None, :, :]
    mask_bias = jnp.where(src == pad_token, -1e30, 0.0).astype(jnp.float32)[:, None, :]
    for l in range(n_layers):
        x = _encoder_layer_ref(x, mask_bias, params['layers'][l], nhead)
    return x


# ----------------------------------------------------------------------------
# Deterministic parameter init (shapes follow the nn.Module __init__)
# ----------------------------------------------------------------------------
def init_params(key, vocab, E, hidden, n_layers, seq_len):
    keys = jax.random.split(key, 1 + n_layers)
    params = {}
    params['embedding'] = jax.random.normal(keys[0], (vocab, E), jnp.float32) * 0.1

    # sinusoidal positional encoding buffer pe[:seq_len] -> [S, E]
    pos = jnp.arange(seq_len, dtype=jnp.float32)[:, None]
    div = jnp.exp(jnp.arange(0, E, 2, dtype=jnp.float32) * (-math.log(10000.0) / E))
    pe = jnp.zeros((seq_len, E), jnp.float32)
    pe = pe.at[:, 0::2].set(jnp.sin(pos * div))
    pe = pe.at[:, 1::2].set(jnp.cos(pos * div))
    params['pe'] = pe

    layers = []
    for l in range(n_layers):
        lk = jax.random.split(keys[1 + l], 6)
        layers.append({
            'wqkv': jax.random.normal(lk[0], (3 * E, E), jnp.float32) * 0.05,
            'bqkv': jax.random.normal(lk[1], (1, 3 * E), jnp.float32) * 0.01,
            'wo':   jax.random.normal(lk[2], (E, E), jnp.float32) * 0.05,
            'bo':   jnp.zeros((1, E), jnp.float32),
            'ln1w': jnp.ones((1, E), jnp.float32),
            'ln1b': jnp.zeros((1, E), jnp.float32),
            'w1':   jax.random.normal(lk[3], (hidden, E), jnp.float32) * 0.05,
            'b1':   jax.random.normal(lk[4], (1, hidden), jnp.float32) * 0.01,
            'w2':   jax.random.normal(lk[5], (E, hidden), jnp.float32) * 0.05,
            'b2':   jnp.zeros((1, E), jnp.float32),
            'ln2w': jnp.ones((1, E), jnp.float32),
            'ln2b': jnp.zeros((1, E), jnp.float32),
        })
    params['layers'] = layers
    return params


if __name__ == "__main__":
    VOCAB, EMB, HIDDEN, NHEAD, NLAYERS, SEQ, PAD = 50, 32, 64, 4, 2, 8, 0
    BATCH = 2

    key = jax.random.PRNGKey(0)
    pkey, skey = jax.random.split(key)
    params = init_params(pkey, VOCAB, EMB, HIDDEN, NLAYERS, SEQ)

    src = jax.random.randint(skey, (BATCH, SEQ), 1, VOCAB, dtype=jnp.int32)
    src = src.at[0, 6:].set(PAD).at[1, 7:].set(PAD)   # exercise key_padding_mask

    out = transformer_encoder_forward(src, params, NHEAD, NLAYERS, PAD)
    out = jax.block_until_ready(out)

    ref = reference_forward(src, params, NHEAD, NLAYERS, PAD)
    assert out.shape == (BATCH, SEQ, EMB)
    assert bool(jnp.all(jnp.isfinite(out)))
    # bf16 MXU path + approx-reciprocal softmax vs. pure-f32 reference.
    assert bool(jnp.allclose(out, ref, atol=5e-2, rtol=5e-2)), \
        float(jnp.max(jnp.abs(out - ref)))
    print("KERNEL_OK")
</pallas_src>

<mosaic_0001>
module attributes {stable_mosaic.version = 11 : i64} {
  func.func @_fused_encoder_kernel(%arg0: i32, %arg1: i32, %arg2: memref<16x32xf32, #tpu.memory_space<vmem>>, %arg3: memref<2x1x8xf32, #tpu.memory_space<vmem>>, %arg4: memref<8x32xf32, #tpu.memory_space<vmem>>, %arg5: memref<1x32x96xbf16, #tpu.memory_space<vmem>>, %arg6: memref<1x1x96xf32, #tpu.memory_space<vmem>>, %arg7: memref<1x32x32xbf16, #tpu.memory_space<vmem>>, %arg8: memref<1x1x32xf32, #tpu.memory_space<vmem>>, %arg9: memref<1x1x32xf32, #tpu.memory_space<vmem>>, %arg10: memref<1x1x32xf32, #tpu.memory_space<vmem>>, %arg11: memref<1x32x64xbf16, #tpu.memory_space<vmem>>, %arg12: memref<1x1x64xf32, #tpu.memory_space<vmem>>, %arg13: memref<1x64x32xbf16, #tpu.memory_space<vmem>>, %arg14: memref<1x1x32xf32, #tpu.memory_space<vmem>>, %arg15: memref<1x1x32xf32, #tpu.memory_space<vmem>>, %arg16: memref<1x1x32xf32, #tpu.memory_space<vmem>>, %arg17: memref<16x32xf32, #tpu.memory_space<vmem>>) attributes {dimension_semantics = [#tpu.dimension_semantics<parallel>, #tpu.dimension_semantics<arbitrary>], iteration_bounds = array<i64: 1, 2>, scalar_prefetch = 0 : i64, scratch_operands = 0 : i64, tpu.core_type = #tpu.core_type<tc>, window_params = [{transform_indices = @transform_0, window_bounds = array<i64: 16, 32>}, {transform_indices = @transform_1, window_bounds = array<i64: 2, 1, 8>}, {pipeline_mode = #tpu.pipeline_mode<synchronous>, transform_indices = @transform_2, window_bounds = array<i64: 8, 32>}, {transform_indices = @transform_3, window_bounds = array<i64: 1, 32, 96>}, {transform_indices = @transform_4, window_bounds = array<i64: 1, 1, 96>}, {transform_indices = @transform_5, window_bounds = array<i64: 1, 32, 32>}, {transform_indices = @transform_6, window_bounds = array<i64: 1, 1, 32>}, {transform_indices = @transform_7, window_bounds = array<i64: 1, 1, 32>}, {transform_indices = @transform_8, window_bounds = array<i64: 1, 1, 32>}, {transform_indices = @transform_9, window_bounds = array<i64: 1, 32, 64>}, {transform_indices = @transform_10, window_bounds = array<i64: 1, 1, 64>}, {transform_indices = @transform_11, window_bounds = array<i64: 1, 64, 32>}, {transform_indices = @transform_12, window_bounds = array<i64: 1, 1, 32>}, {transform_indices = @transform_13, window_bounds = array<i64: 1, 1, 32>}, {transform_indices = @transform_14, window_bounds = array<i64: 1, 1, 32>}, {transform_indices = @transform_15, window_bounds = array<i64: 16, 32>}]} {
    %c0_i32 = arith.constant 0 : i32
    %0 = arith.cmpi eq, %arg1, %c0_i32 : i32
    %1 = arith.extui %0 : i1 to i32
    %c0_i32_0 = arith.constant 0 : i32
    %2 = arith.cmpi ne, %1, %c0_i32_0 : i32
    scf.if %2 {
      %c0_61 = arith.constant 0 : index
      %c0_62 = arith.constant 0 : index
      %126 = vector.load %arg2[%c0_61, %c0_62] : memref<16x32xf32, #tpu.memory_space<vmem>>, vector<16x32xf32>
      %127 = vector.shape_cast %126 : vector<16x32xf32> to vector<2x8x32xf32>
      %c0_63 = arith.constant 0 : index
      %c0_64 = arith.constant 0 : index
      %128 = vector.load %arg4[%c0_63, %c0_64] : memref<8x32xf32, #tpu.memory_space<vmem>>, vector<8x32xf32>
      %129 = vector.shape_cast %128 : vector<8x32xf32> to vector<1x8x32xf32>
      %130 = vector.broadcast %129 : vector<1x8x32xf32> to vector<2x8x32xf32>
      %131 = arith.addf %127, %130 : vector<2x8x32xf32>
      %132 = vector.shape_cast %131 : vector<2x8x32xf32> to vector<16x32xf32>
      %c0_65 = arith.constant 0 : index
      %c0_66 = arith.constant 0 : index
      %133 = vector.load %arg17[%c0_65, %c0_66] : memref<16x32xf32, #tpu.memory_space<vmem>>, vector<16x32xf32>
      tpu.vector_store %arg17[%c0_65, %c0_66], %132 {strides = array<i32>} : memref<16x32xf32, #tpu.memory_space<vmem>>, vector<16x32xf32>,
    } else {
    }
    %c0 = arith.constant 0 : index
    %c0_1 = arith.constant 0 : index
    %3 = vector.load %arg17[%c0, %c0_1] : memref<16x32xf32, #tpu.memory_space<vmem>>, vector<16x32xf32>
    %4 = arith.truncf %3 : vector<16x32xf32> to vector<16x32xbf16>
    %c0_2 = arith.constant 0 : index
    %c0_3 = arith.constant 0 : index
    %c0_4 = arith.constant 0 : index
    %5 = vector.load %arg5[%c0_2, %c0_3, %c0_4] : memref<1x32x96xbf16, #tpu.memory_space<vmem>>, vector<1x32x96xbf16>
    %6 = vector.shape_cast %5 : vector<1x32x96xbf16> to vector<32x96xbf16>
    %cst = arith.constant dense<0.000000e+00> : vector<16x96xf32>
    %7 = tpu.matmul %4, %6, %cst {dimension_numbers = #tpu.dot_dimension_numbers<[1], [0], [0], [1], [0, 0, 1, 1], [], []>} : vector<16x32xbf16>, vector<32x96xbf16>, vector<16x96xf32> -> vector<16x96xf32>
    %c0_5 = arith.constant 0 : index
    %c0_6 = arith.constant 0 : index
    %c0_7 = arith.constant 0 : index
    %8 = vector.load %arg6[%c0_5, %c0_6, %c0_7] : memref<1x1x96xf32, #tpu.memory_space<vmem>>, vector<1x1x96xf32>
    %9 = vector.shape_cast %8 : vector<1x1x96xf32> to vector<1x96xf32>
    %10 = vector.broadcast %9 : vector<1x96xf32> to vector<16x96xf32>
    %11 = arith.addf %7, %10 : vector<16x96xf32>
    %12 = vector.shape_cast %11 : vector<16x96xf32> to vector<2x8x12x8xf32>
    %13 = tpu.transpose %12, [0, 2, 1, 3] : vector<2x8x12x8xf32> -> vector<2x12x8x8xf32>
    %14 = vector.extract_strided_slice %13 {offsets = [0, 0, 0, 0], sizes = [2, 4, 8, 8], strides = [1, 1, 1, 1]} : vector<2x12x8x8xf32> to vector<2x4x8x8xf32>
    %15 = vector.shape_cast %14 : vector<2x4x8x8xf32> to vector<8x8x8xf32>
    %16 = arith.truncf %15 : vector<8x8x8xf32> to vector<8x8x8xbf16>
    %17 = vector.extract_strided_slice %13 {offsets = [0, 4, 0, 0], sizes = [2, 4, 8, 8], strides = [1, 1, 1, 1]} : vector<2x12x8x8xf32> to vector<2x4x8x8xf32>
    %18 = vector.shape_cast %17 : vector<2x4x8x8xf32> to vector<8x8x8xf32>
    %19 = arith.truncf %18 : vector<8x8x8xf32> to vector<8x8x8xbf16>
    %20 = vector.extract_strided_slice %13 {offsets = [0, 8, 0, 0], sizes = [2, 4, 8, 8], strides = [1, 1, 1, 1]} : vector<2x12x8x8xf32> to vector<2x4x8x8xf32>
    %21 = vector.shape_cast %20 : vector<2x4x8x8xf32> to vector<8x8x8xf32>
    %22 = arith.truncf %21 : vector<8x8x8xf32> to vector<8x8x8xbf16>
    "tpu.trace_start"() <{level = 10 : i32, message = "bqd,bkd->bqk"}> : () -> ()
    %cst_8 = arith.constant dense<0.000000e+00> : vector<8x8x8xf32>
    %23 = tpu.matmul %16, %19, %cst_8 {dimension_numbers = #tpu.dot_dimension_numbers<[2], [2], [1], [1], [0, 0, 0, 1, 1, 1], [0], [0]>} : vector<8x8x8xbf16>, vector<8x8x8xbf16>, vector<8x8x8xf32> -> vector<8x8x8xf32>
    "tpu.trace_stop"() : () -> ()
    %24 = vector.shape_cast %23 : vector<8x8x8xf32> to vector<2x4x8x8xf32>
    %c0_9 = arith.constant 0 : index
    %c0_10 = arith.constant 0 : index
    %c0_11 = arith.constant 0 : index
    %25 = vector.load %arg3[%c0_9, %c0_10, %c0_11] : memref<2x1x8xf32, #tpu.memory_space<vmem>>, vector<2x1x8xf32>
    %26 = vector.shape_cast %25 : vector<2x1x8xf32> to vector<2x1x1x8xf32>
    %27 = vector.broadcast %26 : vector<2x1x1x8xf32> to vector<2x4x8x8xf32>
    %28 = arith.addf %24, %27 : vector<2x4x8x8xf32>
    %cst_12 = arith.constant dense<0xFF800000> : vector<2x4x8xf32>
    %29 = vector.multi_reduction <maximumf>, %28, %cst_12 [3] : vector<2x4x8x8xf32> to vector<2x4x8xf32>
    %30 = vector.shape_cast %29 : vector<2x4x8xf32> to vector<2x4x8x1xf32>
    %31 = vector.broadcast %30 : vector<2x4x8x1xf32> to vector<2x4x8x8xf32>
    %32 = arith.subf %28, %31 : vector<2x4x8x8xf32>
    %33 = math.exp %32 : vector<2x4x8x8xf32>
    %cst_13 = arith.constant dense<0.000000e+00> : vector<2x4x8xf32>
    %34 = vector.multi_reduction <add>, %33, %cst_13 [3] : vector<2x4x8x8xf32> to vector<2x4x8xf32>
    %35 = vector.shape_cast %34 : vector<2x4x8xf32> to vector<2x4x8x1xf32>
    %36 = tpu.reciprocal %35 {approx = true} : vector<2x4x8x1xf32> -> vector<2x4x8x1xf32>
    %37 = vector.broadcast %36 : vector<2x4x8x1xf32> to vector<2x4x8x8xf32>
    %38 = arith.mulf %33, %37 : vector<2x4x8x8xf32>
    %39 = vector.shape_cast %38 : vector<2x4x8x8xf32> to vector<8x8x8xf32>
    %40 = arith.truncf %39 : vector<8x8x8xf32> to vector<8x8x8xbf16>
    "tpu.trace_start"() <{level = 10 : i32, message = "bqk,bkd->bqd"}> : () -> ()
    %cst_14 = arith.constant dense<0.000000e+00> : vector<8x8x8xf32>
    %41 = tpu.matmul %40, %22, %cst_14 {dimension_numbers = #tpu.dot_dimension_numbers<[2], [1], [1], [2], [0, 0, 0, 1, 1, 2], [0], [0]>} : vector<8x8x8xbf16>, vector<8x8x8xbf16>, vector<8x8x8xf32> -> vector<8x8x8xf32>
    "tpu.trace_stop"() : () -> ()
    %42 = vector.shape_cast %41 : vector<8x8x8xf32> to vector<2x4x8x8xf32>
    %43 = tpu.transpose %42, [0, 2, 1, 3] : vector<2x4x8x8xf32> -> vector<2x8x4x8xf32>
    %44 = vector.shape_cast %43 : vector<2x8x4x8xf32> to vector<16x32xf32>
    %45 = arith.truncf %44 : vector<16x32xf32> to vector<16x32xbf16>
    %c0_15 = arith.constant 0 : index
    %c0_16 = arith.constant 0 : index
    %c0_17 = arith.constant 0 : index
    %46 = vector.load %arg7[%c0_15, %c0_16, %c0_17] : memref<1x32x32xbf16, #tpu.memory_space<vmem>>, vector<1x32x32xbf16>
    %47 = vector.shape_cast %46 : vector<1x32x32xbf16> to vector<32x32xbf16>
    %cst_18 = arith.constant dense<0.000000e+00> : vector<16x32xf32>
    %48 = tpu.matmul %45, %47, %cst_18 {dimension_numbers = #tpu.dot_dimension_numbers<[1], [0], [0], [1], [0, 0, 1, 1], [], []>} : vector<16x32xbf16>, vector<32x32xbf16>, vector<16x32xf32> -> vector<16x32xf32>
    %c0_19 = arith.constant 0 : index
    %c0_20 = arith.constant 0 : index
    %c0_21 = arith.constant 0 : index
    %49 = vector.load %arg8[%c0_19, %c0_20, %c0_21] : memref<1x1x32xf32, #tpu.memory_space<vmem>>, vector<1x1x32xf32>
    %50 = vector.shape_cast %49 : vector<1x1x32xf32> to vector<1x32xf32>
    %51 = vector.broadcast %50 : vector<1x32xf32> to vector<16x32xf32>
    %52 = arith.addf %48, %51 : vector<16x32xf32>
    %53 = arith.addf %3, %52 : vector<16x32xf32>
    %c0_22 = arith.constant 0 : index
    %c0_23 = arith.constant 0 : index
    %c0_24 = arith.constant 0 : index
    %54 = vector.load %arg9[%c0_22, %c0_23, %c0_24] : memref<1x1x32xf32, #tpu.memory_space<vmem>>, vector<1x1x32xf32>
    %55 = vector.shape_cast %54 : vector<1x1x32xf32> to vector<1x32xf32>
    %c0_25 = arith.constant 0 : index
    %c0_26 = arith.constant 0 : index
    %c0_27 = arith.constant 0 : index
    %56 = vector.load %arg10[%c0_25, %c0_26, %c0_27] : memref<1x1x32xf32, #tpu.memory_space<vmem>>, vector<1x1x32xf32>
    %57 = vector.shape_cast %56 : vector<1x1x32xf32> to vector<1x32xf32>
    %cst_28 = arith.constant dense<0.000000e+00> : vector<16xf32>
    %58 = vector.multi_reduction <add>, %53, %cst_28 [1] : vector<16x32xf32> to vector<16xf32>
    %59 = vector.shape_cast %58 : vector<16xf32> to vector<16x1xf32>
    %cst_29 = arith.constant 3.200000e+01 : f32
    %60 = vector.broadcast %cst_29 : f32 to vector<16x1xf32>
    %61 = arith.divf %59, %60 : vector<16x1xf32>
    %62 = vector.broadcast %61 : vector<16x1xf32> to vector<16x32xf32>
    %63 = arith.subf %53, %62 : vector<16x32xf32>
    %64 = arith.mulf %63, %63 : vector<16x32xf32>
    %cst_30 = arith.constant dense<0.000000e+00> : vector<16xf32>
    %65 = vector.multi_reduction <add>, %64, %cst_30 [1] : vector<16x32xf32> to vector<16xf32>
    %66 = vector.shape_cast %65 : vector<16xf32> to vector<16x1xf32>
    %cst_31 = arith.constant 3.200000e+01 : f32
    %67 = vector.broadcast %cst_31 : f32 to vector<16x1xf32>
    %68 = arith.divf %66, %67 : vector<16x1xf32>
    %69 = vector.broadcast %61 : vector<16x1xf32> to vector<16x32xf32>
    %70 = arith.subf %53, %69 : vector<16x32xf32>
    %cst_32 = arith.constant 9.99999974E-6 : f32
    %71 = vector.broadcast %cst_32 : f32 to vector<16x1xf32>
    %72 = arith.addf %68, %71 : vector<16x1xf32>
    %73 = math.rsqrt %72 : vector<16x1xf32>
    %74 = vector.broadcast %73 : vector<16x1xf32> to vector<16x32xf32>
    %75 = arith.mulf %70, %74 : vector<16x32xf32>
    %76 = vector.broadcast %55 : vector<1x32xf32> to vector<16x32xf32>
    %77 = arith.mulf %75, %76 : vector<16x32xf32>
    %78 = vector.broadcast %57 : vector<1x32xf32> to vector<16x32xf32>
    %79 = arith.addf %77, %78 : vector<16x32xf32>
    %80 = arith.truncf %79 : vector<16x32xf32> to vector<16x32xbf16>
    %c0_33 = arith.constant 0 : index
    %c0_34 = arith.constant 0 : index
    %c0_35 = arith.constant 0 : index
    %81 = vector.load %arg11[%c0_33, %c0_34, %c0_35] : memref<1x32x64xbf16, #tpu.memory_space<vmem>>, vector<1x32x64xbf16>
    %82 = vector.shape_cast %81 : vector<1x32x64xbf16> to vector<32x64xbf16>
    %cst_36 = arith.constant dense<0.000000e+00> : vector<16x64xf32>
    %83 = tpu.matmul %80, %82, %cst_36 {dimension_numbers = #tpu.dot_dimension_numbers<[1], [0], [0], [1], [0, 0, 1, 1], [], []>} : vector<16x32xbf16>, vector<32x64xbf16>, vector<16x64xf32> -> vector<16x64xf32>
    %c0_37 = arith.constant 0 : index
    %c0_38 = arith.constant 0 : index
    %c0_39 = arith.constant 0 : index
    %84 = vector.load %arg12[%c0_37, %c0_38, %c0_39] : memref<1x1x64xf32, #tpu.memory_space<vmem>>, vector<1x1x64xf32>
    %85 = vector.shape_cast %84 : vector<1x1x64xf32> to vector<1x64xf32>
    %86 = vector.broadcast %85 : vector<1x64xf32> to vector<16x64xf32>
    %87 = arith.addf %83, %86 : vector<16x64xf32>
    %cst_40 = arith.constant 0.000000e+00 : f32
    %88 = vector.broadcast %cst_40 : f32 to vector<16x64xf32>
    %89 = arith.maximumf %87, %88 : vector<16x64xf32>
    %90 = arith.truncf %89 : vector<16x64xf32> to vector<16x64xbf16>
    %c0_41 = arith.constant 0 : index
    %c0_42 = arith.constant 0 : index
    %c0_43 = arith.constant 0 : index
    %91 = vector.load %arg13[%c0_41, %c0_42, %c0_43] : memref<1x64x32xbf16, #tpu.memory_space<vmem>>, vector<1x64x32xbf16>
    %92 = vector.shape_cast %91 : vector<1x64x32xbf16> to vector<64x32xbf16>
    %cst_44 = arith.constant dense<0.000000e+00> : vector<16x32xf32>
    %93 = tpu.matmul %90, %92, %cst_44 {dimension_numbers = #tpu.dot_dimension_numbers<[1], [0], [0], [1], [0, 0, 1, 1], [], []>} : vector<16x64xbf16>, vector<64x32xbf16>, vector<16x32xf32> -> vector<16x32xf32>
    %c0_45 = arith.constant 0 : index
    %c0_46 = arith.constant 0 : index
    %c0_47 = arith.constant 0 : index
    %94 = vector.load %arg14[%c0_45, %c0_46, %c0_47] : memref<1x1x32xf32, #tpu.memory_space<vmem>>, vector<1x1x32xf32>
    %95 = vector.shape_cast %94 : vector<1x1x32xf32> to vector<1x32xf32>
    %96 = vector.broadcast %95 : vector<1x32xf32> to vector<16x32xf32>
    %97 = arith.addf %93, %96 : vector<16x32xf32>
    %98 = arith.addf %79, %97 : vector<16x32xf32>
    %c0_48 = arith.constant 0 : index
    %c0_49 = arith.constant 0 : index
    %c0_50 = arith.constant 0 : index
    %99 = vector.load %arg15[%c0_48, %c0_49, %c0_50] : memref<1x1x32xf32, #tpu.memory_space<vmem>>, vector<1x1x32xf32>
    %100 = vector.shape_cast %99 : vector<1x1x32xf32> to vector<1x32xf32>
    %c0_51 = arith.constant 0 : index
    %c0_52 = arith.constant 0 : index
    %c0_53 = arith.constant 0 : index
    %101 = vector.load %arg16[%c0_51, %c0_52, %c0_53] : memref<1x1x32xf32, #tpu.memory_space<vmem>>, vector<1x1x32xf32>
    %102 = vector.shape_cast %101 : vector<1x1x32xf32> to vector<1x32xf32>
    %cst_54 = arith.constant dense<0.000000e+00> : vector<16xf32>
    %103 = vector.multi_reduction <add>, %98, %cst_54 [1] : vector<16x32xf32> to vector<16xf32>
    %104 = vector.shape_cast %103 : vector<16xf32> to vector<16x1xf32>
    %cst_55 = arith.constant 3.200000e+01 : f32
    %105 = vector.broadcast %cst_55 : f32 to vector<16x1xf32>
    %106 = arith.divf %104, %105 : vector<16x1xf32>
    %107 = vector.broadcast %106 : vector<16x1xf32> to vector<16x32xf32>
    %108 = arith.subf %98, %107 : vector<16x32xf32>
    %109 = arith.mulf %108, %108 : vector<16x32xf32>
    %cst_56 = arith.constant dense<0.000000e+00> : vector<16xf32>
    %110 = vector.multi_reduction <add>, %109, %cst_56 [1] : vector<16x32xf32> to vector<16xf32>
    %111 = vector.shape_cast %110 : vector<16xf32> to vector<16x1xf32>
    %cst_57 = arith.constant 3.200000e+01 : f32
    %112 = vector.broadcast %cst_57 : f32 to vector<16x1xf32>
    %113 = arith.divf %111, %112 : vector<16x1xf32>
    %114 = vector.broadcast %106 : vector<16x1xf32> to vector<16x32xf32>
    %115 = arith.subf %98, %114 : vector<16x32xf32>
    %cst_58 = arith.constant 9.99999974E-6 : f32
    %116 = vector.broadcast %cst_58 : f32 to vector<16x1xf32>
    %117 = arith.addf %113, %116 : vector<16x1xf32>
    %118 = math.rsqrt %117 : vector<16x1xf32>
    %119 = vector.broadcast %118 : vector<16x1xf32> to vector<16x32xf32>
    %120 = arith.mulf %115, %119 : vector<16x32xf32>
    %121 = vector.broadcast %100 : vector<1x32xf32> to vector<16x32xf32>
    %122 = arith.mulf %120, %121 : vector<16x32xf32>
    %123 = vector.broadcast %102 : vector<1x32xf32> to vector<16x32xf32>
    %124 = arith.addf %122, %123 : vector<16x32xf32>
    %c0_59 = arith.constant 0 : index
    %c0_60 = arith.constant 0 : index
    %125 = vector.load %arg17[%c0_59, %c0_60] : memref<16x32xf32, #tpu.memory_space<vmem>>, vector<16x32xf32>
    tpu.vector_store %arg17[%c0_59, %c0_60], %124 {strides = array<i32>} : memref<16x32xf32, #tpu.memory_space<vmem>>, vector<16x32xf32>,
    return
  }
  func.func @transform_0(%arg0: i32, %arg1: i32) -> (i32, i32) {
    %c0_i32 = arith.constant 0 : i32
    %c0_i32_0 = arith.constant 0 : i32
    return %arg0, %c0_i32 : i32, i32
  }
  func.func @transform_1(%arg0: i32, %arg1: i32) -> (i32, i32, i32) {
    %c0_i32 = arith.constant 0 : i32
    %c0_i32_0 = arith.constant 0 : i32
    %c0_i32_1 = arith.constant 0 : i32
    return %arg0, %c0_i32, %c0_i32_0 : i32, i32, i32
  }
  func.func @transform_2(%arg0: i32, %arg1: i32) -> (i32, i32) {
    %c0_i32 = arith.constant 0 : i32
    %c0_i32_0 = arith.constant 0 : i32
    %c0_i32_1 = arith.constant 0 : i32
    return %c0_i32, %c0_i32_0 : i32, i32
  }
  func.func @transform_3(%arg0: i32, %arg1: i32) -> (i32, i32, i32) {
    %c0_i32 = arith.constant 0 : i32
    %c0_i32_0 = arith.constant 0 : i32
    %c0_i32_1 = arith.constant 0 : i32
    return %arg1, %c0_i32, %c0_i32_0 : i32, i32, i32
  }
  func.func @transform_4(%arg0: i32, %arg1: i32) -> (i32, i32, i32) {
    %c0_i32 = arith.constant 0 : i32
    %c0_i32_0 = arith.constant 0 : i32
    %c0_i32_1 = arith.constant 0 : i32
    return %arg1, %c0_i32, %c0_i32_0 : i32, i32, i32
  }
  func.func @transform_5(%arg0: i32, %arg1: i32) -> (i32, i32, i32) {
    %c0_i32 = arith.constant 0 : i32
    %c0_i32_0 = arith.constant 0 : i32
    %c0_i32_1 = arith.constant 0 : i32
    return %arg1, %c0_i32, %c0_i32_0 : i32, i32, i32
  }
  func.func @transform_6(%arg0: i32, %arg1: i32) -> (i32, i32, i32) {
    %c0_i32 = arith.constant 0 : i32
    %c0_i32_0 = arith.constant 0 : i32
    %c0_i32_1 = arith.constant 0 : i32
    return %arg1, %c0_i32, %c0_i32_0 : i32, i32, i32
  }
  func.func @transform_7(%arg0: i32, %arg1: i32) -> (i32, i32, i32) {
    %c0_i32 = arith.constant 0 : i32
    %c0_i32_0 = arith.constant 0 : i32
    %c0_i32_1 = arith.constant 0 : i32
    return %arg1, %c0_i32, %c0_i32_0 : i32, i32, i32
  }
  func.func @transform_8(%arg0: i32, %arg1: i32) -> (i32, i32, i32) {
    %c0_i32 = arith.constant 0 : i32
    %c0_i32_0 = arith.constant 0 : i32
    %c0_i32_1 = arith.constant 0 : i32
    return %arg1, %c0_i32, %c0_i32_0 : i32, i32, i32
  }
  func.func @transform_9(%arg0: i32, %arg1: i32) -> (i32, i32, i32) {
    %c0_i32 = arith.constant 0 : i32
    %c0_i32_0 = arith.constant 0 : i32
    %c0_i32_1 = arith.constant 0 : i32
    return %arg1, %c0_i32, %c0_i32_0 : i32, i32, i32
  }
  func.func @transform_10(%arg0: i32, %arg1: i32) -> (i32, i32, i32) {
    %c0_i32 = arith.constant 0 : i32
    %c0_i32_0 = arith.constant 0 : i32
    %c0_i32_1 = arith.constant 0 : i32
    return %arg1, %c0_i32, %c0_i32_0 : i32, i32, i32
  }
  func.func @transform_11(%arg0: i32, %arg1: i32) -> (i32, i32, i32) {
    %c0_i32 = arith.constant 0 : i32
    %c0_i32_0 = arith.constant 0 : i32
    %c0_i32_1 = arith.constant 0 : i32
    return %arg1, %c0_i32, %c0_i32_0 : i32, i32, i32
  }
  func.func @transform_12(%arg0: i32, %arg1: i32) -> (i32, i32, i32) {
    %c0_i32 = arith.constant 0 : i32
    %c0_i32_0 = arith.constant 0 : i32
    %c0_i32_1 = arith.constant 0 : i32
    return %arg1, %c0_i32, %c0_i32_0 : i32, i32, i32
  }
  func.func @transform_13(%arg0: i32, %arg1: i32) -> (i32, i32, i32) {
    %c0_i32 = arith.constant 0 : i32
    %c0_i32_0 = arith.constant 0 : i32
    %c0_i32_1 = arith.constant 0 : i32
    return %arg1, %c0_i32, %c0_i32_0 : i32, i32, i32
  }
  func.func @transform_14(%arg0: i32, %arg1: i32) -> (i32, i32, i32) {
    %c0_i32 = arith.constant 0 : i32
    %c0_i32_0 = arith.constant 0 : i32
    %c0_i32_1 = arith.constant 0 : i32
    return %arg1, %c0_i32, %c0_i32_0 : i32, i32, i32
  }
  func.func @transform_15(%arg0: i32, %arg1: i32) -> (i32, i32) {
    %c0_i32 = arith.constant 0 : i32
    %c0_i32_0 = arith.constant 0 : i32
    return %arg0, %c0_i32 : i32, i32
  }
}

</mosaic_0001>

<llo_original>
// kernel: tpu_custom_call.1
$region0: #{tpu_custom_call.1}
  #allocation0 [shape = 'u32[]', space=smem, size = 0x4, offset = 0x4, fixed_abs, tag = 'smem constant byte address 0x4 - core index']
  #allocation1 [shape = 'u32[144,128]{1,0:T(1,128)}', space=vmem, size = 0x12000, scoped, tag = 'internal scratch']
  %s0 = inlined_call_operand.hbm [shape: f32[16,32], index: 0, kind: input, shape index: {}]
  %s1 = inlined_call_operand.hbm [shape: f32[2,1,8], index: 1, kind: input, shape index: {}]
  %s2 = inlined_call_operand.hbm [shape: f32[8,32], index: 2, kind: input, shape index: {}]
  %s3 = inlined_call_operand.vmem [shape: bf16[2,32,96], index: 3, kind: input, shape index: {}]
  %s4 = inlined_call_operand.vmem [shape: f32[2,1,96], index: 4, kind: input, shape index: {}]
  %s5 = inlined_call_operand.vmem [shape: bf16[2,32,32], index: 5, kind: input, shape index: {}]
  %s6 = inlined_call_operand.vmem [shape: f32[2,1,32], index: 6, kind: input, shape index: {}]
  %s7 = inlined_call_operand.vmem [shape: f32[2,1,32], index: 7, kind: input, shape index: {}]
  %s8 = inlined_call_operand.vmem [shape: f32[2,1,32], index: 8, kind: input, shape index: {}]
  %s9 = inlined_call_operand.vmem [shape: bf16[2,32,64], index: 9, kind: input, shape index: {}]
  %s10 = inlined_call_operand.vmem [shape: f32[2,1,64], index: 10, kind: input, shape index: {}]
  %s11 = inlined_call_operand.vmem [shape: bf16[2,64,32], index: 11, kind: input, shape index: {}]
  %s12 = inlined_call_operand.vmem [shape: f32[2,1,32], index: 12, kind: input, shape index: {}]
  %s13 = inlined_call_operand.vmem [shape: f32[2,1,32], index: 13, kind: input, shape index: {}]
  %s14 = inlined_call_operand.vmem [shape: f32[2,1,32], index: 14, kind: input, shape index: {}]
  %s15 = inlined_call_operand.hbm [shape: f32[16,32], index: 15, kind: output, shape index: {}]
  %s16 = sld [smem:[#allocation0]]
  $region109: #{tpu_custom_call.1} parent=0
    _
  %s18 = ssub.s32 1, %s16
  %s19 = scalar_select 0, %s18, %s16
  $region1: #{tpu_custom_call.1} parent=0
    #allocation2 [shape = 'u8[8192]{0}', space=vmem, size = 0x2000, scoped, tag = 'input window, operand 0, single buffered']
    #allocation3 [shape = 's32[2]{0}', space=sflag, size = 0x8, scoped, tag = 'scoped memory for tpu_custom_call.1']
    #allocation4 [shape = 's32[2]{0}', space=sflag, size = 0x8, scoped, tag = 'scoped memory for tpu_custom_call.1']
    #allocation5 [shape = 'u8[1024]{0}', space=vmem, size = 0x400, scoped, tag = 'input window, operand 1, single buffered']
    #allocation6 [shape = 's32[1]{0}', space=sflag, size = 0x4, scoped, tag = 'scoped memory for tpu_custom_call.1']
    #allocation7 [shape = 'u8[4096]{0}', space=vmem, size = 0x1000, scoped, tag = 'input window, operand 2, single buffered']
    #allocation8 [shape = 'u8[8192]{0}', space=vmem, size = 0x2000, scoped, tag = 'output window, operand 0, single buffered']
    %20 = vsyncpa [#allocation3], 0
    %21 = vsyncpa [#allocation6], 0
    %22 = vsyncpa [#allocation4], 0
    loop: start=0, step=1, limit=4
    $region2: #{tpu_custom_call.1} parent=1 // loop_pre_header
      _
    $region3: #{tpu_custom_call.1} parent=1 // loop_header
      %s24 = sphi 0, %s28
      %p25 = scmp.ge.s32.totalorder %s24, 4
      %s31 = sphi 0, %s43
      %s32 = sphi 0, %s39
      %s33 = sphi 0, %s31
      %s34 = sphi 0, %s32
      %s35 = sphi 0, %s33
      %s36 = sphi 0, %s34
      %s46 = sphi 0, %s48
      %s49 = sphi 0, %s46
      %s50 = sphi 0, %s49
      %s66 = sphi 0, %s50
      %s72 = sphi 0, %s74
      %s75 = sphi 0, %s72
      %s76 = sphi 0, %s75
      %s92 = sphi 0, %s76
      %s96 = sphi 0, %s96
      %s98 = sphi 0, %s96
      %s99 = sphi 0, %s98
      %s113 = sphi 0, %s99
      %s119 = sphi 0, %s121
      %s122 = sphi 0, %s119
      %s123 = sphi 0, %s122
      %s139 = sphi 0, %s123
      %s145 = sphi 0, %s147
      %s148 = sphi 0, %s145
      %s149 = sphi 0, %s148
      %s165 = sphi 0, %s149
      %s171 = sphi 0, %s173
      %s174 = sphi 0, %s171
      %s175 = sphi 0, %s174
      %s191 = sphi 0, %s175
      %s197 = sphi 0, %s199
      %s200 = sphi 0, %s197
      %s201 = sphi 0, %s200
      %s217 = sphi 0, %s201
      %s223 = sphi 0, %s225
      %s226 = sphi 0, %s223
      %s227 = sphi 0, %s226
      %s243 = sphi 0, %s227
      %s249 = sphi 0, %s251
      %s252 = sphi 0, %s249
      %s253 = sphi 0, %s252
      %s269 = sphi 0, %s253
      %s275 = sphi 0, %s277
      %s278 = sphi 0, %s275
      %s279 = sphi 0, %s278
      %s295 = sphi 0, %s279
      %s301 = sphi 0, %s303
      %s304 = sphi 0, %s301
      %s305 = sphi 0, %s304
      %s321 = sphi 0, %s305
      %s327 = sphi 0, %s329
      %s330 = sphi 0, %s327
      %s331 = sphi 0, %s330
      %s347 = sphi 0, %s331
      %s353 = sphi 0, %s355
      %s356 = sphi 0, %s353
      %s357 = sphi 0, %s356
      %s373 = sphi 0, %s357
      %s379 = sphi 0, %s381
      %s382 = sphi 0, %s379
      %s383 = sphi 0, %s382
      %s399 = sphi 0, %s383
      %s405 = sphi 0, %s407
      %s408 = sphi 0, %s405
      %s409 = sphi 0, %s408
      %s425 = sphi 0, %s409
      %s431 = sphi 0, %s433
      %s434 = sphi 0, %s431
      %s435 = sphi 0, %s434
      %s451 = sphi 0, %s435
    $region4: #{tpu_custom_call.1} parent=1 // loop_header_branch
      %27 = sbr.rel (%p25) target = $region8
    $region5: #{tpu_custom_call.1} parent=1 // loop_body
      %s29 = ssub.s32 %s24, 1
      %s30 = ssub.s32 %s24, 2
      %s37 = sadd.s32 1, %s32
      %p38 = scmp.ge.s32.totalorder %s37, 2
      %s39 = scalar_select %p38, 0, %s37
      %s40 = sadd.s32 1, %s31
      %s41 = scalar_select %p38, %s40, %s31
      %p42 = scmp.ge.s32.totalorder %s41, 1
      %s43 = scalar_select %p42, 0, %s41
      %s44 = ssub.s32 %s31, %s43
      %p45 = scmp.eq.s32.totalorder %s44, 0
      %s47 = sadd.s32 %s46, 1
      %s48 = scalar_select %p45, %s46, %s47
      %p51 = pneg %p45
      %p52 = scmp.eq.s32.totalorder %s24, 1
      %p53 = por %p51, %p52
      %p54 = scmp.ne.s32.totalorder %s46, %s49
      %p55 = scmp.eq.s32.totalorder %s24, 0
      %p56 = por %p54, %p55
      %p57 = scmp.ne.s32.totalorder %s46, %s49
      %p58 = scmp.eq.s32.totalorder %s29, 1
      %p59 = por %p57, %p58
      %p60 = scmp.ne.s32.totalorder %s49, %s50
      %p61 = scmp.eq.s32.totalorder %s29, 0
      %p62 = por %p60, %p61
      %p63 = scmp.ne.s32.totalorder %s49, %s50
      %p64 = scmp.eq.s32.totalorder %s30, 1
      %p65 = por %p63, %p64
      %p67 = scmp.ne.s32.totalorder %s50, %s66
      %p68 = scmp.eq.s32.totalorder %s30, 0
      %p69 = por %p67, %p68
      %s70 = ssub.s32 %s31, %s43
      %p71 = scmp.eq.s32.totalorder %s70, 0
      %s73 = sadd.s32 %s72, 1
      %s74 = scalar_select %p71, %s72, %s73
      %p77 = pneg %p71
      %p78 = scmp.eq.s32.totalorder %s24, 1
      %p79 = por %p77, %p78
      %p80 = scmp.ne.s32.totalorder %s72, %s75
      %p81 = scmp.eq.s32.totalorder %s24, 0
      %p82 = por %p80, %p81
      %p83 = scmp.ne.s32.totalorder %s72, %s75
      %p84 = scmp.eq.s32.totalorder %s29, 1
      %p85 = por %p83, %p84
      %p86 = scmp.ne.s32.totalorder %s75, %s76
      %p87 = scmp.eq.s32.totalorder %s29, 0
      %p88 = por %p86, %p87
      %p89 = scmp.ne.s32.totalorder %s75, %s76
      %p90 = scmp.eq.s32.totalorder %s30, 1
      %p91 = por %p89, %p90
      %p93 = scmp.ne.s32.totalorder %s76, %s92
      %p94 = scmp.eq.s32.totalorder %s30, 0
      %p95 = por %p93, %p94
      %s97 = sadd.s32 %s96, 1
      %p100 = scmp.eq.s32.totalorder %s24, 1
      %p101 = scmp.ne.s32.totalorder %s96, %s98
      %p102 = scmp.eq.s32.totalorder %s24, 0
      %p103 = por %p101, %p102
      %p104 = scmp.ne.s32.totalorder %s96, %s98
      %p105 = scmp.eq.s32.totalorder %s29, 1
      %p106 = por %p104, %p105
      %p107 = scmp.ne.s32.totalorder %s98, %s99
      %p108 = scmp.eq.s32.totalorder %s29, 0
      %p109 = por %p107, %p108
      %p110 = scmp.ne.s32.totalorder %s98, %s99
      %p111 = scmp.eq.s32.totalorder %s30, 1
      %p112 = por %p110, %p111
      %p114 = scmp.ne.s32.totalorder %s99, %s113
      %p115 = scmp.eq.s32.totalorder %s30, 0
      %p116 = por %p114, %p115
      %s117 = ssub.s32 %s32, %s39
      %p118 = scmp.eq.s32.totalorder %s117, 0
      %s120 = sadd.s32 %s119, 1
      %s121 = scalar_select %p118, %s119, %s120
      %p124 = pneg %p118
      %p125 = scmp.eq.s32.totalorder %s24, 1
      %p126 = por %p124, %p125
      %p127 = scmp.ne.s32.totalorder %s119, %s122
      %p128 = scmp.eq.s32.totalorder %s24, 0
      %p129 = por %p127, %p128
      %p130 = scmp.ne.s32.totalorder %s119, %s122
      %p131 = scmp.eq.s32.totalorder %s29, 1
      %p132 = por %p130, %p131
      %p133 = scmp.ne.s32.totalorder %s122, %s123
      %p134 = scmp.eq.s32.totalorder %s29, 0
      %p135 = por %p133, %p134
      %p136 = scmp.ne.s32.totalorder %s122, %s123
      %p137 = scmp.eq.s32.totalorder %s30, 1
      %p138 = por %p136, %p137
      %p140 = scmp.ne.s32.totalorder %s123, %s139
      %p141 = scmp.eq.s32.totalorder %s30, 0
      %p142 = por %p140, %p141
      %s143 = ssub.s32 %s32, %s39
      %p144 = scmp.eq.s32.totalorder %s143, 0
      %s146 = sadd.s32 %s145, 1
      %s147 = scalar_select %p144, %s145, %s146
      %p150 = pneg %p144
      %p151 = scmp.eq.s32.totalorder %s24, 1
      %p152 = por %p150, %p151
      %p153 = scmp.ne.s32.totalorder %s145, %s148
      %p154 = scmp.eq.s32.totalorder %s24, 0
      %p155 = por %p153, %p154
      %p156 = scmp.ne.s32.totalorder %s145, %s148
      %p157 = scmp.eq.s32.totalorder %s29, 1
      %p158 = por %p156, %p157
      %p159 = scmp.ne.s32.totalorder %s148, %s149
      %p160 = scmp.eq.s32.totalorder %s29, 0
      %p161 = por %p159, %p160
      %p162 = scmp.ne.s32.totalorder %s148, %s149
      %p163 = scmp.eq.s32.totalorder %s30, 1
      %p164 = por %p162, %p163
      %p166 = scmp.ne.s32.totalorder %s149, %s165
      %p167 = scmp.eq.s32.totalorder %s30, 0
      %p168 = por %p166, %p167
      %s169 = ssub.s32 %s32, %s39
      %p170 = scmp.eq.s32.totalorder %s169, 0
      %s172 = sadd.s32 %s171, 1
      %s173 = scalar_select %p170, %s171, %s172
      %p176 = pneg %p170
      %p177 = scmp.eq.s32.totalorder %s24, 1
      %p178 = por %p176, %p177
      %p179 = scmp.ne.s32.totalorder %s171, %s174
      %p180 = scmp.eq.s32.totalorder %s24, 0
      %p181 = por %p179, %p180
      %p182 = scmp.ne.s32.totalorder %s171, %s174
      %p183 = scmp.eq.s32.totalorder %s29, 1
      %p184 = por %p182, %p183
      %p185 = scmp.ne.s32.totalorder %s174, %s175
      %p186 = scmp.eq.s32.totalorder %s29, 0
      %p187 = por %p185, %p186
      %p188 = scmp.ne.s32.totalorder %s174, %s175
      %p189 = scmp.eq.s32.totalorder %s30, 1
      %p190 = por %p188, %p189
      %p192 = scmp.ne.s32.totalorder %s175, %s191
      %p193 = scmp.eq.s32.totalorder %s30, 0
      %p194 = por %p192, %p193
      %s195 = ssub.s32 %s32, %s39
      %p196 = scmp.eq.s32.totalorder %s195, 0
      %s198 = sadd.s32 %s197, 1
      %s199 = scalar_select %p196, %s197, %s198
      %p202 = pneg %p196
      %p203 = scmp.eq.s32.totalorder %s24, 1
      %p204 = por %p202, %p203
      %p205 = scmp.ne.s32.totalorder %s197, %s200
      %p206 = scmp.eq.s32.totalorder %s24, 0
      %p207 = por %p205, %p206
      %p208 = scmp.ne.s32.totalorder %s197, %s200
      %p209 = scmp.eq.s32.totalorder %s29, 1
      %p210 = por %p208, %p209
      %p211 = scmp.ne.s32.totalorder %s200, %s201
      %p212 = scmp.eq.s32.totalorder %s29, 0
      %p213 = por %p211, %p212
      %p214 = scmp.ne.s32.totalorder %s200, %s201
      %p215 = scmp.eq.s32.totalorder %s30, 1
      %p216 = por %p214, %p215
      %p218 = scmp.ne.s32.totalorder %s201, %s217
      %p219 = scmp.eq.s32.totalorder %s30, 0
      %p220 = por %p218, %p219
      %s221 = ssub.s32 %s32, %s39
      %p222 = scmp.eq.s32.totalorder %s221, 0
      %s224 = sadd.s32 %s223, 1
      %s225 = scalar_select %p222, %s223, %s224
      %p228 = pneg %p222
      %p229 = scmp.eq.s32.totalorder %s24, 1
      %p230 = por %p228, %p229
      %p231 = scmp.ne.s32.totalorder %s223, %s226
      %p232 = scmp.eq.s32.totalorder %s24, 0
      %p233 = por %p231, %p232
      %p234 = scmp.ne.s32.totalorder %s223, %s226
      %p235 = scmp.eq.s32.totalorder %s29, 1
      %p236 = por %p234, %p235
      %p237 = scmp.ne.s32.totalorder %s226, %s227
      %p238 = scmp.eq.s32.totalorder %s29, 0
      %p239 = por %p237, %p238
      %p240 = scmp.ne.s32.totalorder %s226, %s227
      %p241 = scmp.eq.s32.totalorder %s30, 1
      %p242 = por %p240, %p241
      %p244 = scmp.ne.s32.totalorder %s227, %s243
      %p245 = scmp.eq.s32.totalorder %s30, 0
      %p246 = por %p244, %p245
      %s247 = ssub.s32 %s32, %s39
      %p248 = scmp.eq.s32.totalorder %s247, 0
      %s250 = sadd.s32 %s249, 1
      %s251 = scalar_select %p248, %s249, %s250
      %p254 = pneg %p248
      %p255 = scmp.eq.s32.totalorder %s24, 1
      %p256 = por %p254, %p255
      %p257 = scmp.ne.s32.totalorder %s249, %s252
      %p258 = scmp.eq.s32.totalorder %s24, 0
      %p259 = por %p257, %p258
      %p260 = scmp.ne.s32.totalorder %s249, %s252
      %p261 = scmp.eq.s32.totalorder %s29, 1
      %p262 = por %p260, %p261
      %p263 = scmp.ne.s32.totalorder %s252, %s253
      %p264 = scmp.eq.s32.totalorder %s29, 0
      %p265 = por %p263, %p264
      %p266 = scmp.ne.s32.totalorder %s252, %s253
      %p267 = scmp.eq.s32.totalorder %s30, 1
      %p268 = por %p266, %p267
      %p270 = scmp.ne.s32.totalorder %s253, %s269
      %p271 = scmp.eq.s32.totalorder %s30, 0
      %p272 = por %p270, %p271
      %s273 = ssub.s32 %s32, %s39
      %p274 = scmp.eq.s32.totalorder %s273, 0
      %s276 = sadd.s32 %s275, 1
      %s277 = scalar_select %p274, %s275, %s276
      %p280 = pneg %p274
      %p281 = scmp.eq.s32.totalorder %s24, 1
      %p282 = por %p280, %p281
      %p283 = scmp.ne.s32.totalorder %s275, %s278
      %p284 = scmp.eq.s32.totalorder %s24, 0
      %p285 = por %p283, %p284
      %p286 = scmp.ne.s32.totalorder %s275, %s278
      %p287 = scmp.eq.s32.totalorder %s29, 1
      %p288 = por %p286, %p287
      %p289 = scmp.ne.s32.totalorder %s278, %s279
      %p290 = scmp.eq.s32.totalorder %s29, 0
      %p291 = por %p289, %p290
      %p292 = scmp.ne.s32.totalorder %s278, %s279
      %p293 = scmp.eq.s32.totalorder %s30, 1
      %p294 = por %p292, %p293
      %p296 = scmp.ne.s32.totalorder %s279, %s295
      %p297 = scmp.eq.s32.totalorder %s30, 0
      %p298 = por %p296, %p297
      %s299 = ssub.s32 %s32, %s39
      %p300 = scmp.eq.s32.totalorder %s299, 0
      %s302 = sadd.s32 %s301, 1
      %s303 = scalar_select %p300, %s301, %s302
      %p306 = pneg %p300
      %p307 = scmp.eq.s32.totalorder %s24, 1
      %p308 = por %p306, %p307
      %p309 = scmp.ne.s32.totalorder %s301, %s304
      %p310 = scmp.eq.s32.totalorder %s24, 0
      %p311 = por %p309, %p310
      %p312 = scmp.ne.s32.totalorder %s301, %s304
      %p313 = scmp.eq.s32.totalorder %s29, 1
      %p314 = por %p312, %p313
      %p315 = scmp.ne.s32.totalorder %s304, %s305
      %p316 = scmp.eq.s32.totalorder %s29, 0
      %p317 = por %p315, %p316
      %p318 = scmp.ne.s32.totalorder %s304, %s305
      %p319 = scmp.eq.s32.totalorder %s30, 1
      %p320 = por %p318, %p319
      %p322 = scmp.ne.s32.totalorder %s305, %s321
      %p323 = scmp.eq.s32.totalorder %s30, 0
      %p324 = por %p322, %p323
      %s325 = ssub.s32 %s32, %s39
      %p326 = scmp.eq.s32.totalorder %s325, 0
      %s328 = sadd.s32 %s327, 1
      %s329 = scalar_select %p326, %s327, %s328
      %p332 = pneg %p326
      %p333 = scmp.eq.s32.totalorder %s24, 1
      %p334 = por %p332, %p333
      %p335 = scmp.ne.s32.totalorder %s327, %s330
      %p336 = scmp.eq.s32.totalorder %s24, 0
      %p337 = por %p335, %p336
      %p338 = scmp.ne.s32.totalorder %s327, %s330
      %p339 = scmp.eq.s32.totalorder %s29, 1
      %p340 = por %p338, %p339
      %p341 = scmp.ne.s32.totalorder %s330, %s331
      %p342 = scmp.eq.s32.totalorder %s29, 0
      %p343 = por %p341, %p342
      %p344 = scmp.ne.s32.totalorder %s330, %s331
      %p345 = scmp.eq.s32.totalorder %s30, 1
      %p346 = por %p344, %p345
      %p348 = scmp.ne.s32.totalorder %s331, %s347
      %p349 = scmp.eq.s32.totalorder %s30, 0
      %p350 = por %p348, %p349
      %s351 = ssub.s32 %s32, %s39
      %p352 = scmp.eq.s32.totalorder %s351, 0
      %s354 = sadd.s32 %s353, 1
      %s355 = scalar_select %p352, %s353, %s354
      %p358 = pneg %p352
      %p359 = scmp.eq.s32.totalorder %s24, 1
      %p360 = por %p358, %p359
      %p361 = scmp.ne.s32.totalorder %s353, %s356
      %p362 = scmp.eq.s32.totalorder %s24, 0
      %p363 = por %p361, %p362
      %p364 = scmp.ne.s32.totalorder %s353, %s356
      %p365 = scmp.eq.s32.totalorder %s29, 1
      %p366 = por %p364, %p365
      %p367 = scmp.ne.s32.totalorder %s356, %s357
      %p368 = scmp.eq.s32.totalorder %s29, 0
      %p369 = por %p367, %p368
      %p370 = scmp.ne.s32.totalorder %s356, %s357
      %p371 = scmp.eq.s32.totalorder %s30, 1
      %p372 = por %p370, %p371
      %p374 = scmp.ne.s32.totalorder %s357, %s373
      %p375 = scmp.eq.s32.totalorder %s30, 0
      %p376 = por %p374, %p375
      %s377 = ssub.s32 %s32, %s39
      %p378 = scmp.eq.s32.totalorder %s377, 0
      %s380 = sadd.s32 %s379, 1
      %s381 = scalar_select %p378, %s379, %s380
      %p384 = pneg %p378
      %p385 = scmp.eq.s32.totalorder %s24, 1
      %p386 = por %p384, %p385
      %p387 = scmp.ne.s32.totalorder %s379, %s382
      %p388 = scmp.eq.s32.totalorder %s24, 0
      %p389 = por %p387, %p388
      %p390 = scmp.ne.s32.totalorder %s379, %s382
      %p391 = scmp.eq.s32.totalorder %s29, 1
      %p392 = por %p390, %p391
      %p393 = scmp.ne.s32.totalorder %s382, %s383
      %p394 = scmp.eq.s32.totalorder %s29, 0
      %p395 = por %p393, %p394
      %p396 = scmp.ne.s32.totalorder %s382, %s383
      %p397 = scmp.eq.s32.totalorder %s30, 1
      %p398 = por %p396, %p397
      %p400 = scmp.ne.s32.totalorder %s383, %s399
      %p401 = scmp.eq.s32.totalorder %s30, 0
      %p402 = por %p400, %p401
      %s403 = ssub.s32 %s32, %s39
      %p404 = scmp.eq.s32.totalorder %s403, 0
      %s406 = sadd.s32 %s405, 1
      %s407 = scalar_select %p404, %s405, %s406
      %p410 = pneg %p404
      %p411 = scmp.eq.s32.totalorder %s24, 1
      %p412 = por %p410, %p411
      %p413 = scmp.ne.s32.totalorder %s405, %s408
      %p414 = scmp.eq.s32.totalorder %s24, 0
      %p415 = por %p413, %p414
      %p416 = scmp.ne.s32.totalorder %s405, %s408
      %p417 = scmp.eq.s32.totalorder %s29, 1
      %p418 = por %p416, %p417
      %p419 = scmp.ne.s32.totalorder %s408, %s409
      %p420 = scmp.eq.s32.totalorder %s29, 0
      %p421 = por %p419, %p420
      %p422 = scmp.ne.s32.totalorder %s408, %s409
      %p423 = scmp.eq.s32.totalorder %s30, 1
      %p424 = por %p422, %p423
      %p426 = scmp.ne.s32.totalorder %s409, %s425
      %p427 = scmp.eq.s32.totalorder %s30, 0
      %p428 = por %p426, %p427
      %s429 = ssub.s32 %s31, %s43
      %p430 = scmp.eq.s32.totalorder %s429, 0
      %s432 = sadd.s32 %s431, 1
      %s433 = scalar_select %p430, %s431, %s432
      %p436 = pneg %p430
      %p437 = scmp.eq.s32.totalorder %s24, 1
      %p438 = por %p436, %p437
      %p439 = scmp.ne.s32.totalorder %s431, %s434
      %p440 = scmp.eq.s32.totalorder %s24, 0
      %p441 = por %p439, %p440
      %p442 = scmp.ne.s32.totalorder %s431, %s434
      %p443 = scmp.eq.s32.totalorder %s29, 1
      %p444 = por %p442, %p443
      %p445 = scmp.ne.s32.totalorder %s434, %s435
      %p446 = scmp.eq.s32.totalorder %s29, 0
      %p447 = por %p445, %p446
      %p448 = scmp.ne.s32.totalorder %s434, %s435
      %p449 = scmp.eq.s32.totalorder %s30, 1
      %p450 = por %p448, %p449
      %p452 = scmp.ne.s32.totalorder %s435, %s451
      %p453 = scmp.eq.s32.totalorder %s30, 0
      %p454 = por %p452, %p453
      %p455 = scmp.le.s32.totalorder 1, %s24
      %p456 = scmp.lt.s32.totalorder %s24, 3
      %p457 = pnand %p455, %p456
      %p458 = pneg %p457
      // Predicated region
      $region9: #{tpu_custom_call.1} parent=5 // pred_check
        _
      $region10: #{tpu_custom_call.1} parent=5 // pred_check_branch
        %460 = sbr.rel (%p457) target = $region12
      $region11: #{tpu_custom_call.1} parent=5 // pred_region
        %s461 = ssub.s32 %s24, 1
        // Predicated region
        $region13: #{tpu_custom_call.1} parent=11 // pred_check
          %p462 = pneg %p62
        $region14: #{tpu_custom_call.1} parent=11 // pred_check_branch
          %464 = sbr.rel (%p462) target = $region16
        $region15: #{tpu_custom_call.1} parent=11 // pred_region
          %s465 = smul.u32 2, %s33
          %s467 = ssub.s32 256, 256
          %468 = vsyncadd [#allocation3], %s467
          %s469 = smul.addr %s465, 128
          %s470 = scalar_lea.hbm %s0, %s469
          %s471 = sshll.u32 [#allocation2], 4
          %s472 = int_to_ptr.vmem [resolvable:$true] %s471
          %477 = dma.hbm_to_vmem [thread:$0]  %s470, 256, %s472, [#allocation3], 128, 128, 8
        $region16: #{tpu_custom_call.1} parent=11 // pred_fallthru
          _
        // Predicated region
        $region17: #{tpu_custom_call.1} parent=11 // pred_check
          %p478 = pneg %p88
        $region18: #{tpu_custom_call.1} parent=11 // pred_check_branch
          %480 = sbr.rel (%p478) target = $region20
        $region19: #{tpu_custom_call.1} parent=11 // pred_region
          %s481 = smul.u32 2, %s33
          %s483 = ssub.s32 32, 32
          %484 = vsyncadd [#allocation6], %s483
          %s485 = smul.addr %s481, 16
          %s486 = scalar_lea.hbm %s1, %s485
          %s487 = sshll.u32 [#allocation5], 4
          %s488 = int_to_ptr.vmem [resolvable:$true] %s487
          %493 = dma.hbm_to_vmem [thread:$0]  %s486, 32, %s488, [#allocation6], 16, 16, 1
        $region20: #{tpu_custom_call.1} parent=11 // pred_fallthru
          _
        // Predicated region
        $region21: #{tpu_custom_call.1} parent=11 // pred_check
          %p494 = pneg %p109
        $region22: #{tpu_custom_call.1} parent=11 // pred_check_branch
          %496 = sbr.rel (%p494) target = $region24
        $region23: #{tpu_custom_call.1} parent=11 // pred_region
          %s498 = ssub.s32 128, 128
          %499 = vsyncadd [#allocation6], %s498
          %s501 = sshll.u32 [#allocation7], 4
          %s502 = int_to_ptr.vmem [resolvable:$true] %s501
          %504 = dma.hbm_to_vmem [thread:$0]  %s2, 128, %s502, [#allocation6]
        $region24: #{tpu_custom_call.1} parent=11 // pred_fallthru
          _
      $region12: #{tpu_custom_call.1} parent=5 // pred_fallthru
        _
      %p505 = scmp.lt.s32.totalorder %s24, 2
      // Predicated region
      $region25: #{tpu_custom_call.1} parent=5 // pred_check
        %p506 = pneg %p505
      $region26: #{tpu_custom_call.1} parent=5 // pred_check_branch
        %508 = sbr.rel (%p506) target = $region28
      $region27: #{tpu_custom_call.1} parent=5 // pred_region
        // Predicated region
        $region29: #{tpu_custom_call.1} parent=27 // pred_check
          %p509 = pneg %p129
        $region30: #{tpu_custom_call.1} parent=27 // pred_check_branch
          %511 = sbr.rel (%p509) target = $region32
        $region31: #{tpu_custom_call.1} parent=27 // pred_region
          %p512 = scmp.lt.s32.totalorder %s32, 1
          %s513 = scalar_select %p512, %s32, 1
          %s514 = smul.addr %s513, 4
          %s515 = smul.addr %s514, 4
          %s516 = scalar_lea.vmem %s3, %s515
        $region32: #{tpu_custom_call.1} parent=27 // pred_fallthru
          _
        // Predicated region
        $region33: #{tpu_custom_call.1} parent=27 // pred_check
          %p517 = pneg %p155
        $region34: #{tpu_custom_call.1} parent=27 // pred_check_branch
          %519 = sbr.rel (%p517) target = $region36
        $region35: #{tpu_custom_call.1} parent=27 // pred_region
          %p520 = scmp.lt.s32.totalorder %s32, 1
          %s521 = scalar_select %p520, %s32, 1
          %s522 = scalar_lea.vmem %s4, %s521
        $region36: #{tpu_custom_call.1} parent=27 // pred_fallthru
          _
        // Predicated region
        $region37: #{tpu_custom_call.1} parent=27 // pred_check
          %p523 = pneg %p181
        $region38: #{tpu_custom_call.1} parent=27 // pred_check_branch
          %525 = sbr.rel (%p523) target = $region40
        $region39: #{tpu_custom_call.1} parent=27 // pred_region
          %p526 = scmp.lt.s32.totalorder %s32, 1
          %s527 = scalar_select %p526, %s32, 1
          %s528 = smul.addr %s527, 4
          %s529 = smul.addr %s528, 4
          %s530 = scalar_lea.vmem %s5, %s529
        $region40: #{tpu_custom_call.1} parent=27 // pred_fallthru
          _
        // Predicated region
        $region41: #{tpu_custom_call.1} parent=27 // pred_check
          %p531 = pneg %p207
        $region42: #{tpu_custom_call.1} parent=27 // pred_check_branch
          %533 = sbr.rel (%p531) target = $region44
        $region43: #{tpu_custom_call.1} parent=27 // pred_region
          %p534 = scmp.lt.s32.totalorder %s32, 1
          %s535 = scalar_select %p534, %s32, 1
          %s536 = scalar_lea.vmem %s6, %s535
        $region44: #{tpu_custom_call.1} parent=27 // pred_fallthru
          _
        // Predicated region
        $region45: #{tpu_custom_call.1} parent=27 // pred_check
          %p537 = pneg %p233
        $region46: #{tpu_custom_call.1} parent=27 // pred_check_branch
          %539 = sbr.rel (%p537) target = $region48
        $region47: #{tpu_custom_call.1} parent=27 // pred_region
          %p540 = scmp.lt.s32.totalorder %s32, 1
          %s541 = scalar_select %p540, %s32, 1
          %s542 = scalar_lea.vmem %s7, %s541
        $region48: #{tpu_custom_call.1} parent=27 // pred_fallthru
          _
        // Predicated region
        $region49: #{tpu_custom_call.1} parent=27 // pred_check
          %p543 = pneg %p259
        $region50: #{tpu_custom_call.1} parent=27 // pred_check_branch
          %545 = sbr.rel (%p543) target = $region52
        $region51: #{tpu_custom_call.1} parent=27 // pred_region
          %p546 = scmp.lt.s32.totalorder %s32, 1
          %s547 = scalar_select %p546, %s32, 1
          %s548 = scalar_lea.vmem %s8, %s547
        $region52: #{tpu_custom_call.1} parent=27 // pred_fallthru
          _
        // Predicated region
        $region53: #{tpu_custom_call.1} parent=27 // pred_check
          %p549 = pneg %p285
        $region54: #{tpu_custom_call.1} parent=27 // pred_check_branch
          %551 = sbr.rel (%p549) target = $region56
        $region55: #{tpu_custom_call.1} parent=27 // pred_region
          %p552 = scmp.lt.s32.totalorder %s32, 1
          %s553 = scalar_select %p552, %s32, 1
          %s554 = smul.addr %s553, 4
          %s555 = smul.addr %s554, 4
          %s556 = scalar_lea.vmem %s9, %s555
        $region56: #{tpu_custom_call.1} parent=27 // pred_fallthru
          _
        // Predicated region
        $region57: #{tpu_custom_call.1} parent=27 // pred_check
          %p557 = pneg %p311
        $region58: #{tpu_custom_call.1} parent=27 // pred_check_branch
          %559 = sbr.rel (%p557) target = $region60
        $region59: #{tpu_custom_call.1} parent=27 // pred_region
          %p560 = scmp.lt.s32.totalorder %s32, 1
          %s561 = scalar_select %p560, %s32, 1
          %s562 = scalar_lea.vmem %s10, %s561
        $region60: #{tpu_custom_call.1} parent=27 // pred_fallthru
          _
        // Predicated region
        $region61: #{tpu_custom_call.1} parent=27 // pred_check
          %p563 = pneg %p337
        $region62: #{tpu_custom_call.1} parent=27 // pred_check_branch
          %565 = sbr.rel (%p563) target = $region64
        $region63: #{tpu_custom_call.1} parent=27 // pred_region
          %p566 = scmp.lt.s32.totalorder %s32, 1
          %s567 = scalar_select %p566, %s32, 1
          %s568 = smul.addr %s567, 8
          %s569 = smul.addr %s568, 4
          %s570 = scalar_lea.vmem %s11, %s569
        $region64: #{tpu_custom_call.1} parent=27 // pred_fallthru
          _
        // Predicated region
        $region65: #{tpu_custom_call.1} parent=27 // pred_check
          %p571 = pneg %p363
        $region66: #{tpu_custom_call.1} parent=27 // pred_check_branch
          %573 = sbr.rel (%p571) target = $region68
        $region67: #{tpu_custom_call.1} parent=27 // pred_region
          %p574 = scmp.lt.s32.totalorder %s32, 1
          %s575 = scalar_select %p574, %s32, 1
          %s576 = scalar_lea.vmem %s12, %s575
        $region68: #{tpu_custom_call.1} parent=27 // pred_fallthru
          _
        // Predicated region
        $region69: #{tpu_custom_call.1} parent=27 // pred_check
          %p577 = pneg %p389
        $region70: #{tpu_custom_call.1} parent=27 // pred_check_branch
          %579 = sbr.rel (%p577) target = $region72
        $region71: #{tpu_custom_call.1} parent=27 // pred_region
          %p580 = scmp.lt.s32.totalorder %s32, 1
          %s581 = scalar_select %p580, %s32, 1
          %s582 = scalar_lea.vmem %s13, %s581
        $region72: #{tpu_custom_call.1} parent=27 // pred_fallthru
          _
        // Predicated region
        $region73: #{tpu_custom_call.1} parent=27 // pred_check
          %p583 = pneg %p415
        $region74: #{tpu_custom_call.1} parent=27 // pred_check_branch
          %585 = sbr.rel (%p583) target = $region76
        $region75: #{tpu_custom_call.1} parent=27 // pred_region
          %p586 = scmp.lt.s32.totalorder %s32, 1
          %s587 = scalar_select %p586, %s32, 1
          %s588 = scalar_lea.vmem %s14, %s587
        $region76: #{tpu_custom_call.1} parent=27 // pred_fallthru
          _
      $region28: #{tpu_custom_call.1} parent=5 // pred_fallthru
        _
      %p589 = scmp.le.s32.totalorder 1, %s24
      %p590 = scmp.lt.s32.totalorder %s24, 3
      %p591 = pnand %p589, %p590
      %p592 = pneg %p591
      // Predicated region
      $region77: #{tpu_custom_call.1} parent=5 // pred_check
        _
      $region78: #{tpu_custom_call.1} parent=5 // pred_check_branch
        %594 = sbr.rel (%p591) target = $region80
      $region79: #{tpu_custom_call.1} parent=5 // pred_region
        %s595 = ssub.s32 %s24, 1
        // Predicated region
        $region81: #{tpu_custom_call.1} parent=79 // pred_check
          %p596 = pneg %p62
        $region82: #{tpu_custom_call.1} parent=79 // pred_check_branch
          %598 = sbr.rel (%p596) target = $region84
        $region83: #{tpu_custom_call.1} parent=79 // pred_region
          %599 = dma.done [#allocation3], 256
        $region84: #{tpu_custom_call.1} parent=79 // pred_fallthru
          _
        // Predicated region
        $region85: #{tpu_custom_call.1} parent=79 // pred_check
          %p600 = pneg %p88
        $region86: #{tpu_custom_call.1} parent=79 // pred_check_branch
          %602 = sbr.rel (%p600) target = $region88
        $region87: #{tpu_custom_call.1} parent=79 // pred_region
          %603 = dma.done [#allocation6], 32
        $region88: #{tpu_custom_call.1} parent=79 // pred_fallthru
          _
        // Predicated region
        $region89: #{tpu_custom_call.1} parent=79 // pred_check
          %p604 = pneg %p109
        $region90: #{tpu_custom_call.1} parent=79 // pred_check_branch
          %606 = sbr.rel (%p604) target = $region92
        $region91: #{tpu_custom_call.1} parent=79 // pred_region
          %607 = dma.done [#allocation6], 128
        $region92: #{tpu_custom_call.1} parent=79 // pred_fallthru
          _
        %p608 = pneg %p62
        %p609 = pneg %p59
        %p610 = pneg %p88
        %p611 = pneg %p85
        %p612 = pneg %p109
        %p613 = pneg %p106
        %p614 = scmp.lt.s32.totalorder %s34, 1
        %s615 = scalar_select %p614, %s34, 1
        %s616 = smul.addr %s615, 4
        %s617 = smul.addr %s616, 4
        %s618 = scalar_lea.vmem %s3, %s617
        %p619 = pneg %p135
        %p620 = pneg %p132
        %p621 = scmp.lt.s32.totalorder %s34, 1
        %s622 = scalar_select %p621, %s34, 1
        %s623 = scalar_lea.vmem %s4, %s622
        %p624 = pneg %p161
        %p625 = pneg %p158
        %p626 = scmp.lt.s32.totalorder %s34, 1
        %s627 = scalar_select %p626, %s34, 1
        %s628 = smul.addr %s627, 4
        %s629 = smul.addr %s628, 4
        %s630 = scalar_lea.vmem %s5, %s629
        %p631 = pneg %p187
        %p632 = pneg %p184
        %p633 = scmp.lt.s32.totalorder %s34, 1
        %s634 = scalar_select %p633, %s34, 1
        %s635 = scalar_lea.vmem %s6, %s634
        %p636 = pneg %p213
        %p637 = pneg %p210
        %p638 = scmp.lt.s32.totalorder %s34, 1
        %s639 = scalar_select %p638, %s34, 1
        %s640 = scalar_lea.vmem %s7, %s639
        %p641 = pneg %p239
        %p642 = pneg %p236
        %p643 = scmp.lt.s32.totalorder %s34, 1
        %s644 = scalar_select %p643, %s34, 1
        %s645 = scalar_lea.vmem %s8, %s644
        %p646 = pneg %p265
        %p647 = pneg %p262
        %p648 = scmp.lt.s32.totalorder %s34, 1
        %s649 = scalar_select %p648, %s34, 1
        %s650 = smul.addr %s649, 4
        %s651 = smul.addr %s650, 4
        %s652 = scalar_lea.vmem %s9, %s651
        %p653 = pneg %p291
        %p654 = pneg %p288
        %p655 = scmp.lt.s32.totalorder %s34, 1
        %s656 = scalar_select %p655, %s34, 1
        %s657 = scalar_lea.vmem %s10, %s656
        %p658 = pneg %p317
        %p659 = pneg %p314
        %p660 = scmp.lt.s32.totalorder %s34, 1
        %s661 = scalar_select %p660, %s34, 1
        %s662 = smul.addr %s661, 8
        %s663 = smul.addr %s662, 4
        %s664 = scalar_lea.vmem %s11, %s663
        %p665 = pneg %p343
        %p666 = pneg %p340
        %p667 = scmp.lt.s32.totalorder %s34, 1
        %s668 = scalar_select %p667, %s34, 1
        %s669 = scalar_lea.vmem %s12, %s668
        %p670 = pneg %p369
        %p671 = pneg %p366
        %p672 = scmp.lt.s32.totalorder %s34, 1
        %s673 = scalar_select %p672, %s34, 1
        %s674 = scalar_lea.vmem %s13, %s673
        %p675 = pneg %p395
        %p676 = pneg %p392
        %p677 = scmp.lt.s32.totalorder %s34, 1
        %s678 = scalar_select %p677, %s34, 1
        %s679 = scalar_lea.vmem %s14, %s678
        %p680 = pneg %p421
        %p681 = pneg %p418
        %p682 = pneg %p447
        %p683 = pneg %p444
        %s684 = smul.u32 2, %s33
        %s685 = smul.u32 2, %s33
        %p686 = scmp.lt.s32.totalorder %s34, 1
        %s687 = scalar_select %p686, %s34, 1
        %s688 = smul.addr %s687, 4
        %s689 = smul.addr %s688, 4
        %s690 = scalar_lea.vmem %s3, %s689
        %p691 = scmp.lt.s32.totalorder %s34, 1
        %s692 = scalar_select %p691, %s34, 1
        %s693 = scalar_lea.vmem %s4, %s692
        %p694 = scmp.lt.s32.totalorder %s34, 1
        %s695 = scalar_select %p694, %s34, 1
        %s696 = smul.addr %s695, 4
        %s697 = smul.addr %s696, 4
        %s698 = scalar_lea.vmem %s5, %s697
        %p699 = scmp.lt.s32.totalorder %s34, 1
        %s700 = scalar_select %p699, %s34, 1
        %s701 = scalar_lea.vmem %s6, %s700
        %p702 = scmp.lt.s32.totalorder %s34, 1
        %s703 = scalar_select %p702, %s34, 1
        %s704 = scalar_lea.vmem %s7, %s703
        %p705 = scmp.lt.s32.totalorder %s34, 1
        %s706 = scalar_select %p705, %s34, 1
        %s707 = scalar_lea.vmem %s8, %s706
        %p708 = scmp.lt.s32.totalorder %s34, 1
        %s709 = scalar_select %p708, %s34, 1
        %s710 = smul.addr %s709, 4
        %s711 = smul.addr %s710, 4
        %s712 = scalar_lea.vmem %s9, %s711
        %p713 = scmp.lt.s32.totalorder %s34, 1
        %s714 = scalar_select %p713, %s34, 1
        %s715 = scalar_lea.vmem %s10, %s714
        %p716 = scmp.lt.s32.totalorder %s34, 1
        %s717 = scalar_select %p716, %s34, 1
        %s718 = smul.addr %s717, 8
        %s719 = smul.addr %s718, 4
        %s720 = scalar_lea.vmem %s11, %s719
        %p721 = scmp.lt.s32.totalorder %s34, 1
        %s722 = scalar_select %p721, %s34, 1
        %s723 = scalar_lea.vmem %s12, %s722
        %p724 = scmp.lt.s32.totalorder %s34, 1
        %s725 = scalar_select %p724, %s34, 1
        %s726 = scalar_lea.vmem %s13, %s725
        %p727 = scmp.lt.s32.totalorder %s34, 1
        %s728 = scalar_select %p727, %s34, 1
        %s729 = scalar_lea.vmem %s14, %s728
        %s730 = smul.u32 2, %s33
        %p732 = scmp.eq.s32.totalorder %s34, 0
        // Predicated region
        $region93: #{tpu_custom_call.1} parent=79 // pred_check
          %p733 = pneg %p732
        $region94: #{tpu_custom_call.1} parent=79 // pred_check_branch
          %735 = sbr.rel (%p733) target = $region96
        $region95: #{tpu_custom_call.1} parent=79 // pred_region
          %v736 = vld [vmem:[#allocation2] sm:$0xff]
          %v737 = vld [vmem:[#allocation2 + $0x8] sm:$0xff]
          %v738 = vld [vmem:[#allocation7] sm:$0xff]
          %v739 = vadd.f32 %v736, %v738
          %v740 = vadd.f32 %v737, %v738
          %vm741 = vcmask 261120
          %742 = vst.msk [vmem:[#allocation8] sm:$0xff] %vm741, %v739
          %743 = vst.msk [vmem:[#allocation8 + $0x8] sm:$0xff] %vm741, %v740
        $region96: #{tpu_custom_call.1} parent=79 // pred_fallthru
          _
        %v744 = vld [vmem:[#allocation8] sm:$0xff]
        %v745 = vld [vmem:[#allocation8 + $0x8] sm:$0xff]
        %v746 = vpack.c.bf16 %v745, %v744
        %v747 = vld [vmem:[%s690] sm:$0xf]
        %v748 = vld [vmem:[%s690 + $0x4] sm:$0xf]
        %v749 = vld [vmem:[%s690 + $0x8] sm:$0xf]
        %v750 = vld [vmem:[%s690 + $0xc] sm:$0xf]
        %v751 = vld [vmem:[%s693] sm:$0x1]
        %v753 = vlaneseq
        %v754 = vshrl.u32 %v753, 7
        %v755 = vsub.s32 0, %v754
        %v756 = vrot.slane %v751, %v755
        %v762 = vunpack.c.l.b16 %v747
        %v763 = vunpack.c.l.b16 %v748
        %v764 = vunpack.c.l.b16 %v749
        %v765 = vunpack.c.l.b16 %v750
        %v766 = vpack.c.b16 %v763, %v762
        %v767 = vpack.c.b16 %v765, %v764
        %vm770 = vcmask 261120
        %v772 = vsel %vm770, %v746, 0
        %774 = vmatprep.subr.bf16.mxu0 0
        %775 = vmatpush1.bf16.msra.mxu0 0
        %776 = vmatprep.subr.bf16.mxu0 0
        %777 = vmatpush1.bf16.msra.mxu0 0
        %778 = vmatprep.subr.bf16.mxu0 0
        %779 = vmatpush1.bf16.msra.mxu0 0
        %780 = vmatprep.subr.bf16.mxu0 0
        %781 = vmatpush1.bf16.msra.mxu0 0
        %782 = vmatprep.subr.bf16.mxu0 0
        %783 = vmatpush1.bf16.msra.mxu0 0
        %784 = vmatprep.subr.bf16.mxu0 0
        %785 = vmatpush1.bf16.msra.mxu0 0
        %786 = vmatprep.subr.bf16.mxu0 0
        %787 = vmatpush1.bf16.msra.mxu0 %v767
        %788 = vmatprep.subr.bf16.mxu0 0
        %789 = vmatpush1.bf16.msra.mxu0 %v766
        %790 = vmatprep.subr.bf16.mxu0 0
        %791 = vmatpush2.bf16.msra.mxu0 0
        %792 = vmatprep.subr.bf16.mxu0 0
        %793 = vmatpush2.bf16.msra.mxu0 0
        %794 = vmatprep.subr.bf16.mxu0 0
        %795 = vmatpush2.bf16.msra.mxu0 0
        %796 = vmatprep.subr.bf16.mxu0 0
        %797 = vmatpush2.bf16.msra.mxu0 0
        %798 = vmatprep.subr.bf16.mxu0 0
        %799 = vmatpush2.bf16.msra.mxu0 0
        %800 = vmatprep.subr.bf16.mxu0 0
        %801 = vmatpush2.bf16.msra.mxu0 0
        %802 = vmatprep.subr.bf16.mxu0 0
        %803 = vmatpush2.bf16.msra.mxu0 0
        %804 = vmatprep.subr.bf16.mxu0 0
        %805 = vmatpush2.bf16.msra.mxu0 0
        %806 = vmatprep.mubr.bf16.mxu0 0
        %807 = vmatmul.mubr.bf16.gmra.mxu0 %v772
        %v808 = vpop.f32.mrf.mxu0
        %v809 = vadd.f32 %v756, %v808
        %v810 = vpop.f32.mrf.mxu0
        %v811 = vpop.f32.mrf.mxu0
        %v812 = vadd.f32 %v756, %v811
        %v813 = vpop.f32.mrf.mxu0
        %814 = vdwg.mxu0
        %817 = vrot.lane.b32.xlu0 %v809, 120
        %v818 = vpop.permute.xlu0 %817
        %819 = vrot.lane.b32.xlu0 %v812, 120
        %v820 = vpop.permute.xlu0 %819
        %823 = vrot.lane.b32.xlu0 %v809, 112
        %v824 = vpop.permute.xlu0 %823
        %825 = vrot.lane.b32.xlu0 %v812, 112
        %v826 = vpop.permute.xlu0 %825
        %829 = vrot.lane.b32.xlu0 %v809, 104
        %v830 = vpop.permute.xlu0 %829
        %831 = vrot.lane.b32.xlu0 %v812, 104
        %v832 = vpop.permute.xlu0 %831
        %835 = vrot.lane.b32.xlu0 %v809, 96
        %v836 = vpop.permute.xlu0 %835
        %837 = vrot.lane.b32.xlu0 %v812, 96
        %v838 = vpop.permute.xlu0 %837
        %841 = vrot.lane.b32.xlu0 %v809, 88
        %v842 = vpop.permute.xlu0 %841
        %843 = vrot.lane.b32.xlu0 %v812, 88
        %v844 = vpop.permute.xlu0 %843
        %847 = vrot.lane.b32.xlu0 %v809, 80
        %v848 = vpop.permute.xlu0 %847
        %849 = vrot.lane.b32.xlu0 %v812, 80
        %v850 = vpop.permute.xlu0 %849
        %853 = vrot.lane.b32.xlu0 %v809, 72
        %v854 = vpop.permute.xlu0 %853
        %855 = vrot.lane.b32.xlu0 %v812, 72
        %v856 = vpop.permute.xlu0 %855
        %859 = vrot.lane.b32.xlu0 %v809, 64
        %v860 = vpop.permute.xlu0 %859
        %861 = vrot.lane.b32.xlu0 %v812, 64
        %v862 = vpop.permute.xlu0 %861
        %865 = vrot.lane.b32.xlu0 %v809, 56
        %v866 = vpop.permute.xlu0 %865
        %867 = vrot.lane.b32.xlu0 %v812, 56
        %v868 = vpop.permute.xlu0 %867
        %871 = vrot.lane.b32.xlu0 %v809, 48
        %v872 = vpop.permute.xlu0 %871
        %873 = vrot.lane.b32.xlu0 %v812, 48
        %v874 = vpop.permute.xlu0 %873
        %877 = vrot.lane.b32.xlu0 %v809, 40
        %v878 = vpop.permute.xlu0 %877
        %879 = vrot.lane.b32.xlu0 %v812, 40
        %v880 = vpop.permute.xlu0 %879
        %v883 = vcombine.low %v809, %v824
        %v884 = vcombine.high %v809, %v824
        %v886 = vunpack.c.l.s4 1983009808
        %v887 = vunpack.c.0.s8 %v886
        %v888 = vlaneseq
        %v889 = vshrl.u32 %v888, 7
        %v890 = vsub.s32 %v887, %v889
        %v891 = vrot.slane %v883, %v890
        %v893 = vunpack.c.l.s4 1983009808
        %v894 = vunpack.c.0.s8 %v893
        %v895 = vlaneseq
        %v896 = vshrl.u32 %v895, 7
        %v897 = vsub.s32 %v894, %v896
        %v898 = vrot.slane %v884, %v897
        %v899 = vcombine.low %v818, %v830
        %v900 = vcombine.high %v818, %v830
        %v902 = vunpack.c.l.s4 1983009808
        %v903 = vunpack.c.0.s8 %v902
        %v904 = vlaneseq
        %v905 = vshrl.u32 %v904, 7
        %v906 = vsub.s32 %v903, %v905
        %v907 = vrot.slane %v899, %v906
        %v909 = vunpack.c.l.s4 1983009808
        %v910 = vunpack.c.0.s8 %v909
        %v911 = vlaneseq
        %v912 = vshrl.u32 %v911, 7
        %v913 = vsub.s32 %v910, %v912
        %v914 = vrot.slane %v900, %v913
        %v915 = vcombine.low %v836, %v848
        %v916 = vcombine.high %v836, %v848
        %v918 = vunpack.c.l.s4 1983009808
        %v919 = vunpack.c.0.s8 %v918
        %v920 = vlaneseq
        %v921 = vshrl.u32 %v920, 7
        %v922 = vsub.s32 %v919, %v921
        %v923 = vrot.slane %v915, %v922
        %v925 = vunpack.c.l.s4 1983009808
        %v926 = vunpack.c.0.s8 %v925
        %v927 = vlaneseq
        %v928 = vshrl.u32 %v927, 7
        %v929 = vsub.s32 %v926, %v928
        %v930 = vrot.slane %v916, %v929
        %v931 = vcombine.low %v842, %v854
        %v932 = vcombine.high %v842, %v854
        %v934 = vunpack.c.l.s4 1983009808
        %v935 = vunpack.c.0.s8 %v934
        %v936 = vlaneseq
        %v937 = vshrl.u32 %v936, 7
        %v938 = vsub.s32 %v935, %v937
        %v939 = vrot.slane %v931, %v938
        %v941 = vunpack.c.l.s4 1983009808
        %v942 = vunpack.c.0.s8 %v941
        %v943 = vlaneseq
        %v944 = vshrl.u32 %v943, 7
        %v945 = vsub.s32 %v942, %v944
        %v946 = vrot.slane %v932, %v945
        %v947 = vcombine.low %v891, %v907
        %v948 = vcombine.high %v891, %v907
        %v950 = vunpack.c.l.s4 1934713408
        %v951 = vunpack.c.0.s8 %v950
        %v952 = vlaneseq
        %v953 = vshrl.u32 %v952, 7
        %v954 = vsub.s32 %v951, %v953
        %v955 = vrot.slane %v947, %v954
        %v957 = vunpack.c.l.s4 1934713408
        %v958 = vunpack.c.0.s8 %v957
        %v959 = vlaneseq
        %v960 = vshrl.u32 %v959, 7
        %v961 = vsub.s32 %v958, %v960
        %v962 = vrot.slane %v948, %v961
        %v963 = vcombine.low %v898, %v914
        %v964 = vcombine.high %v898, %v914
        %v966 = vunpack.c.l.s4 1934713408
        %v967 = vunpack.c.0.s8 %v966
        %v968 = vlaneseq
        %v969 = vshrl.u32 %v968, 7
        %v970 = vsub.s32 %v967, %v969
        %v971 = vrot.slane %v963, %v970
        %v973 = vunpack.c.l.s4 1934713408
        %v974 = vunpack.c.0.s8 %v973
        %v975 = vlaneseq
        %v976 = vshrl.u32 %v975, 7
        %v977 = vsub.s32 %v974, %v976
        %v978 = vrot.slane %v964, %v977
        %v979 = vcombine.low %v923, %v939
        %v980 = vcombine.high %v923, %v939
        %v982 = vunpack.c.l.s4 1934713408
        %v983 = vunpack.c.0.s8 %v982
        %v984 = vlaneseq
        %v985 = vshrl.u32 %v984, 7
        %v986 = vsub.s32 %v983, %v985
        %v987 = vrot.slane %v979, %v986
        %v989 = vunpack.c.l.s4 1934713408
        %v990 = vunpack.c.0.s8 %v989
        %v991 = vlaneseq
        %v992 = vshrl.u32 %v991, 7
        %v993 = vsub.s32 %v990, %v992
        %v994 = vrot.slane %v980, %v993
        %v995 = vcombine.low %v930, %v946
        %v996 = vcombine.high %v930, %v946
        %v998 = vunpack.c.l.s4 1934713408
        %v999 = vunpack.c.0.s8 %v998
        %v1000 = vlaneseq
        %v1001 = vshrl.u32 %v1000, 7
        %v1002 = vsub.s32 %v999, %v1001
        %v1003 = vrot.slane %v995, %v1002
        %v1005 = vunpack.c.l.s4 1934713408
        %v1006 = vunpack.c.0.s8 %v1005
        %v1007 = vlaneseq
        %v1008 = vshrl.u32 %v1007, 7
        %v1009 = vsub.s32 %v1006, %v1008
        %v1010 = vrot.slane %v996, %v1009
        %v1011 = vcombine.low %v955, %v987
        %v1012 = vcombine.high %v955, %v987
        %v1013 = vcombine.low %v962, %v994
        %v1014 = vcombine.high %v962, %v994
        %v1015 = vcombine.low %v971, %v1003
        %v1016 = vcombine.high %v971, %v1003
        %v1017 = vcombine.low %v978, %v1010
        %v1018 = vcombine.high %v978, %v1010
        %v1019 = vcombine.low %v860, %v872
        %v1020 = vcombine.high %v860, %v872
        %v1022 = vunpack.c.l.s4 1983009808
        %v1023 = vunpack.c.0.s8 %v1022
        %v1024 = vlaneseq
        %v1025 = vshrl.u32 %v1024, 7
        %v1026 = vsub.s32 %v1023, %v1025
        %v1027 = vrot.slane %v1019, %v1026
        %v1029 = vunpack.c.l.s4 1983009808
        %v1030 = vunpack.c.0.s8 %v1029
        %v1031 = vlaneseq
        %v1032 = vshrl.u32 %v1031, 7
        %v1033 = vsub.s32 %v1030, %v1032
        %v1034 = vrot.slane %v1020, %v1033
        %v1035 = vcombine.low %v866, %v878
        %v1036 = vcombine.high %v866, %v878
        %v1038 = vunpack.c.l.s4 1983009808
        %v1039 = vunpack.c.0.s8 %v1038
        %v1040 = vlaneseq
        %v1041 = vshrl.u32 %v1040, 7
        %v1042 = vsub.s32 %v1039, %v1041
        %v1043 = vrot.slane %v1035, %v1042
        %v1045 = vunpack.c.l.s4 1983009808
        %v1046 = vunpack.c.0.s8 %v1045
        %v1047 = vlaneseq
        %v1048 = vshrl.u32 %v1047, 7
        %v1049 = vsub.s32 %v1046, %v1048
        %v1050 = vrot.slane %v1036, %v1049
        %v1051 = vcombine.low %v1027, %v1043
        %v1052 = vcombine.high %v1027, %v1043
        %v1054 = vunpack.c.l.s4 1934713408
        %v1055 = vunpack.c.0.s8 %v1054
        %v1056 = vlaneseq
        %v1057 = vshrl.u32 %v1056, 7
        %v1058 = vsub.s32 %v1055, %v1057
        %v1059 = vrot.slane %v1051, %v1058
        %v1061 = vunpack.c.l.s4 1934713408
        %v1062 = vunpack.c.0.s8 %v1061
        %v1063 = vlaneseq
        %v1064 = vshrl.u32 %v1063, 7
        %v1065 = vsub.s32 %v1062, %v1064
        %v1066 = vrot.slane %v1052, %v1065
        %v1067 = vcombine.low %v1034, %v1050
        %v1068 = vcombine.high %v1034, %v1050
        %v1070 = vunpack.c.l.s4 1934713408
        %v1071 = vunpack.c.0.s8 %v1070
        %v1072 = vlaneseq
        %v1073 = vshrl.u32 %v1072, 7
        %v1074 = vsub.s32 %v1071, %v1073
        %v1075 = vrot.slane %v1067, %v1074
        %v1077 = vunpack.c.l.s4 1934713408
        %v1078 = vunpack.c.0.s8 %v1077
        %v1079 = vlaneseq
        %v1080 = vshrl.u32 %v1079, 7
        %v1081 = vsub.s32 %v1078, %v1080
        %v1082 = vrot.slane %v1068, %v1081
        %v1083 = vcombine.high %v1059, 0.0
        %v1084 = vcombine.high %v1066, 0.0
        %v1085 = vcombine.high %v1075, 0.0
        %v1086 = vcombine.high %v1082, 0.0
        %v1087 = vcombine.low %v812, %v826
        %v1088 = vcombine.high %v812, %v826
        %v1090 = vunpack.c.l.s4 1983009808
        %v1091 = vunpack.c.0.s8 %v1090
        %v1092 = vlaneseq
        %v1093 = vshrl.u32 %v1092, 7
        %v1094 = vsub.s32 %v1091, %v1093
        %v1095 = vrot.slane %v1087, %v1094
        %v1097 = vunpack.c.l.s4 1983009808
        %v1098 = vunpack.c.0.s8 %v1097
        %v1099 = vlaneseq
        %v1100 = vshrl.u32 %v1099, 7
        %v1101 = vsub.s32 %v1098, %v1100
        %v1102 = vrot.slane %v1088, %v1101
        %v1103 = vcombine.low %v820, %v832
        %v1104 = vcombine.high %v820, %v832
        %v1106 = vunpack.c.l.s4 1983009808
        %v1107 = vunpack.c.0.s8 %v1106
        %v1108 = vlaneseq
        %v1109 = vshrl.u32 %v1108, 7
        %v1110 = vsub.s32 %v1107, %v1109
        %v1111 = vrot.slane %v1103, %v1110
        %v1113 = vunpack.c.l.s4 1983009808
        %v1114 = vunpack.c.0.s8 %v1113
        %v1115 = vlaneseq
        %v1116 = vshrl.u32 %v1115, 7
        %v1117 = vsub.s32 %v1114, %v1116
        %v1118 = vrot.slane %v1104, %v1117
        %v1119 = vcombine.low %v838, %v850
        %v1120 = vcombine.high %v838, %v850
        %v1122 = vunpack.c.l.s4 1983009808
        %v1123 = vunpack.c.0.s8 %v1122
        %v1124 = vlaneseq
        %v1125 = vshrl.u32 %v1124, 7
        %v1126 = vsub.s32 %v1123, %v1125
        %v1127 = vrot.slane %v1119, %v1126
        %v1129 = vunpack.c.l.s4 1983009808
        %v1130 = vunpack.c.0.s8 %v1129
        %v1131 = vlaneseq
        %v1132 = vshrl.u32 %v1131, 7
        %v1133 = vsub.s32 %v1130, %v1132
        %v1134 = vrot.slane %v1120, %v1133
        %v1135 = vcombine.low %v844, %v856
        %v1136 = vcombine.high %v844, %v856
        %v1138 = vunpack.c.l.s4 1983009808
        %v1139 = vunpack.c.0.s8 %v1138
        %v1140 = vlaneseq
        %v1141 = vshrl.u32 %v1140, 7
        %v1142 = vsub.s32 %v1139, %v1141
        %v1143 = vrot.slane %v1135, %v1142
        %v1145 = vunpack.c.l.s4 1983009808
        %v1146 = vunpack.c.0.s8 %v1145
        %v1147 = vlaneseq
        %v1148 = vshrl.u32 %v1147, 7
        %v1149 = vsub.s32 %v1146, %v1148
        %v1150 = vrot.slane %v1136, %v1149
        %v1151 = vcombine.low %v1095, %v1111
        %v1152 = vcombine.high %v1095, %v1111
        %v1154 = vunpack.c.l.s4 1934713408
        %v1155 = vunpack.c.0.s8 %v1154
        %v1156 = vlaneseq
        %v1157 = vshrl.u32 %v1156, 7
        %v1158 = vsub.s32 %v1155, %v1157
        %v1159 = vrot.slane %v1151, %v1158
        %v1161 = vunpack.c.l.s4 1934713408
        %v1162 = vunpack.c.0.s8 %v1161
        %v1163 = vlaneseq
        %v1164 = vshrl.u32 %v1163, 7
        %v1165 = vsub.s32 %v1162, %v1164
        %v1166 = vrot.slane %v1152, %v1165
        %v1167 = vcombine.low %v1102, %v1118
        %v1168 = vcombine.high %v1102, %v1118
        %v1170 = vunpack.c.l.s4 1934713408
        %v1171 = vunpack.c.0.s8 %v1170
        %v1172 = vlaneseq
        %v1173 = vshrl.u32 %v1172, 7
        %v1174 = vsub.s32 %v1171, %v1173
        %v1175 = vrot.slane %v1167, %v1174
        %v1177 = vunpack.c.l.s4 1934713408
        %v1178 = vunpack.c.0.s8 %v1177
        %v1179 = vlaneseq
        %v1180 = vshrl.u32 %v1179, 7
        %v1181 = vsub.s32 %v1178, %v1180
        %v1182 = vrot.slane %v1168, %v1181
        %v1183 = vcombine.low %v1127, %v1143
        %v1184 = vcombine.high %v1127, %v1143
        %v1186 = vunpack.c.l.s4 1934713408
        %v1187 = vunpack.c.0.s8 %v1186
        %v1188 = vlaneseq
        %v1189 = vshrl.u32 %v1188, 7
        %v1190 = vsub.s32 %v1187, %v1189
        %v1191 = vrot.slane %v1183, %v1190
        %v1193 = vunpack.c.l.s4 1934713408
        %v1194 = vunpack.c.0.s8 %v1193
        %v1195 = vlaneseq
        %v1196 = vshrl.u32 %v1195, 7
        %v1197 = vsub.s32 %v1194, %v1196
        %v1198 = vrot.slane %v1184, %v1197
        %v1199 = vcombine.low %v1134, %v1150
        %v1200 = vcombine.high %v1134, %v1150
        %v1202 = vunpack.c.l.s4 1934713408
        %v1203 = vunpack.c.0.s8 %v1202
        %v1204 = vlaneseq
        %v1205 = vshrl.u32 %v1204, 7
        %v1206 = vsub.s32 %v1203, %v1205
        %v1207 = vrot.slane %v1199, %v1206
        %v1209 = vunpack.c.l.s4 1934713408
        %v1210 = vunpack.c.0.s8 %v1209
        %v1211 = vlaneseq
        %v1212 = vshrl.u32 %v1211, 7
        %v1213 = vsub.s32 %v1210, %v1212
        %v1214 = vrot.slane %v1200, %v1213
        %v1215 = vcombine.low %v1159, %v1191
        %v1216 = vcombine.high %v1159, %v1191
        %v1217 = vcombine.low %v1166, %v1198
        %v1218 = vcombine.high %v1166, %v1198
        %v1219 = vcombine.low %v1175, %v1207
        %v1220 = vcombine.high %v1175, %v1207
        %v1221 = vcombine.low %v1182, %v1214
        %v1222 = vcombine.high %v1182, %v1214
        %v1223 = vcombine.low %v862, %v874
        %v1224 = vcombine.high %v862, %v874
        %v1226 = vunpack.c.l.s4 1983009808
        %v1227 = vunpack.c.0.s8 %v1226
        %v1228 = vlaneseq
        %v1229 = vshrl.u32 %v1228, 7
        %v1230 = vsub.s32 %v1227, %v1229
        %v1231 = vrot.slane %v1223, %v1230
        %v1233 = vunpack.c.l.s4 1983009808
        %v1234 = vunpack.c.0.s8 %v1233
        %v1235 = vlaneseq
        %v1236 = vshrl.u32 %v1235, 7
        %v1237 = vsub.s32 %v1234, %v1236
        %v1238 = vrot.slane %v1224, %v1237
        %v1239 = vcombine.low %v868, %v880
        %v1240 = vcombine.high %v868, %v880
        %v1242 = vunpack.c.l.s4 1983009808
        %v1243 = vunpack.c.0.s8 %v1242
        %v1244 = vlaneseq
        %v1245 = vshrl.u32 %v1244, 7
        %v1246 = vsub.s32 %v1243, %v1245
        %v1247 = vrot.slane %v1239, %v1246
        %v1249 = vunpack.c.l.s4 1983009808
        %v1250 = vunpack.c.0.s8 %v1249
        %v1251 = vlaneseq
        %v1252 = vshrl.u32 %v1251, 7
        %v1253 = vsub.s32 %v1250, %v1252
        %v1254 = vrot.slane %v1240, %v1253
        %v1255 = vcombine.low %v1231, %v1247
        %v1256 = vcombine.high %v1231, %v1247
        %v1258 = vunpack.c.l.s4 1934713408
        %v1259 = vunpack.c.0.s8 %v1258
        %v1260 = vlaneseq
        %v1261 = vshrl.u32 %v1260, 7
        %v1262 = vsub.s32 %v1259, %v1261
        %v1263 = vrot.slane %v1255, %v1262
        %v1265 = vunpack.c.l.s4 1934713408
        %v1266 = vunpack.c.0.s8 %v1265
        %v1267 = vlaneseq
        %v1268 = vshrl.u32 %v1267, 7
        %v1269 = vsub.s32 %v1266, %v1268
        %v1270 = vrot.slane %v1256, %v1269
        %v1271 = vcombine.low %v1238, %v1254
        %v1272 = vcombine.high %v1238, %v1254
        %v1274 = vunpack.c.l.s4 1934713408
        %v1275 = vunpack.c.0.s8 %v1274
        %v1276 = vlaneseq
        %v1277 = vshrl.u32 %v1276, 7
        %v1278 = vsub.s32 %v1275, %v1277
        %v1279 = vrot.slane %v1271, %v1278
        %v1281 = vunpack.c.l.s4 1934713408
        %v1282 = vunpack.c.0.s8 %v1281
        %v1283 = vlaneseq
        %v1284 = vshrl.u32 %v1283, 7
        %v1285 = vsub.s32 %v1282, %v1284
        %v1286 = vrot.slane %v1272, %v1285
        %v1287 = vcombine.high %v1263, 0.0
        %v1288 = vcombine.high %v1270, 0.0
        %v1289 = vcombine.high %v1279, 0.0
        %v1290 = vcombine.high %v1286, 0.0
        %v1291 = vcombine.low %v1011, %v1013
        %v1292 = vcombine.high %v1011, %v1013
        %v1294 = vunpack.c.l.s4 1983009808
        %v1295 = vunpack.c.0.s8 %v1294
        %v1296 = vlaneseq
        %v1297 = vshrl.u32 %v1296, 7
        %v1298 = vsub.s32 %v1295, %v1297
        %v1299 = vrot.slane %v1291, %v1298
        %v1301 = vunpack.c.l.s4 1983009808
        %v1302 = vunpack.c.0.s8 %v1301
        %v1303 = vlaneseq
        %v1304 = vshrl.u32 %v1303, 7
        %v1305 = vsub.s32 %v1302, %v1304
        %v1306 = vrot.slane %v1292, %v1305
        %v1307 = vcombine.low %v1012, %v1014
        %v1308 = vcombine.high %v1012, %v1014
        %v1310 = vunpack.c.l.s4 1983009808
        %v1311 = vunpack.c.0.s8 %v1310
        %v1312 = vlaneseq
        %v1313 = vshrl.u32 %v1312, 7
        %v1314 = vsub.s32 %v1311, %v1313
        %v1315 = vrot.slane %v1307, %v1314
        %v1317 = vunpack.c.l.s4 1983009808
        %v1318 = vunpack.c.0.s8 %v1317
        %v1319 = vlaneseq
        %v1320 = vshrl.u32 %v1319, 7
        %v1321 = vsub.s32 %v1318, %v1320
        %v1322 = vrot.slane %v1308, %v1321
        %v1323 = vcombine.low %v1015, %v1017
        %v1324 = vcombine.high %v1015, %v1017
        %v1326 = vunpack.c.l.s4 1983009808
        %v1327 = vunpack.c.0.s8 %v1326
        %v1328 = vlaneseq
        %v1329 = vshrl.u32 %v1328, 7
        %v1330 = vsub.s32 %v1327, %v1329
        %v1331 = vrot.slane %v1323, %v1330
        %v1333 = vunpack.c.l.s4 1983009808
        %v1334 = vunpack.c.0.s8 %v1333
        %v1335 = vlaneseq
        %v1336 = vshrl.u32 %v1335, 7
        %v1337 = vsub.s32 %v1334, %v1336
        %v1338 = vrot.slane %v1324, %v1337
        %v1339 = vcombine.low %v1016, %v1018
        %v1340 = vcombine.high %v1016, %v1018
        %v1342 = vunpack.c.l.s4 1983009808
        %v1343 = vunpack.c.0.s8 %v1342
        %v1344 = vlaneseq
        %v1345 = vshrl.u32 %v1344, 7
        %v1346 = vsub.s32 %v1343, %v1345
        %v1347 = vrot.slane %v1339, %v1346
        %v1349 = vunpack.c.l.s4 1983009808
        %v1350 = vunpack.c.0.s8 %v1349
        %v1351 = vlaneseq
        %v1352 = vshrl.u32 %v1351, 7
        %v1353 = vsub.s32 %v1350, %v1352
        %v1354 = vrot.slane %v1340, %v1353
        %v1355 = vcombine.low %v1299, %v1315
        %v1356 = vcombine.high %v1299, %v1315
        %v1358 = vunpack.c.l.s4 1934713408
        %v1359 = vunpack.c.0.s8 %v1358
        %v1360 = vlaneseq
        %v1361 = vshrl.u32 %v1360, 7
        %v1362 = vsub.s32 %v1359, %v1361
        %v1363 = vrot.slane %v1355, %v1362
        %v1365 = vunpack.c.l.s4 1934713408
        %v1366 = vunpack.c.0.s8 %v1365
        %v1367 = vlaneseq
        %v1368 = vshrl.u32 %v1367, 7
        %v1369 = vsub.s32 %v1366, %v1368
        %v1370 = vrot.slane %v1356, %v1369
        %v1371 = vcombine.low %v1306, %v1322
        %v1372 = vcombine.high %v1306, %v1322
        %v1374 = vunpack.c.l.s4 1934713408
        %v1375 = vunpack.c.0.s8 %v1374
        %v1376 = vlaneseq
        %v1377 = vshrl.u32 %v1376, 7
        %v1378 = vsub.s32 %v1375, %v1377
        %v1379 = vrot.slane %v1371, %v1378
        %v1381 = vunpack.c.l.s4 1934713408
        %v1382 = vunpack.c.0.s8 %v1381
        %v1383 = vlaneseq
        %v1384 = vshrl.u32 %v1383, 7
        %v1385 = vsub.s32 %v1382, %v1384
        %v1386 = vrot.slane %v1372, %v1385
        %v1387 = vcombine.low %v1331, %v1347
        %v1388 = vcombine.high %v1331, %v1347
        %v1390 = vunpack.c.l.s4 1934713408
        %v1391 = vunpack.c.0.s8 %v1390
        %v1392 = vlaneseq
        %v1393 = vshrl.u32 %v1392, 7
        %v1394 = vsub.s32 %v1391, %v1393
        %v1395 = vrot.slane %v1387, %v1394
        %v1397 = vunpack.c.l.s4 1934713408
        %v1398 = vunpack.c.0.s8 %v1397
        %v1399 = vlaneseq
        %v1400 = vshrl.u32 %v1399, 7
        %v1401 = vsub.s32 %v1398, %v1400
        %v1402 = vrot.slane %v1388, %v1401
        %v1403 = vcombine.low %v1338, %v1354
        %v1404 = vcombine.high %v1338, %v1354
        %v1406 = vunpack.c.l.s4 1934713408
        %v1407 = vunpack.c.0.s8 %v1406
        %v1408 = vlaneseq
        %v1409 = vshrl.u32 %v1408, 7
        %v1410 = vsub.s32 %v1407, %v1409
        %v1411 = vrot.slane %v1403, %v1410
        %v1413 = vunpack.c.l.s4 1934713408
        %v1414 = vunpack.c.0.s8 %v1413
        %v1415 = vlaneseq
        %v1416 = vshrl.u32 %v1415, 7
        %v1417 = vsub.s32 %v1414, %v1416
        %v1418 = vrot.slane %v1404, %v1417
        %v1419 = vcombine.low %v1363, %v1395
        %v1420 = vcombine.high %v1363, %v1395
        %v1421 = vcombine.low %v1370, %v1402
        %v1422 = vcombine.high %v1370, %v1402
        %v1423 = vcombine.low %v1379, %v1411
        %v1424 = vcombine.high %v1379, %v1411
        %v1425 = vcombine.low %v1386, %v1418
        %v1426 = vcombine.high %v1386, %v1418
        %v1427 = vcombine.low %v1059, %v1066
        %v1429 = vunpack.c.l.s4 1983009808
        %v1430 = vunpack.c.0.s8 %v1429
        %v1431 = vlaneseq
        %v1432 = vshrl.u32 %v1431, 7
        %v1433 = vsub.s32 %v1430, %v1432
        %v1434 = vrot.slane %v1427, %v1433
        %v1435 = vcombine.low %v1083, %v1084
        %v1437 = vunpack.c.l.s4 1983009808
        %v1438 = vunpack.c.0.s8 %v1437
        %v1439 = vlaneseq
        %v1440 = vshrl.u32 %v1439, 7
        %v1441 = vsub.s32 %v1438, %v1440
        %v1442 = vrot.slane %v1435, %v1441
        %v1443 = vcombine.low %v1075, %v1082
        %v1445 = vunpack.c.l.s4 1983009808
        %v1446 = vunpack.c.0.s8 %v1445
        %v1447 = vlaneseq
        %v1448 = vshrl.u32 %v1447, 7
        %v1449 = vsub.s32 %v1446, %v1448
        %v1450 = vrot.slane %v1443, %v1449
        %v1451 = vcombine.low %v1085, %v1086
        %v1453 = vunpack.c.l.s4 1983009808
        %v1454 = vunpack.c.0.s8 %v1453
        %v1455 = vlaneseq
        %v1456 = vshrl.u32 %v1455, 7
        %v1457 = vsub.s32 %v1454, %v1456
        %v1458 = vrot.slane %v1451, %v1457
        %v1459 = vcombine.low %v1434, %v1442
        %v1460 = vcombine.high %v1434, %v1442
        %v1462 = vunpack.c.l.s4 1934713408
        %v1463 = vunpack.c.0.s8 %v1462
        %v1464 = vlaneseq
        %v1465 = vshrl.u32 %v1464, 7
        %v1466 = vsub.s32 %v1463, %v1465
        %v1467 = vrot.slane %v1459, %v1466
        %v1469 = vunpack.c.l.s4 1934713408
        %v1470 = vunpack.c.0.s8 %v1469
        %v1471 = vlaneseq
        %v1472 = vshrl.u32 %v1471, 7
        %v1473 = vsub.s32 %v1470, %v1472
        %v1474 = vrot.slane %v1460, %v1473
        %v1475 = vcombine.low %v1450, %v1458
        %v1476 = vcombine.high %v1450, %v1458
        %v1478 = vunpack.c.l.s4 1934713408
        %v1479 = vunpack.c.0.s8 %v1478
        %v1480 = vlaneseq
        %v1481 = vshrl.u32 %v1480, 7
        %v1482 = vsub.s32 %v1479, %v1481
        %v1483 = vrot.slane %v1475, %v1482
        %v1485 = vunpack.c.l.s4 1934713408
        %v1486 = vunpack.c.0.s8 %v1485
        %v1487 = vlaneseq
        %v1488 = vshrl.u32 %v1487, 7
        %v1489 = vsub.s32 %v1486, %v1488
        %v1490 = vrot.slane %v1476, %v1489
        %v1491 = vcombine.low %v1467, %v1483
        %v1492 = vcombine.high %v1467, %v1483
        %v1493 = vcombine.low %v1474, %v1490
        %v1494 = vcombine.high %v1474, %v1490
        %v1495 = vcombine.low %v1215, %v1217
        %v1496 = vcombine.high %v1215, %v1217
        %v1498 = vunpack.c.l.s4 1983009808
        %v1499 = vunpack.c.0.s8 %v1498
        %v1500 = vlaneseq
        %v1501 = vshrl.u32 %v1500, 7
        %v1502 = vsub.s32 %v1499, %v1501
        %v1503 = vrot.slane %v1495, %v1502
        %v1505 = vunpack.c.l.s4 1983009808
        %v1506 = vunpack.c.0.s8 %v1505
        %v1507 = vlaneseq
        %v1508 = vshrl.u32 %v1507, 7
        %v1509 = vsub.s32 %v1506, %v1508
        %v1510 = vrot.slane %v1496, %v1509
        %v1511 = vcombine.low %v1216, %v1218
        %v1512 = vcombine.high %v1216, %v1218
        %v1514 = vunpack.c.l.s4 1983009808
        %v1515 = vunpack.c.0.s8 %v1514
        %v1516 = vlaneseq
        %v1517 = vshrl.u32 %v1516, 7
        %v1518 = vsub.s32 %v1515, %v1517
        %v1519 = vrot.slane %v1511, %v1518
        %v1521 = vunpack.c.l.s4 1983009808
        %v1522 = vunpack.c.0.s8 %v1521
        %v1523 = vlaneseq
        %v1524 = vshrl.u32 %v1523, 7
        %v1525 = vsub.s32 %v1522, %v1524
        %v1526 = vrot.slane %v1512, %v1525
        %v1527 = vcombine.low %v1219, %v1221
        %v1528 = vcombine.high %v1219, %v1221
        %v1530 = vunpack.c.l.s4 1983009808
        %v1531 = vunpack.c.0.s8 %v1530
        %v1532 = vlaneseq
        %v1533 = vshrl.u32 %v1532, 7
        %v1534 = vsub.s32 %v1531, %v1533
        %v1535 = vrot.slane %v1527, %v1534
        %v1537 = vunpack.c.l.s4 1983009808
        %v1538 = vunpack.c.0.s8 %v1537
        %v1539 = vlaneseq
        %v1540 = vshrl.u32 %v1539, 7
        %v1541 = vsub.s32 %v1538, %v1540
        %v1542 = vrot.slane %v1528, %v1541
        %v1543 = vcombine.low %v1220, %v1222
        %v1544 = vcombine.high %v1220, %v1222
        %v1546 = vunpack.c.l.s4 1983009808
        %v1547 = vunpack.c.0.s8 %v1546
        %v1548 = vlaneseq
        %v1549 = vshrl.u32 %v1548, 7
        %v1550 = vsub.s32 %v1547, %v1549
        %v1551 = vrot.slane %v1543, %v1550
        %v1553 = vunpack.c.l.s4 1983009808
        %v1554 = vunpack.c.0.s8 %v1553
        %v1555 = vlaneseq
        %v1556 = vshrl.u32 %v1555, 7
        %v1557 = vsub.s32 %v1554, %v1556
        %v1558 = vrot.slane %v1544, %v1557
        %v1559 = vcombine.low %v1503, %v1519
        %v1560 = vcombine.high %v1503, %v1519
        %v1562 = vunpack.c.l.s4 1934713408
        %v1563 = vunpack.c.0.s8 %v1562
        %v1564 = vlaneseq
        %v1565 = vshrl.u32 %v1564, 7
        %v1566 = vsub.s32 %v1563, %v1565
        %v1567 = vrot.slane %v1559, %v1566
        %v1569 = vunpack.c.l.s4 1934713408
        %v1570 = vunpack.c.0.s8 %v1569
        %v1571 = vlaneseq
        %v1572 = vshrl.u32 %v1571, 7
        %v1573 = vsub.s32 %v1570, %v1572
        %v1574 = vrot.slane %v1560, %v1573
        %v1575 = vcombine.low %v1510, %v1526
        %v1576 = vcombine.high %v1510, %v1526
        %v1578 = vunpack.c.l.s4 1934713408
        %v1579 = vunpack.c.0.s8 %v1578
        %v1580 = vlaneseq
        %v1581 = vshrl.u32 %v1580, 7
        %v1582 = vsub.s32 %v1579, %v1581
        %v1583 = vrot.slane %v1575, %v1582
        %v1585 = vunpack.c.l.s4 1934713408
        %v1586 = vunpack.c.0.s8 %v1585
        %v1587 = vlaneseq
        %v1588 = vshrl.u32 %v1587, 7
        %v1589 = vsub.s32 %v1586, %v1588
        %v1590 = vrot.slane %v1576, %v1589
        %v1591 = vcombine.low %v1535, %v1551
        %v1592 = vcombine.high %v1535, %v1551
        %v1594 = vunpack.c.l.s4 1934713408
        %v1595 = vunpack.c.0.s8 %v1594
        %v1596 = vlaneseq
        %v1597 = vshrl.u32 %v1596, 7
        %v1598 = vsub.s32 %v1595, %v1597
        %v1599 = vrot.slane %v1591, %v1598
        %v1601 = vunpack.c.l.s4 1934713408
        %v1602 = vunpack.c.0.s8 %v1601
        %v1603 = vlaneseq
        %v1604 = vshrl.u32 %v1603, 7
        %v1605 = vsub.s32 %v1602, %v1604
        %v1606 = vrot.slane %v1592, %v1605
        %v1607 = vcombine.low %v1542, %v1558
        %v1608 = vcombine.high %v1542, %v1558
        %v1610 = vunpack.c.l.s4 1934713408
        %v1611 = vunpack.c.0.s8 %v1610
        %v1612 = vlaneseq
        %v1613 = vshrl.u32 %v1612, 7
        %v1614 = vsub.s32 %v1611, %v1613
        %v1615 = vrot.slane %v1607, %v1614
        %v1617 = vunpack.c.l.s4 1934713408
        %v1618 = vunpack.c.0.s8 %v1617
        %v1619 = vlaneseq
        %v1620 = vshrl.u32 %v1619, 7
        %v1621 = vsub.s32 %v1618, %v1620
        %v1622 = vrot.slane %v1608, %v1621
        %v1623 = vcombine.low %v1567, %v1599
        %v1624 = vcombine.high %v1567, %v1599
        %v1625 = vcombine.low %v1574, %v1606
        %v1626 = vcombine.high %v1574, %v1606
        %v1627 = vcombine.low %v1583, %v1615
        %v1628 = vcombine.high %v1583, %v1615
        %v1629 = vcombine.low %v1590, %v1622
        %v1630 = vcombine.high %v1590, %v1622
        %v1631 = vcombine.low %v1263, %v1270
        %v1633 = vunpack.c.l.s4 1983009808
        %v1634 = vunpack.c.0.s8 %v1633
        %v1635 = vlaneseq
        %v1636 = vshrl.u32 %v1635, 7
        %v1637 = vsub.s32 %v1634, %v1636
        %v1638 = vrot.slane %v1631, %v1637
        %v1639 = vcombine.low %v1287, %v1288
        %v1641 = vunpack.c.l.s4 1983009808
        %v1642 = vunpack.c.0.s8 %v1641
        %v1643 = vlaneseq
        %v1644 = vshrl.u32 %v1643, 7
        %v1645 = vsub.s32 %v1642, %v1644
        %v1646 = vrot.slane %v1639, %v1645
        %v1647 = vcombine.low %v1279, %v1286
        %v1649 = vunpack.c.l.s4 1983009808
        %v1650 = vunpack.c.0.s8 %v1649
        %v1651 = vlaneseq
        %v1652 = vshrl.u32 %v1651, 7
        %v1653 = vsub.s32 %v1650, %v1652
        %v1654 = vrot.slane %v1647, %v1653
        %v1655 = vcombine.low %v1289, %v1290
        %v1657 = vunpack.c.l.s4 1983009808
        %v1658 = vunpack.c.0.s8 %v1657
        %v1659 = vlaneseq
        %v1660 = vshrl.u32 %v1659, 7
        %v1661 = vsub.s32 %v1658, %v1660
        %v1662 = vrot.slane %v1655, %v1661
        %v1663 = vcombine.low %v1638, %v1646
        %v1664 = vcombine.high %v1638, %v1646
        %v1666 = vunpack.c.l.s4 1934713408
        %v1667 = vunpack.c.0.s8 %v1666
        %v1668 = vlaneseq
        %v1669 = vshrl.u32 %v1668, 7
        %v1670 = vsub.s32 %v1667, %v1669
        %v1671 = vrot.slane %v1663, %v1670
        %v1673 = vunpack.c.l.s4 1934713408
        %v1674 = vunpack.c.0.s8 %v1673
        %v1675 = vlaneseq
        %v1676 = vshrl.u32 %v1675, 7
        %v1677 = vsub.s32 %v1674, %v1676
        %v1678 = vrot.slane %v1664, %v1677
        %v1679 = vcombine.low %v1654, %v1662
        %v1680 = vcombine.high %v1654, %v1662
        %v1682 = vunpack.c.l.s4 1934713408
        %v1683 = vunpack.c.0.s8 %v1682
        %v1684 = vlaneseq
        %v1685 = vshrl.u32 %v1684, 7
        %v1686 = vsub.s32 %v1683, %v1685
        %v1687 = vrot.slane %v1679, %v1686
        %v1689 = vunpack.c.l.s4 1934713408
        %v1690 = vunpack.c.0.s8 %v1689
        %v1691 = vlaneseq
        %v1692 = vshrl.u32 %v1691, 7
        %v1693 = vsub.s32 %v1690, %v1692
        %v1694 = vrot.slane %v1680, %v1693
        %v1695 = vcombine.low %v1671, %v1687
        %v1696 = vcombine.high %v1671, %v1687
        %v1697 = vcombine.low %v1678, %v1694
        %v1698 = vcombine.high %v1678, %v1694
        %v1699 = vpack.c.bf16 %v1419, %v1419
        %v1700 = vpack.c.bf16 %v1420, %v1420
        %v1701 = vpack.c.bf16 %v1421, %v1421
        %v1702 = vpack.c.bf16 %v1422, %v1422
        %v1703 = vpack.c.bf16 %v1623, %v1623
        %v1704 = vpack.c.bf16 %v1624, %v1624
        %v1705 = vpack.c.bf16 %v1625, %v1625
        %v1706 = vpack.c.bf16 %v1626, %v1626
        %v1707 = vpack.c.bf16 %v1423, %v1423
        %v1708 = vpack.c.bf16 %v1424, %v1424
        %v1709 = vpack.c.bf16 %v1425, %v1425
        %v1710 = vpack.c.bf16 %v1426, %v1426
        %v1711 = vpack.c.bf16 %v1627, %v1627
        %v1712 = vpack.c.bf16 %v1628, %v1628
        %v1713 = vpack.c.bf16 %v1629, %v1629
        %v1714 = vpack.c.bf16 %v1630, %v1630
        %v1715 = vpack.c.bf16 %v1491, %v1491
        %v1716 = vpack.c.bf16 %v1492, %v1492
        %v1717 = vpack.c.bf16 %v1493, %v1493
        %v1718 = vpack.c.bf16 %v1494, %v1494
        %v1719 = vpack.c.bf16 %v1695, %v1695
        %v1720 = vpack.c.bf16 %v1696, %v1696
        %v1721 = vpack.c.bf16 %v1697, %v1697
        %v1722 = vpack.c.bf16 %v1698, %v1698
        %vm1723 = vcmask 64512
        %v1725 = vsel %vm1723, %v1699, 0
        %v1728 = vsel %vm1723, %v1707, 0
        %1730 = vmatprep.subr.bf16.mxu0 0
        %1731 = vmatpush1.bf16.xpose.msra.mxu0 0
        %1732 = vmatprep.subr.bf16.mxu0 0
        %1733 = vmatpush1.bf16.xpose.msra.mxu0 0
        %1734 = vmatprep.subr.bf16.mxu0 0
        %1735 = vmatpush1.bf16.xpose.msra.mxu0 0
        %1736 = vmatprep.subr.bf16.mxu0 0
        %1737 = vmatpush1.bf16.xpose.msra.mxu0 0
        %1738 = vmatprep.subr.bf16.mxu0 0
        %1739 = vmatpush1.bf16.xpose.msra.mxu0 0
        %1740 = vmatprep.subr.bf16.mxu0 0
        %1741 = vmatpush1.bf16.xpose.msra.mxu0 0
        %1742 = vmatprep.subr.bf16.mxu0 0
        %1743 = vmatpush1.bf16.xpose.msra.mxu0 0
        %1744 = vmatprep.subr.bf16.mxu0 0
        %1745 = vmatpush1.bf16.xpose.msra.mxu0 %v1728
        %1746 = vmatprep.subr.bf16.mxu0 0
        %1747 = vmatpush2.bf16.xpose.msra.mxu0 0
        %1748 = vmatprep.subr.bf16.mxu0 0
        %1749 = vmatpush2.bf16.xpose.msra.mxu0 0
        %1750 = vmatprep.subr.bf16.mxu0 0
        %1751 = vmatpush2.bf16.xpose.msra.mxu0 0
        %1752 = vmatprep.subr.bf16.mxu0 0
        %1753 = vmatpush2.bf16.xpose.msra.mxu0 0
        %1754 = vmatprep.subr.bf16.mxu0 0
        %1755 = vmatpush2.bf16.xpose.msra.mxu0 0
        %1756 = vmatprep.subr.bf16.mxu0 0
        %1757 = vmatpush2.bf16.xpose.msra.mxu0 0
        %1758 = vmatprep.subr.bf16.mxu0 0
        %1759 = vmatpush2.bf16.xpose.msra.mxu0 0
        %1760 = vmatprep.subr.bf16.mxu0 0
        %1761 = vmatpush2.bf16.xpose.msra.mxu0 0
        %1762 = vmatprep.mubr.bf16.mxu0 0
        %1763 = vmatmul.mubr.bf16.gmra.mxu0 %v1725
        %v1764 = vpop.f32.mrf.mxu0
        %v1765 = vadd.f32 0.0, %v1764
        %v1766 = vpop.f32.mrf.mxu0
        %v1767 = vpop.f32.mrf.mxu0
        %v1768 = vpop.f32.mrf.mxu0
        %1769 = vdwg.mxu0
        %v1771 = vsel %vm1723, %v1700, 0
        %v1774 = vsel %vm1723, %v1708, 0
        %1776 = vmatprep.subr.bf16.mxu0 0
        %1777 = vmatpush1.bf16.xpose.msra.mxu0 0
        %1778 = vmatprep.subr.bf16.mxu0 0
        %1779 = vmatpush1.bf16.xpose.msra.mxu0 0
        %1780 = vmatprep.subr.bf16.mxu0 0
        %1781 = vmatpush1.bf16.xpose.msra.mxu0 0
        %1782 = vmatprep.subr.bf16.mxu0 0
        %1783 = vmatpush1.bf16.xpose.msra.mxu0 0
        %1784 = vmatprep.subr.bf16.mxu0 0
        %1785 = vmatpush1.bf16.xpose.msra.mxu0 0
        %1786 = vmatprep.subr.bf16.mxu0 0
        %1787 = vmatpush1.bf16.xpose.msra.mxu0 0
        %1788 = vmatprep.subr.bf16.mxu0 0
        %1789 = vmatpush1.bf16.xpose.msra.mxu0 0
        %1790 = vmatprep.subr.bf16.mxu0 0
        %1791 = vmatpush1.bf16.xpose.msra.mxu0 %v1774
        %1792 = vmatprep.subr.bf16.mxu0 0
        %1793 = vmatpush2.bf16.xpose.msra.mxu0 0
        %1794 = vmatprep.subr.bf16.mxu0 0
        %1795 = vmatpush2.bf16.xpose.msra.mxu0 0
        %1796 = vmatprep.subr.bf16.mxu0 0
        %1797 = vmatpush2.bf16.xpose.msra.mxu0 0
        %1798 = vmatprep.subr.bf16.mxu0 0
        %1799 = vmatpush2.bf16.xpose.msra.mxu0 0
        %1800 = vmatprep.subr.bf16.mxu0 0
        %1801 = vmatpush2.bf16.xpose.msra.mxu0 0
        %1802 = vmatprep.subr.bf16.mxu0 0
        %1803 = vmatpush2.bf16.xpose.msra.mxu0 0
        %1804 = vmatprep.subr.bf16.mxu0 0
        %1805 = vmatpush2.bf16.xpose.msra.mxu0 0
        %1806 = vmatprep.subr.bf16.mxu0 0
        %1807 = vmatpush2.bf16.xpose.msra.mxu0 0
        %1808 = vmatprep.mubr.bf16.mxu0 0
        %1809 = vmatmul.mubr.bf16.gmra.mxu0 %v1771
        %v1810 = vpop.f32.mrf.mxu0
        %v1811 = vadd.f32 0.0, %v1810
        %v1812 = vpop.f32.mrf.mxu0
        %v1813 = vpop.f32.mrf.mxu0
        %v1814 = vpop.f32.mrf.mxu0
        %1815 = vdwg.mxu0
        %v1817 = vsel %vm1723, %v1701, 0
        %v1820 = vsel %vm1723, %v1709, 0
        %1822 = vmatprep.subr.bf16.mxu0 0
        %1823 = vmatpush1.bf16.xpose.msra.mxu0 0
        %1824 = vmatprep.subr.bf16.mxu0 0
        %1825 = vmatpush1.bf16.xpose.msra.mxu0 0
        %1826 = vmatprep.subr.bf16.mxu0 0
        %1827 = vmatpush1.bf16.xpose.msra.mxu0 0
        %1828 = vmatprep.subr.bf16.mxu0 0
        %1829 = vmatpush1.bf16.xpose.msra.mxu0 0
        %1830 = vmatprep.subr.bf16.mxu0 0
        %1831 = vmatpush1.bf16.xpose.msra.mxu0 0
        %1832 = vmatprep.subr.bf16.mxu0 0
        %1833 = vmatpush1.bf16.xpose.msra.mxu0 0
        %1834 = vmatprep.subr.bf16.mxu0 0
        %1835 = vmatpush1.bf16.xpose.msra.mxu0 0
        %1836 = vmatprep.subr.bf16.mxu0 0
        %1837 = vmatpush1.bf16.xpose.msra.mxu0 %v1820
        %1838 = vmatprep.subr.bf16.mxu0 0
        %1839 = vmatpush2.bf16.xpose.msra.mxu0 0
        %1840 = vmatprep.subr.bf16.mxu0 0
        %1841 = vmatpush2.bf16.xpose.msra.mxu0 0
        %1842 = vmatprep.subr.bf16.mxu0 0
        %1843 = vmatpush2.bf16.xpose.msra.mxu0 0
        %1844 = vmatprep.subr.bf16.mxu0 0
        %1845 = vmatpush2.bf16.xpose.msra.mxu0 0
        %1846 = vmatprep.subr.bf16.mxu0 0
        %1847 = vmatpush2.bf16.xpose.msra.mxu0 0
        %1848 = vmatprep.subr.bf16.mxu0 0
        %1849 = vmatpush2.bf16.xpose.msra.mxu0 0
        %1850 = vmatprep.subr.bf16.mxu0 0
        %1851 = vmatpush2.bf16.xpose.msra.mxu0 0
        %1852 = vmatprep.subr.bf16.mxu0 0
        %1853 = vmatpush2.bf16.xpose.msra.mxu0 0
        %1854 = vmatprep.mubr.bf16.mxu0 0
        %1855 = vmatmul.mubr.bf16.gmra.mxu0 %v1817
        %v1856 = vpop.f32.mrf.mxu0
        %v1857 = vadd.f32 0.0, %v1856
        %v1858 = vpop.f32.mrf.mxu0
        %v1859 = vpop.f32.mrf.mxu0
        %v1860 = vpop.f32.mrf.mxu0
        %1861 = vdwg.mxu0
        %v1863 = vsel %vm1723, %v1702, 0
        %v1866 = vsel %vm1723, %v1710, 0
        %1868 = vmatprep.subr.bf16.mxu0 0
        %1869 = vmatpush1.bf16.xpose.msra.mxu0 0
        %1870 = vmatprep.subr.bf16.mxu0 0
        %1871 = vmatpush1.bf16.xpose.msra.mxu0 0
        %1872 = vmatprep.subr.bf16.mxu0 0
        %1873 = vmatpush1.bf16.xpose.msra.mxu0 0
        %1874 = vmatprep.subr.bf16.mxu0 0
        %1875 = vmatpush1.bf16.xpose.msra.mxu0 0
        %1876 = vmatprep.subr.bf16.mxu0 0
        %1877 = vmatpush1.bf16.xpose.msra.mxu0 0
        %1878 = vmatprep.subr.bf16.mxu0 0
        %1879 = vmatpush1.bf16.xpose.msra.mxu0 0
        %1880 = vmatprep.subr.bf16.mxu0 0
        %1881 = vmatpush1.bf16.xpose.msra.mxu0 0
        %1882 = vmatprep.subr.bf16.mxu0 0
        %1883 = vmatpush1.bf16.xpose.msra.mxu0 %v1866
        %1884 = vmatprep.subr.bf16.mxu0 0
        %1885 = vmatpush2.bf16.xpose.msra.mxu0 0
        %1886 = vmatprep.subr.bf16.mxu0 0
        %1887 = vmatpush2.bf16.xpose.msra.mxu0 0
        %1888 = vmatprep.subr.bf16.mxu0 0
        %1889 = vmatpush2.bf16.xpose.msra.mxu0 0
        %1890 = vmatprep.subr.bf16.mxu0 0
        %1891 = vmatpush2.bf16.xpose.msra.mxu0 0
        %1892 = vmatprep.subr.bf16.mxu0 0
        %1893 = vmatpush2.bf16.xpose.msra.mxu0 0
        %1894 = vmatprep.subr.bf16.mxu0 0
        %1895 = vmatpush2.bf16.xpose.msra.mxu0 0
        %1896 = vmatprep.subr.bf16.mxu0 0
        %1897 = vmatpush2.bf16.xpose.msra.mxu0 0
        %1898 = vmatprep.subr.bf16.mxu0 0
        %1899 = vmatpush2.bf16.xpose.msra.mxu0 0
        %1900 = vmatprep.mubr.bf16.mxu0 0
        %1901 = vmatmul.mubr.bf16.gmra.mxu0 %v1863
        %v1902 = vpop.f32.mrf.mxu0
        %v1903 = vadd.f32 0.0, %v1902
        %v1904 = vpop.f32.mrf.mxu0
        %v1905 = vpop.f32.mrf.mxu0
        %v1906 = vpop.f32.mrf.mxu0
        %1907 = vdwg.mxu0
        %v1909 = vsel %vm1723, %v1703, 0
        %v1912 = vsel %vm1723, %v1711, 0
        %1914 = vmatprep.subr.bf16.mxu0 0
        %1915 = vmatpush1.bf16.xpose.msra.mxu0 0
        %1916 = vmatprep.subr.bf16.mxu0 0
        %1917 = vmatpush1.bf16.xpose.msra.mxu0 0
        %1918 = vmatprep.subr.bf16.mxu0 0
        %1919 = vmatpush1.bf16.xpose.msra.mxu0 0
        %1920 = vmatprep.subr.bf16.mxu0 0
        %1921 = vmatpush1.bf16.xpose.msra.mxu0 0
        %1922 = vmatprep.subr.bf16.mxu0 0
        %1923 = vmatpush1.bf16.xpose.msra.mxu0 0
        %1924 = vmatprep.subr.bf16.mxu0 0
        %1925 = vmatpush1.bf16.xpose.msra.mxu0 0
        %1926 = vmatprep.subr.bf16.mxu0 0
        %1927 = vmatpush1.bf16.xpose.msra.mxu0 0
        %1928 = vmatprep.subr.bf16.mxu0 0
        %1929 = vmatpush1.bf16.xpose.msra.mxu0 %v1912
        %1930 = vmatprep.subr.bf16.mxu0 0
        %1931 = vmatpush2.bf16.xpose.msra.mxu0 0
        %1932 = vmatprep.subr.bf16.mxu0 0
        %1933 = vmatpush2.bf16.xpose.msra.mxu0 0
        %1934 = vmatprep.subr.bf16.mxu0 0
        %1935 = vmatpush2.bf16.xpose.msra.mxu0 0
        %1936 = vmatprep.subr.bf16.mxu0 0
        %1937 = vmatpush2.bf16.xpose.msra.mxu0 0
        %1938 = vmatprep.subr.bf16.mxu0 0
        %1939 = vmatpush2.bf16.xpose.msra.mxu0 0
        %1940 = vmatprep.subr.bf16.mxu0 0
        %1941 = vmatpush2.bf16.xpose.msra.mxu0 0
        %1942 = vmatprep.subr.bf16.mxu0 0
        %1943 = vmatpush2.bf16.xpose.msra.mxu0 0
        %1944 = vmatprep.subr.bf16.mxu0 0
        %1945 = vmatpush2.bf16.xpose.msra.mxu0 0
        %1946 = vmatprep.mubr.bf16.mxu0 0
        %1947 = vmatmul.mubr.bf16.gmra.mxu0 %v1909
        %v1948 = vpop.f32.mrf.mxu0
        %v1949 = vadd.f32 0.0, %v1948
        %v1950 = vpop.f32.mrf.mxu0
        %v1951 = vpop.f32.mrf.mxu0
        %v1952 = vpop.f32.mrf.mxu0
        %1953 = vdwg.mxu0
        %v1955 = vsel %vm1723, %v1704, 0
        %v1958 = vsel %vm1723, %v1712, 0
        %1960 = vmatprep.subr.bf16.mxu0 0
        %1961 = vmatpush1.bf16.xpose.msra.mxu0 0
        %1962 = vmatprep.subr.bf16.mxu0 0
        %1963 = vmatpush1.bf16.xpose.msra.mxu0 0
        %1964 = vmatprep.subr.bf16.mxu0 0
        %1965 = vmatpush1.bf16.xpose.msra.mxu0 0
        %1966 = vmatprep.subr.bf16.mxu0 0
        %1967 = vmatpush1.bf16.xpose.msra.mxu0 0
        %1968 = vmatprep.subr.bf16.mxu0 0
        %1969 = vmatpush1.bf16.xpose.msra.mxu0 0
        %1970 = vmatprep.subr.bf16.mxu0 0
        %1971 = vmatpush1.bf16.xpose.msra.mxu0 0
        %1972 = vmatprep.subr.bf16.mxu0 0
        %1973 = vmatpush1.bf16.xpose.msra.mxu0 0
        %1974 = vmatprep.subr.bf16.mxu0 0
        %1975 = vmatpush1.bf16.xpose.msra.mxu0 %v1958
        %1976 = vmatprep.subr.bf16.mxu0 0
        %1977 = vmatpush2.bf16.xpose.msra.mxu0 0
        %1978 = vmatprep.subr.bf16.mxu0 0
        %1979 = vmatpush2.bf16.xpose.msra.mxu0 0
        %1980 = vmatprep.subr.bf16.mxu0 0
        %1981 = vmatpush2.bf16.xpose.msra.mxu0 0
        %1982 = vmatprep.subr.bf16.mxu0 0
        %1983 = vmatpush2.bf16.xpose.msra.mxu0 0
        %1984 = vmatprep.subr.bf16.mxu0 0
        %1985 = vmatpush2.bf16.xpose.msra.mxu0 0
        %1986 = vmatprep.subr.bf16.mxu0 0
        %1987 = vmatpush2.bf16.xpose.msra.mxu0 0
        %1988 = vmatprep.subr.bf16.mxu0 0
        %1989 = vmatpush2.bf16.xpose.msra.mxu0 0
        %1990 = vmatprep.subr.bf16.mxu0 0
        %1991 = vmatpush2.bf16.xpose.msra.mxu0 0
        %1992 = vmatprep.mubr.bf16.mxu0 0
        %1993 = vmatmul.mubr.bf16.gmra.mxu0 %v1955
        %v1994 = vpop.f32.mrf.mxu0
        %v1995 = vadd.f32 0.0, %v1994
        %v1996 = vpop.f32.mrf.mxu0
        %v1997 = vpop.f32.mrf.mxu0
        %v1998 = vpop.f32.mrf.mxu0
        %1999 = vdwg.mxu0
        %v2001 = vsel %vm1723, %v1705, 0
        %v2004 = vsel %vm1723, %v1713, 0
        %2006 = vmatprep.subr.bf16.mxu0 0
        %2007 = vmatpush1.bf16.xpose.msra.mxu0 0
        %2008 = vmatprep.subr.bf16.mxu0 0
        %2009 = vmatpush1.bf16.xpose.msra.mxu0 0
        %2010 = vmatprep.subr.bf16.mxu0 0
        %2011 = vmatpush1.bf16.xpose.msra.mxu0 0
        %2012 = vmatprep.subr.bf16.mxu0 0
        %2013 = vmatpush1.bf16.xpose.msra.mxu0 0
        %2014 = vmatprep.subr.bf16.mxu0 0
        %2015 = vmatpush1.bf16.xpose.msra.mxu0 0
        %2016 = vmatprep.subr.bf16.mxu0 0
        %2017 = vmatpush1.bf16.xpose.msra.mxu0 0
        %2018 = vmatprep.subr.bf16.mxu0 0
        %2019 = vmatpush1.bf16.xpose.msra.mxu0 0
        %2020 = vmatprep.subr.bf16.mxu0 0
        %2021 = vmatpush1.bf16.xpose.msra.mxu0 %v2004
        %2022 = vmatprep.subr.bf16.mxu0 0
        %2023 = vmatpush2.bf16.xpose.msra.mxu0 0
        %2024 = vmatprep.subr.bf16.mxu0 0
        %2025 = vmatpush2.bf16.xpose.msra.mxu0 0
        %2026 = vmatprep.subr.bf16.mxu0 0
        %2027 = vmatpush2.bf16.xpose.msra.mxu0 0
        %2028 = vmatprep.subr.bf16.mxu0 0
        %2029 = vmatpush2.bf16.xpose.msra.mxu0 0
        %2030 = vmatprep.subr.bf16.mxu0 0
        %2031 = vmatpush2.bf16.xpose.msra.mxu0 0
        %2032 = vmatprep.subr.bf16.mxu0 0
        %2033 = vmatpush2.bf16.xpose.msra.mxu0 0
        %2034 = vmatprep.subr.bf16.mxu0 0
        %2035 = vmatpush2.bf16.xpose.msra.mxu0 0
        %2036 = vmatprep.subr.bf16.mxu0 0
        %2037 = vmatpush2.bf16.xpose.msra.mxu0 0
        %2038 = vmatprep.mubr.bf16.mxu0 0
        %2039 = vmatmul.mubr.bf16.gmra.mxu0 %v2001
        %v2040 = vpop.f32.mrf.mxu0
        %v2041 = vadd.f32 0.0, %v2040
        %v2042 = vpop.f32.mrf.mxu0
        %v2043 = vpop.f32.mrf.mxu0
        %v2044 = vpop.f32.mrf.mxu0
        %2045 = vdwg.mxu0
        %v2047 = vsel %vm1723, %v1706, 0
        %v2050 = vsel %vm1723, %v1714, 0
        %2052 = vmatprep.subr.bf16.mxu0 0
        %2053 = vmatpush1.bf16.xpose.msra.mxu0 0
        %2054 = vmatprep.subr.bf16.mxu0 0
        %2055 = vmatpush1.bf16.xpose.msra.mxu0 0
        %2056 = vmatprep.subr.bf16.mxu0 0
        %2057 = vmatpush1.bf16.xpose.msra.mxu0 0
        %2058 = vmatprep.subr.bf16.mxu0 0
        %2059 = vmatpush1.bf16.xpose.msra.mxu0 0
        %2060 = vmatprep.subr.bf16.mxu0 0
        %2061 = vmatpush1.bf16.xpose.msra.mxu0 0
        %2062 = vmatprep.subr.bf16.mxu0 0
        %2063 = vmatpush1.bf16.xpose.msra.mxu0 0
        %2064 = vmatprep.subr.bf16.mxu0 0
        %2065 = vmatpush1.bf16.xpose.msra.mxu0 0
        %2066 = vmatprep.subr.bf16.mxu0 0
        %2067 = vmatpush1.bf16.xpose.msra.mxu0 %v2050
        %2068 = vmatprep.subr.bf16.mxu0 0
        %2069 = vmatpush2.bf16.xpose.msra.mxu0 0
        %2070 = vmatprep.subr.bf16.mxu0 0
        %2071 = vmatpush2.bf16.xpose.msra.mxu0 0
        %2072 = vmatprep.subr.bf16.mxu0 0
        %2073 = vmatpush2.bf16.xpose.msra.mxu0 0
        %2074 = vmatprep.subr.bf16.mxu0 0
        %2075 = vmatpush2.bf16.xpose.msra.mxu0 0
        %2076 = vmatprep.subr.bf16.mxu0 0
        %2077 = vmatpush2.bf16.xpose.msra.mxu0 0
        %2078 = vmatprep.subr.bf16.mxu0 0
        %2079 = vmatpush2.bf16.xpose.msra.mxu0 0
        %2080 = vmatprep.subr.bf16.mxu0 0
        %2081 = vmatpush2.bf16.xpose.msra.mxu0 0
        %2082 = vmatprep.subr.bf16.mxu0 0
        %2083 = vmatpush2.bf16.xpose.msra.mxu0 0
        %2084 = vmatprep.mubr.bf16.mxu0 0
        %2085 = vmatmul.mubr.bf16.gmra.mxu0 %v2047
        %v2086 = vpop.f32.mrf.mxu0
        %v2087 = vadd.f32 0.0, %v2086
        %v2088 = vpop.f32.mrf.mxu0
        %v2089 = vpop.f32.mrf.mxu0
        %v2090 = vpop.f32.mrf.mxu0
        %2091 = vdwg.mxu0
        %v2092 = vld [vmem:[#allocation5] sm:$0x1]
        %v2093 = vld [vmem:[#allocation5 + $0x1] sm:$0x1]
        %v2096 = vlaneseq
        %v2097 = vshrl.u32 %v2096, 7
        %v2098 = vsub.s32 0, %v2097
        %v2099 = vrot.slane %v2092, %v2098
        %v2100 = vlaneseq
        %v2101 = vshrl.u32 %v2100, 7
        %v2102 = vsub.s32 0, %v2101
        %v2103 = vrot.slane %v2093, %v2102
        %v2106 = vadd.f32 %v1765, %v2099
        %v2107 = vadd.f32 %v1811, %v2099
        %v2108 = vadd.f32 %v1857, %v2099
        %v2109 = vadd.f32 %v1903, %v2099
        %v2110 = vadd.f32 %v1949, %v2103
        %v2111 = vadd.f32 %v1995, %v2103
        %v2112 = vadd.f32 %v2041, %v2103
        %v2113 = vadd.f32 %v2087, %v2103
        %v2114 = vsel %vm1723, %v2106, -inf
        %2115 = vmax.xlane.f32.xlu0 %v2114
        %v2116 = vpop.xlane.xlu0 %2115
        %v2117 = vsel %vm1723, %v2107, -inf
        %2118 = vmax.xlane.f32.xlu0 %v2117
        %v2119 = vpop.xlane.xlu0 %2118
        %v2120 = vsel %vm1723, %v2108, -inf
        %2121 = vmax.xlane.f32.xlu0 %v2120
        %v2122 = vpop.xlane.xlu0 %2121
        %v2123 = vsel %vm1723, %v2109, -inf
        %2124 = vmax.xlane.f32.xlu0 %v2123
        %v2125 = vpop.xlane.xlu0 %2124
        %v2126 = vsel %vm1723, %v2110, -inf
        %2127 = vmax.xlane.f32.xlu0 %v2126
        %v2128 = vpop.xlane.xlu0 %2127
        %v2129 = vsel %vm1723, %v2111, -inf
        %2130 = vmax.xlane.f32.xlu0 %v2129
        %v2131 = vpop.xlane.xlu0 %2130
        %v2132 = vsel %vm1723, %v2112, -inf
        %2133 = vmax.xlane.f32.xlu0 %v2132
        %v2134 = vpop.xlane.xlu0 %2133
        %v2135 = vsel %vm1723, %v2113, -inf
        %2136 = vmax.xlane.f32.xlu0 %v2135
        %v2137 = vpop.xlane.xlu0 %2136
        %v2138 = vsub.f32 %v2106, %v2116
        %v2139 = vsub.f32 %v2107, %v2119
        %v2140 = vsub.f32 %v2108, %v2122
        %v2141 = vsub.f32 %v2109, %v2125
        %v2142 = vsub.f32 %v2110, %v2128
        %v2143 = vsub.f32 %v2111, %v2131
        %v2144 = vsub.f32 %v2112, %v2134
        %v2145 = vsub.f32 %v2113, %v2137
        %v2146 = vmul.f32 %v2138, 1.442695
        %v2147 = vpow.pop %v2146
        %v2148 = vmul.f32 %v2139, 1.442695
        %v2149 = vpow.pop %v2148
        %v2150 = vmul.f32 %v2140, 1.442695
        %v2151 = vpow.pop %v2150
        %v2152 = vmul.f32 %v2141, 1.442695
        %v2153 = vpow.pop %v2152
        %v2154 = vmul.f32 %v2142, 1.442695
        %v2155 = vpow.pop %v2154
        %v2156 = vmul.f32 %v2143, 1.442695
        %v2157 = vpow.pop %v2156
        %v2158 = vmul.f32 %v2144, 1.442695
        %v2159 = vpow.pop %v2158
        %v2160 = vmul.f32 %v2145, 1.442695
        %v2161 = vpow.pop %v2160
        %v2162 = vsel %vm1723, %v2147, 0.0
        %2163 = vadd.xlane.f32.xlu0 %v2162
        %v2164 = vpop.xlane.xlu0 %2163
        %v2165 = vsel %vm1723, %v2149, 0.0
        %2166 = vadd.xlane.f32.xlu0 %v2165
        %v2167 = vpop.xlane.xlu0 %2166
        %v2168 = vsel %vm1723, %v2151, 0.0
        %2169 = vadd.xlane.f32.xlu0 %v2168
        %v2170 = vpop.xlane.xlu0 %2169
        %v2171 = vsel %vm1723, %v2153, 0.0
        %2172 = vadd.xlane.f32.xlu0 %v2171
        %v2173 = vpop.xlane.xlu0 %2172
        %v2174 = vsel %vm1723, %v2155, 0.0
        %2175 = vadd.xlane.f32.xlu0 %v2174
        %v2176 = vpop.xlane.xlu0 %2175
        %v2177 = vsel %vm1723, %v2157, 0.0
        %2178 = vadd.xlane.f32.xlu0 %v2177
        %v2179 = vpop.xlane.xlu0 %2178
        %v2180 = vsel %vm1723, %v2159, 0.0
        %2181 = vadd.xlane.f32.xlu0 %v2180
        %v2182 = vpop.xlane.xlu0 %2181
        %v2183 = vsel %vm1723, %v2161, 0.0
        %2184 = vadd.xlane.f32.xlu0 %v2183
        %v2185 = vpop.xlane.xlu0 %2184
        %v2186 = vrcp.pop %v2164
        %v2187 = vrcp.pop %v2167
        %v2188 = vrcp.pop %v2170
        %v2189 = vrcp.pop %v2173
        %v2190 = vrcp.pop %v2176
        %v2191 = vrcp.pop %v2179
        %v2192 = vrcp.pop %v2182
        %v2193 = vrcp.pop %v2185
        %v2194 = vmul.f32 %v2147, %v2186
        %v2195 = vmul.f32 %v2149, %v2187
        %v2196 = vmul.f32 %v2151, %v2188
        %v2197 = vmul.f32 %v2153, %v2189
        %v2198 = vmul.f32 %v2155, %v2190
        %v2199 = vmul.f32 %v2157, %v2191
        %v2200 = vmul.f32 %v2159, %v2192
        %v2201 = vmul.f32 %v2161, %v2193
        %v2202 = vpack.c.bf16 %v2194, %v2194
        %v2203 = vpack.c.bf16 %v2195, %v2195
        %v2204 = vpack.c.bf16 %v2196, %v2196
        %v2205 = vpack.c.bf16 %v2197, %v2197
        %v2206 = vpack.c.bf16 %v2198, %v2198
        %v2207 = vpack.c.bf16 %v2199, %v2199
        %v2208 = vpack.c.bf16 %v2200, %v2200
        %v2209 = vpack.c.bf16 %v2201, %v2201
        %v2211 = vsel %vm1723, %v2202, 0
        %vm2213 = vcmask 1043456
        %v2215 = vsel %vm2213, %v1715, 0
        %2217 = vmatprep.subr.bf16.mxu0 0
        %2218 = vmatpush1.bf16.msra.mxu0 0
        %2219 = vmatprep.subr.bf16.mxu0 0
        %2220 = vmatpush1.bf16.msra.mxu0 0
        %2221 = vmatprep.subr.bf16.mxu0 0
        %2222 = vmatpush1.bf16.msra.mxu0 0
        %2223 = vmatprep.subr.bf16.mxu0 0
        %2224 = vmatpush1.bf16.msra.mxu0 0
        %2225 = vmatprep.subr.bf16.mxu0 0
        %2226 = vmatpush1.bf16.msra.mxu0 0
        %2227 = vmatprep.subr.bf16.mxu0 0
        %2228 = vmatpush1.bf16.msra.mxu0 0
        %2229 = vmatprep.subr.bf16.mxu0 0
        %2230 = vmatpush1.bf16.msra.mxu0 0
        %2231 = vmatprep.subr.bf16.mxu0 0
        %2232 = vmatpush1.bf16.msra.mxu0 %v2215
        %2233 = vmatprep.subr.bf16.mxu0 0
        %2234 = vmatpush2.bf16.msra.mxu0 0
        %2235 = vmatprep.subr.bf16.mxu0 0
        %2236 = vmatpush2.bf16.msra.mxu0 0
        %2237 = vmatprep.subr.bf16.mxu0 0
        %2238 = vmatpush2.bf16.msra.mxu0 0
        %2239 = vmatprep.subr.bf16.mxu0 0
        %2240 = vmatpush2.bf16.msra.mxu0 0
        %2241 = vmatprep.subr.bf16.mxu0 0
        %2242 = vmatpush2.bf16.msra.mxu0 0
        %2243 = vmatprep.subr.bf16.mxu0 0
        %2244 = vmatpush2.bf16.msra.mxu0 0
        %2245 = vmatprep.subr.bf16.mxu0 0
        %2246 = vmatpush2.bf16.msra.mxu0 0
        %2247 = vmatprep.subr.bf16.mxu0 0
        %2248 = vmatpush2.bf16.msra.mxu0 0
        %2249 = vmatprep.mubr.bf16.mxu0 0
        %2250 = vmatmul.mubr.bf16.gmra.mxu0 %v2211
        %v2251 = vpop.f32.mrf.mxu0
        %v2252 = vadd.f32 0.0, %v2251
        %v2253 = vpop.f32.mrf.mxu0
        %v2254 = vpop.f32.mrf.mxu0
        %v2255 = vpop.f32.mrf.mxu0
        %2256 = vdwg.mxu0
        %v2258 = vsel %vm1723, %v2203, 0
        %v2261 = vsel %vm2213, %v1716, 0
        %2263 = vmatprep.subr.bf16.mxu0 0
        %2264 = vmatpush1.bf16.msra.mxu0 0
        %2265 = vmatprep.subr.bf16.mxu0 0
        %2266 = vmatpush1.bf16.msra.mxu0 0
        %2267 = vmatprep.subr.bf16.mxu0 0
        %2268 = vmatpush1.bf16.msra.mxu0 0
        %2269 = vmatprep.subr.bf16.mxu0 0
        %2270 = vmatpush1.bf16.msra.mxu0 0
        %2271 = vmatprep.subr.bf16.mxu0 0
        %2272 = vmatpush1.bf16.msra.mxu0 0
        %2273 = vmatprep.subr.bf16.mxu0 0
        %2274 = vmatpush1.bf16.msra.mxu0 0
        %2275 = vmatprep.subr.bf16.mxu0 0
        %2276 = vmatpush1.bf16.msra.mxu0 0
        %2277 = vmatprep.subr.bf16.mxu0 0
        %2278 = vmatpush1.bf16.msra.mxu0 %v2261
        %2279 = vmatprep.subr.bf16.mxu0 0
        %2280 = vmatpush2.bf16.msra.mxu0 0
        %2281 = vmatprep.subr.bf16.mxu0 0
        %2282 = vmatpush2.bf16.msra.mxu0 0
        %2283 = vmatprep.subr.bf16.mxu0 0
        %2284 = vmatpush2.bf16.msra.mxu0 0
        %2285 = vmatprep.subr.bf16.mxu0 0
        %2286 = vmatpush2.bf16.msra.mxu0 0
        %2287 = vmatprep.subr.bf16.mxu0 0
        %2288 = vmatpush2.bf16.msra.mxu0 0
        %2289 = vmatprep.subr.bf16.mxu0 0
        %2290 = vmatpush2.bf16.msra.mxu0 0
        %2291 = vmatprep.subr.bf16.mxu0 0
        %2292 = vmatpush2.bf16.msra.mxu0 0
        %2293 = vmatprep.subr.bf16.mxu0 0
        %2294 = vmatpush2.bf16.msra.mxu0 0
        %2295 = vmatprep.mubr.bf16.mxu0 0
        %2296 = vmatmul.mubr.bf16.gmra.mxu0 %v2258
        %v2297 = vpop.f32.mrf.mxu0
        %v2298 = vadd.f32 0.0, %v2297
        %v2299 = vpop.f32.mrf.mxu0
        %v2300 = vpop.f32.mrf.mxu0
        %v2301 = vpop.f32.mrf.mxu0
        %2302 = vdwg.mxu0
        %v2304 = vsel %vm1723, %v2204, 0
        %v2307 = vsel %vm2213, %v1717, 0
        %2309 = vmatprep.subr.bf16.mxu0 0
        %2310 = vmatpush1.bf16.msra.mxu0 0
        %2311 = vmatprep.subr.bf16.mxu0 0
        %2312 = vmatpush1.bf16.msra.mxu0 0
        %2313 = vmatprep.subr.bf16.mxu0 0
        %2314 = vmatpush1.bf16.msra.mxu0 0
        %2315 = vmatprep.subr.bf16.mxu0 0
        %2316 = vmatpush1.bf16.msra.mxu0 0
        %2317 = vmatprep.subr.bf16.mxu0 0
        %2318 = vmatpush1.bf16.msra.mxu0 0
        %2319 = vmatprep.subr.bf16.mxu0 0
        %2320 = vmatpush1.bf16.msra.mxu0 0
        %2321 = vmatprep.subr.bf16.mxu0 0
        %2322 = vmatpush1.bf16.msra.mxu0 0
        %2323 = vmatprep.subr.bf16.mxu0 0
        %2324 = vmatpush1.bf16.msra.mxu0 %v2307
        %2325 = vmatprep.subr.bf16.mxu0 0
        %2326 = vmatpush2.bf16.msra.mxu0 0
        %2327 = vmatprep.subr.bf16.mxu0 0
        %2328 = vmatpush2.bf16.msra.mxu0 0
        %2329 = vmatprep.subr.bf16.mxu0 0
        %2330 = vmatpush2.bf16.msra.mxu0 0
        %2331 = vmatprep.subr.bf16.mxu0 0
        %2332 = vmatpush2.bf16.msra.mxu0 0
        %2333 = vmatprep.subr.bf16.mxu0 0
        %2334 = vmatpush2.bf16.msra.mxu0 0
        %2335 = vmatprep.subr.bf16.mxu0 0
        %2336 = vmatpush2.bf16.msra.mxu0 0
        %2337 = vmatprep.subr.bf16.mxu0 0
        %2338 = vmatpush2.bf16.msra.mxu0 0
        %2339 = vmatprep.subr.bf16.mxu0 0
        %2340 = vmatpush2.bf16.msra.mxu0 0
        %2341 = vmatprep.mubr.bf16.mxu0 0
        %2342 = vmatmul.mubr.bf16.gmra.mxu0 %v2304
        %v2343 = vpop.f32.mrf.mxu0
        %v2344 = vadd.f32 0.0, %v2343
        %v2345 = vpop.f32.mrf.mxu0
        %v2346 = vpop.f32.mrf.mxu0
        %v2347 = vpop.f32.mrf.mxu0
        %2348 = vdwg.mxu0
        %v2350 = vsel %vm1723, %v2205, 0
        %v2353 = vsel %vm2213, %v1718, 0
        %2355 = vmatprep.subr.bf16.mxu0 0
        %2356 = vmatpush1.bf16.msra.mxu0 0
        %2357 = vmatprep.subr.bf16.mxu0 0
        %2358 = vmatpush1.bf16.msra.mxu0 0
        %2359 = vmatprep.subr.bf16.mxu0 0
        %2360 = vmatpush1.bf16.msra.mxu0 0
        %2361 = vmatprep.subr.bf16.mxu0 0
        %2362 = vmatpush1.bf16.msra.mxu0 0
        %2363 = vmatprep.subr.bf16.mxu0 0
        %2364 = vmatpush1.bf16.msra.mxu0 0
        %2365 = vmatprep.subr.bf16.mxu0 0
        %2366 = vmatpush1.bf16.msra.mxu0 0
        %2367 = vmatprep.subr.bf16.mxu0 0
        %2368 = vmatpush1.bf16.msra.mxu0 0
        %2369 = vmatprep.subr.bf16.mxu0 0
        %2370 = vmatpush1.bf16.msra.mxu0 %v2353
        %2371 = vmatprep.subr.bf16.mxu0 0
        %2372 = vmatpush2.bf16.msra.mxu0 0
        %2373 = vmatprep.subr.bf16.mxu0 0
        %2374 = vmatpush2.bf16.msra.mxu0 0
        %2375 = vmatprep.subr.bf16.mxu0 0
        %2376 = vmatpush2.bf16.msra.mxu0 0
        %2377 = vmatprep.subr.bf16.mxu0 0
        %2378 = vmatpush2.bf16.msra.mxu0 0
        %2379 = vmatprep.subr.bf16.mxu0 0
        %2380 = vmatpush2.bf16.msra.mxu0 0
        %2381 = vmatprep.subr.bf16.mxu0 0
        %2382 = vmatpush2.bf16.msra.mxu0 0
        %2383 = vmatprep.subr.bf16.mxu0 0
        %2384 = vmatpush2.bf16.msra.mxu0 0
        %2385 = vmatprep.subr.bf16.mxu0 0
        %2386 = vmatpush2.bf16.msra.mxu0 0
        %2387 = vmatprep.mubr.bf16.mxu0 0
        %2388 = vmatmul.mubr.bf16.gmra.mxu0 %v2350
        %v2389 = vpop.f32.mrf.mxu0
        %v2390 = vadd.f32 0.0, %v2389
        %v2391 = vpop.f32.mrf.mxu0
        %v2392 = vpop.f32.mrf.mxu0
        %v2393 = vpop.f32.mrf.mxu0
        %2394 = vdwg.mxu0
        %v2396 = vsel %vm1723, %v2206, 0
        %v2399 = vsel %vm2213, %v1719, 0
        %2401 = vmatprep.subr.bf16.mxu0 0
        %2402 = vmatpush1.bf16.msra.mxu0 0
        %2403 = vmatprep.subr.bf16.mxu0 0
        %2404 = vmatpush1.bf16.msra.mxu0 0
        %2405 = vmatprep.subr.bf16.mxu0 0
        %2406 = vmatpush1.bf16.msra.mxu0 0
        %2407 = vmatprep.subr.bf16.mxu0 0
        %2408 = vmatpush1.bf16.msra.mxu0 0
        %2409 = vmatprep.subr.bf16.mxu0 0
        %2410 = vmatpush1.bf16.msra.mxu0 0
        %2411 = vmatprep.subr.bf16.mxu0 0
        %2412 = vmatpush1.bf16.msra.mxu0 0
        %2413 = vmatprep.subr.bf16.mxu0 0
        %2414 = vmatpush1.bf16.msra.mxu0 0
        %2415 = vmatprep.subr.bf16.mxu0 0
        %2416 = vmatpush1.bf16.msra.mxu0 %v2399
        %2417 = vmatprep.subr.bf16.mxu0 0
        %2418 = vmatpush2.bf16.msra.mxu0 0
        %2419 = vmatprep.subr.bf16.mxu0 0
        %2420 = vmatpush2.bf16.msra.mxu0 0
        %2421 = vmatprep.subr.bf16.mxu0 0
        %2422 = vmatpush2.bf16.msra.mxu0 0
        %2423 = vmatprep.subr.bf16.mxu0 0
        %2424 = vmatpush2.bf16.msra.mxu0 0
        %2425 = vmatprep.subr.bf16.mxu0 0
        %2426 = vmatpush2.bf16.msra.mxu0 0
        %2427 = vmatprep.subr.bf16.mxu0 0
        %2428 = vmatpush2.bf16.msra.mxu0 0
        %2429 = vmatprep.subr.bf16.mxu0 0
        %2430 = vmatpush2.bf16.msra.mxu0 0
        %2431 = vmatprep.subr.bf16.mxu0 0
        %2432 = vmatpush2.bf16.msra.mxu0 0
        %2433 = vmatprep.mubr.bf16.mxu0 0
        %2434 = vmatmul.mubr.bf16.gmra.mxu0 %v2396
        %v2435 = vpop.f32.mrf.mxu0
        %v2436 = vadd.f32 0.0, %v2435
        %v2437 = vpop.f32.mrf.mxu0
        %v2438 = vpop.f32.mrf.mxu0
        %v2439 = vpop.f32.mrf.mxu0
        %2440 = vdwg.mxu0
        %v2442 = vsel %vm1723, %v2207, 0
        %v2445 = vsel %vm2213, %v1720, 0
        %2447 = vmatprep.subr.bf16.mxu0 0
        %2448 = vmatpush1.bf16.msra.mxu0 0
        %2449 = vmatprep.subr.bf16.mxu0 0
        %2450 = vmatpush1.bf16.msra.mxu0 0
        %2451 = vmatprep.subr.bf16.mxu0 0
        %2452 = vmatpush1.bf16.msra.mxu0 0
        %2453 = vmatprep.subr.bf16.mxu0 0
        %2454 = vmatpush1.bf16.msra.mxu0 0
        %2455 = vmatprep.subr.bf16.mxu0 0
        %2456 = vmatpush1.bf16.msra.mxu0 0
        %2457 = vmatprep.subr.bf16.mxu0 0
        %2458 = vmatpush1.bf16.msra.mxu0 0
        %2459 = vmatprep.subr.bf16.mxu0 0
        %2460 = vmatpush1.bf16.msra.mxu0 0
        %2461 = vmatprep.subr.bf16.mxu0 0
        %2462 = vmatpush1.bf16.msra.mxu0 %v2445
        %2463 = vmatprep.subr.bf16.mxu0 0
        %2464 = vmatpush2.bf16.msra.mxu0 0
        %2465 = vmatprep.subr.bf16.mxu0 0
        %2466 = vmatpush2.bf16.msra.mxu0 0
        %2467 = vmatprep.subr.bf16.mxu0 0
        %2468 = vmatpush2.bf16.msra.mxu0 0
        %2469 = vmatprep.subr.bf16.mxu0 0
        %2470 = vmatpush2.bf16.msra.mxu0 0
        %2471 = vmatprep.subr.bf16.mxu0 0
        %2472 = vmatpush2.bf16.msra.mxu0 0
        %2473 = vmatprep.subr.bf16.mxu0 0
        %2474 = vmatpush2.bf16.msra.mxu0 0
        %2475 = vmatprep.subr.bf16.mxu0 0
        %2476 = vmatpush2.bf16.msra.mxu0 0
        %2477 = vmatprep.subr.bf16.mxu0 0
        %2478 = vmatpush2.bf16.msra.mxu0 0
        %2479 = vmatprep.mubr.bf16.mxu0 0
        %2480 = vmatmul.mubr.bf16.gmra.mxu0 %v2442
        %v2481 = vpop.f32.mrf.mxu0
        %v2482 = vadd.f32 0.0, %v2481
        %v2483 = vpop.f32.mrf.mxu0
        %v2484 = vpop.f32.mrf.mxu0
        %v2485 = vpop.f32.mrf.mxu0
        %2486 = vdwg.mxu0
        %v2488 = vsel %vm1723, %v2208, 0
        %v2491 = vsel %vm2213, %v1721, 0
        %2493 = vmatprep.subr.bf16.mxu0 0
        %2494 = vmatpush1.bf16.msra.mxu0 0
        %2495 = vmatprep.subr.bf16.mxu0 0
        %2496 = vmatpush1.bf16.msra.mxu0 0
        %2497 = vmatprep.subr.bf16.mxu0 0
        %2498 = vmatpush1.bf16.msra.mxu0 0
        %2499 = vmatprep.subr.bf16.mxu0 0
        %2500 = vmatpush1.bf16.msra.mxu0 0
        %2501 = vmatprep.subr.bf16.mxu0 0
        %2502 = vmatpush1.bf16.msra.mxu0 0
        %2503 = vmatprep.subr.bf16.mxu0 0
        %2504 = vmatpush1.bf16.msra.mxu0 0
        %2505 = vmatprep.subr.bf16.mxu0 0
        %2506 = vmatpush1.bf16.msra.mxu0 0
        %2507 = vmatprep.subr.bf16.mxu0 0
        %2508 = vmatpush1.bf16.msra.mxu0 %v2491
        %2509 = vmatprep.subr.bf16.mxu0 0
        %2510 = vmatpush2.bf16.msra.mxu0 0
        %2511 = vmatprep.subr.bf16.mxu0 0
        %2512 = vmatpush2.bf16.msra.mxu0 0
        %2513 = vmatprep.subr.bf16.mxu0 0
        %2514 = vmatpush2.bf16.msra.mxu0 0
        %2515 = vmatprep.subr.bf16.mxu0 0
        %2516 = vmatpush2.bf16.msra.mxu0 0
        %2517 = vmatprep.subr.bf16.mxu0 0
        %2518 = vmatpush2.bf16.msra.mxu0 0
        %2519 = vmatprep.subr.bf16.mxu0 0
        %2520 = vmatpush2.bf16.msra.mxu0 0
        %2521 = vmatprep.subr.bf16.mxu0 0
        %2522 = vmatpush2.bf16.msra.mxu0 0
        %2523 = vmatprep.subr.bf16.mxu0 0
        %2524 = vmatpush2.bf16.msra.mxu0 0
        %2525 = vmatprep.mubr.bf16.mxu0 0
        %2526 = vmatmul.mubr.bf16.gmra.mxu0 %v2488
        %v2527 = vpop.f32.mrf.mxu0
        %v2528 = vadd.f32 0.0, %v2527
        %v2529 = vpop.f32.mrf.mxu0
        %v2530 = vpop.f32.mrf.mxu0
        %v2531 = vpop.f32.mrf.mxu0
        %2532 = vdwg.mxu0
        %v2534 = vsel %vm1723, %v2209, 0
        %v2537 = vsel %vm2213, %v1722, 0
        %2539 = vmatprep.subr.bf16.mxu0 0
        %2540 = vmatpush1.bf16.msra.mxu0 0
        %2541 = vmatprep.subr.bf16.mxu0 0
        %2542 = vmatpush1.bf16.msra.mxu0 0
        %2543 = vmatprep.subr.bf16.mxu0 0
        %2544 = vmatpush1.bf16.msra.mxu0 0
        %2545 = vmatprep.subr.bf16.mxu0 0
        %2546 = vmatpush1.bf16.msra.mxu0 0
        %2547 = vmatprep.subr.bf16.mxu0 0
        %2548 = vmatpush1.bf16.msra.mxu0 0
        %2549 = vmatprep.subr.bf16.mxu0 0
        %2550 = vmatpush1.bf16.msra.mxu0 0
        %2551 = vmatprep.subr.bf16.mxu0 0
        %2552 = vmatpush1.bf16.msra.mxu0 0
        %2553 = vmatprep.subr.bf16.mxu0 0
        %2554 = vmatpush1.bf16.msra.mxu0 %v2537
        %2555 = vmatprep.subr.bf16.mxu0 0
        %2556 = vmatpush2.bf16.msra.mxu0 0
        %2557 = vmatprep.subr.bf16.mxu0 0
        %2558 = vmatpush2.bf16.msra.mxu0 0
        %2559 = vmatprep.subr.bf16.mxu0 0
        %2560 = vmatpush2.bf16.msra.mxu0 0
        %2561 = vmatprep.subr.bf16.mxu0 0
        %2562 = vmatpush2.bf16.msra.mxu0 0
        %2563 = vmatprep.subr.bf16.mxu0 0
        %2564 = vmatpush2.bf16.msra.mxu0 0
        %2565 = vmatprep.subr.bf16.mxu0 0
        %2566 = vmatpush2.bf16.msra.mxu0 0
        %2567 = vmatprep.subr.bf16.mxu0 0
        %2568 = vmatpush2.bf16.msra.mxu0 0
        %2569 = vmatprep.subr.bf16.mxu0 0
        %2570 = vmatpush2.bf16.msra.mxu0 0
        %2571 = vmatprep.mubr.bf16.mxu0 0
        %2572 = vmatmul.mubr.bf16.gmra.mxu0 %v2534
        %v2573 = vpop.f32.mrf.mxu0
        %v2574 = vadd.f32 0.0, %v2573
        %v2575 = vpop.f32.mrf.mxu0
        %v2576 = vpop.f32.mrf.mxu0
        %v2577 = vpop.f32.mrf.mxu0
        %2578 = vdwg.mxu0
        %v2579 = vcombine.low %v2252, %v2344
        %v2580 = vcombine.high %v2252, %v2344
        %v2582 = vunpack.c.l.s4 1983009808
        %v2583 = vunpack.c.0.s8 %v2582
        %v2584 = vlaneseq
        %v2585 = vshrl.u32 %v2584, 7
        %v2586 = vsub.s32 %v2583, %v2585
        %v2587 = vrot.slane %v2579, %v2586
        %v2589 = vunpack.c.l.s4 1983009808
        %v2590 = vunpack.c.0.s8 %v2589
        %v2591 = vlaneseq
        %v2592 = vshrl.u32 %v2591, 7
        %v2593 = vsub.s32 %v2590, %v2592
        %v2594 = vrot.slane %v2580, %v2593
        %v2595 = vcombine.low %v2298, %v2390
        %v2596 = vcombine.high %v2298, %v2390
        %v2598 = vunpack.c.l.s4 1983009808
        %v2599 = vunpack.c.0.s8 %v2598
        %v2600 = vlaneseq
        %v2601 = vshrl.u32 %v2600, 7
        %v2602 = vsub.s32 %v2599, %v2601
        %v2603 = vrot.slane %v2595, %v2602
        %v2605 = vunpack.c.l.s4 1983009808
        %v2606 = vunpack.c.0.s8 %v2605
        %v2607 = vlaneseq
        %v2608 = vshrl.u32 %v2607, 7
        %v2609 = vsub.s32 %v2606, %v2608
        %v2610 = vrot.slane %v2596, %v2609
        %v2611 = vcombine.low %v2587, %v2603
        %v2612 = vcombine.high %v2587, %v2603
        %v2614 = vunpack.c.l.s4 1934713408
        %v2615 = vunpack.c.0.s8 %v2614
        %v2616 = vlaneseq
        %v2617 = vshrl.u32 %v2616, 7
        %v2618 = vsub.s32 %v2615, %v2617
        %v2619 = vrot.slane %v2611, %v2618
        %v2621 = vunpack.c.l.s4 1934713408
        %v2622 = vunpack.c.0.s8 %v2621
        %v2623 = vlaneseq
        %v2624 = vshrl.u32 %v2623, 7
        %v2625 = vsub.s32 %v2622, %v2624
        %v2626 = vrot.slane %v2612, %v2625
        %v2627 = vcombine.low %v2594, %v2610
        %v2628 = vcombine.high %v2594, %v2610
        %v2630 = vunpack.c.l.s4 1934713408
        %v2631 = vunpack.c.0.s8 %v2630
        %v2632 = vlaneseq
        %v2633 = vshrl.u32 %v2632, 7
        %v2634 = vsub.s32 %v2631, %v2633
        %v2635 = vrot.slane %v2627, %v2634
        %v2637 = vunpack.c.l.s4 1934713408
        %v2638 = vunpack.c.0.s8 %v2637
        %v2639 = vlaneseq
        %v2640 = vshrl.u32 %v2639, 7
        %v2641 = vsub.s32 %v2638, %v2640
        %v2642 = vrot.slane %v2628, %v2641
        %v2643 = vcombine.high %v2619, 0.0
        %v2644 = vcombine.high %v2626, 0.0
        %v2645 = vcombine.high %v2635, 0.0
        %v2646 = vcombine.high %v2642, 0.0
        %v2647 = vcombine.low %v2436, %v2528
        %v2648 = vcombine.high %v2436, %v2528
        %v2650 = vunpack.c.l.s4 1983009808
        %v2651 = vunpack.c.0.s8 %v2650
        %v2652 = vlaneseq
        %v2653 = vshrl.u32 %v2652, 7
        %v2654 = vsub.s32 %v2651, %v2653
        %v2655 = vrot.slane %v2647, %v2654
        %v2657 = vunpack.c.l.s4 1983009808
        %v2658 = vunpack.c.0.s8 %v2657
        %v2659 = vlaneseq
        %v2660 = vshrl.u32 %v2659, 7
        %v2661 = vsub.s32 %v2658, %v2660
        %v2662 = vrot.slane %v2648, %v2661
        %v2663 = vcombine.low %v2482, %v2574
        %v2664 = vcombine.high %v2482, %v2574
        %v2666 = vunpack.c.l.s4 1983009808
        %v2667 = vunpack.c.0.s8 %v2666
        %v2668 = vlaneseq
        %v2669 = vshrl.u32 %v2668, 7
        %v2670 = vsub.s32 %v2667, %v2669
        %v2671 = vrot.slane %v2663, %v2670
        %v2673 = vunpack.c.l.s4 1983009808
        %v2674 = vunpack.c.0.s8 %v2673
        %v2675 = vlaneseq
        %v2676 = vshrl.u32 %v2675, 7
        %v2677 = vsub.s32 %v2674, %v2676
        %v2678 = vrot.slane %v2664, %v2677
        %v2679 = vcombine.low %v2655, %v2671
        %v2680 = vcombine.high %v2655, %v2671
        %v2682 = vunpack.c.l.s4 1934713408
        %v2683 = vunpack.c.0.s8 %v2682
        %v2684 = vlaneseq
        %v2685 = vshrl.u32 %v2684, 7
        %v2686 = vsub.s32 %v2683, %v2685
        %v2687 = vrot.slane %v2679, %v2686
        %v2689 = vunpack.c.l.s4 1934713408
        %v2690 = vunpack.c.0.s8 %v2689
        %v2691 = vlaneseq
        %v2692 = vshrl.u32 %v2691, 7
        %v2693 = vsub.s32 %v2690, %v2692
        %v2694 = vrot.slane %v2680, %v2693
        %v2695 = vcombine.low %v2662, %v2678
        %v2696 = vcombine.high %v2662, %v2678
        %v2698 = vunpack.c.l.s4 1934713408
        %v2699 = vunpack.c.0.s8 %v2698
        %v2700 = vlaneseq
        %v2701 = vshrl.u32 %v2700, 7
        %v2702 = vsub.s32 %v2699, %v2701
        %v2703 = vrot.slane %v2695, %v2702
        %v2705 = vunpack.c.l.s4 1934713408
        %v2706 = vunpack.c.0.s8 %v2705
        %v2707 = vlaneseq
        %v2708 = vshrl.u32 %v2707, 7
        %v2709 = vsub.s32 %v2706, %v2708
        %v2710 = vrot.slane %v2696, %v2709
        %v2711 = vcombine.high %v2687, 0.0
        %v2712 = vcombine.high %v2694, 0.0
        %v2713 = vcombine.high %v2703, 0.0
        %v2714 = vcombine.high %v2710, 0.0
        %v2715 = vcombine.low %v2619, %v2626
        %v2717 = vunpack.c.l.s4 1983009808
        %v2718 = vunpack.c.0.s8 %v2717
        %v2719 = vlaneseq
        %v2720 = vshrl.u32 %v2719, 7
        %v2721 = vsub.s32 %v2718, %v2720
        %v2722 = vrot.slane %v2715, %v2721
        %v2723 = vcombine.low %v2643, %v2644
        %v2725 = vunpack.c.l.s4 1983009808
        %v2726 = vunpack.c.0.s8 %v2725
        %v2727 = vlaneseq
        %v2728 = vshrl.u32 %v2727, 7
        %v2729 = vsub.s32 %v2726, %v2728
        %v2730 = vrot.slane %v2723, %v2729
        %v2731 = vcombine.low %v2635, %v2642
        %v2733 = vunpack.c.l.s4 1983009808
        %v2734 = vunpack.c.0.s8 %v2733
        %v2735 = vlaneseq
        %v2736 = vshrl.u32 %v2735, 7
        %v2737 = vsub.s32 %v2734, %v2736
        %v2738 = vrot.slane %v2731, %v2737
        %v2739 = vcombine.low %v2645, %v2646
        %v2741 = vunpack.c.l.s4 1983009808
        %v2742 = vunpack.c.0.s8 %v2741
        %v2743 = vlaneseq
        %v2744 = vshrl.u32 %v2743, 7
        %v2745 = vsub.s32 %v2742, %v2744
        %v2746 = vrot.slane %v2739, %v2745
        %v2747 = vcombine.low %v2722, %v2730
        %v2748 = vcombine.high %v2722, %v2730
        %v2750 = vunpack.c.l.s4 1934713408
        %v2751 = vunpack.c.0.s8 %v2750
        %v2752 = vlaneseq
        %v2753 = vshrl.u32 %v2752, 7
        %v2754 = vsub.s32 %v2751, %v2753
        %v2755 = vrot.slane %v2747, %v2754
        %v2757 = vunpack.c.l.s4 1934713408
        %v2758 = vunpack.c.0.s8 %v2757
        %v2759 = vlaneseq
        %v2760 = vshrl.u32 %v2759, 7
        %v2761 = vsub.s32 %v2758, %v2760
        %v2762 = vrot.slane %v2748, %v2761
        %v2763 = vcombine.low %v2738, %v2746
        %v2764 = vcombine.high %v2738, %v2746
        %v2766 = vunpack.c.l.s4 1934713408
        %v2767 = vunpack.c.0.s8 %v2766
        %v2768 = vlaneseq
        %v2769 = vshrl.u32 %v2768, 7
        %v2770 = vsub.s32 %v2767, %v2769
        %v2771 = vrot.slane %v2763, %v2770
        %v2773 = vunpack.c.l.s4 1934713408
        %v2774 = vunpack.c.0.s8 %v2773
        %v2775 = vlaneseq
        %v2776 = vshrl.u32 %v2775, 7
        %v2777 = vsub.s32 %v2774, %v2776
        %v2778 = vrot.slane %v2764, %v2777
        %v2779 = vcombine.low %v2755, %v2771
        %v2780 = vcombine.high %v2755, %v2771
        %v2781 = vcombine.low %v2762, %v2778
        %v2782 = vcombine.high %v2762, %v2778
        %v2783 = vcombine.low %v2687, %v2694
        %v2785 = vunpack.c.l.s4 1983009808
        %v2786 = vunpack.c.0.s8 %v2785
        %v2787 = vlaneseq
        %v2788 = vshrl.u32 %v2787, 7
        %v2789 = vsub.s32 %v2786, %v2788
        %v2790 = vrot.slane %v2783, %v2789
        %v2791 = vcombine.low %v2711, %v2712
        %v2793 = vunpack.c.l.s4 1983009808
        %v2794 = vunpack.c.0.s8 %v2793
        %v2795 = vlaneseq
        %v2796 = vshrl.u32 %v2795, 7
        %v2797 = vsub.s32 %v2794, %v2796
        %v2798 = vrot.slane %v2791, %v2797
        %v2799 = vcombine.low %v2703, %v2710
        %v2801 = vunpack.c.l.s4 1983009808
        %v2802 = vunpack.c.0.s8 %v2801
        %v2803 = vlaneseq
        %v2804 = vshrl.u32 %v2803, 7
        %v2805 = vsub.s32 %v2802, %v2804
        %v2806 = vrot.slane %v2799, %v2805
        %v2807 = vcombine.low %v2713, %v2714
        %v2809 = vunpack.c.l.s4 1983009808
        %v2810 = vunpack.c.0.s8 %v2809
        %v2811 = vlaneseq
        %v2812 = vshrl.u32 %v2811, 7
        %v2813 = vsub.s32 %v2810, %v2812
        %v2814 = vrot.slane %v2807, %v2813
        %v2815 = vcombine.low %v2790, %v2798
        %v2816 = vcombine.high %v2790, %v2798
        %v2818 = vunpack.c.l.s4 1934713408
        %v2819 = vunpack.c.0.s8 %v2818
        %v2820 = vlaneseq
        %v2821 = vshrl.u32 %v2820, 7
        %v2822 = vsub.s32 %v2819, %v2821
        %v2823 = vrot.slane %v2815, %v2822
        %v2825 = vunpack.c.l.s4 1934713408
        %v2826 = vunpack.c.0.s8 %v2825
        %v2827 = vlaneseq
        %v2828 = vshrl.u32 %v2827, 7
        %v2829 = vsub.s32 %v2826, %v2828
        %v2830 = vrot.slane %v2816, %v2829
        %v2831 = vcombine.low %v2806, %v2814
        %v2832 = vcombine.high %v2806, %v2814
        %v2834 = vunpack.c.l.s4 1934713408
        %v2835 = vunpack.c.0.s8 %v2834
        %v2836 = vlaneseq
        %v2837 = vshrl.u32 %v2836, 7
        %v2838 = vsub.s32 %v2835, %v2837
        %v2839 = vrot.slane %v2831, %v2838
        %v2841 = vunpack.c.l.s4 1934713408
        %v2842 = vunpack.c.0.s8 %v2841
        %v2843 = vlaneseq
        %v2844 = vshrl.u32 %v2843, 7
        %v2845 = vsub.s32 %v2842, %v2844
        %v2846 = vrot.slane %v2832, %v2845
        %v2847 = vcombine.low %v2823, %v2839
        %v2848 = vcombine.high %v2823, %v2839
        %v2849 = vcombine.low %v2830, %v2846
        %v2850 = vcombine.high %v2830, %v2846
        %2853 = vrot.lane.b32.xlu0 %v2780, 8
        %v2854 = vpop.permute.xlu0 %2853
        %2855 = vrot.lane.b32.xlu0 %v2848, 8
        %v2856 = vpop.permute.xlu0 %2855
        %2861 = vrot.lane.b32.xlu0 %v2781, 16
        %v2862 = vpop.permute.xlu0 %2861
        %2863 = vrot.lane.b32.xlu0 %v2849, 16
        %v2864 = vpop.permute.xlu0 %2863
        %2869 = vrot.lane.b32.xlu0 %v2782, 24
        %v2870 = vpop.permute.xlu0 %2869
        %2871 = vrot.lane.b32.xlu0 %v2850, 24
        %v2872 = vpop.permute.xlu0 %2871
        %v2875 = vsel %vm1723, %v2779, %v2854
        %v2876 = vsel %vm1723, %v2847, %v2856
        %vm2877 = vcmask 130048
        %v2878 = vsel %vm2877, %v2875, %v2862
        %v2879 = vsel %vm2877, %v2876, %v2864
        %vm2880 = vcmask 195584
        %v2881 = vsel %vm2880, %v2878, %v2870
        %v2882 = vsel %vm2880, %v2879, %v2872
        %v2883 = vpack.c.bf16 %v2882, %v2881
        %v2884 = vld [vmem:[%s698] sm:$0xf]
        %v2885 = vld [vmem:[%s698 + $0x4] sm:$0xf]
        %v2886 = vld [vmem:[%s698 + $0x8] sm:$0xf]
        %v2887 = vld [vmem:[%s698 + $0xc] sm:$0xf]
        %v2888 = vld [vmem:[%s701] sm:$0x1]
        %v2890 = vlaneseq
        %v2891 = vshrl.u32 %v2890, 7
        %v2892 = vsub.s32 0, %v2891
        %v2893 = vrot.slane %v2888, %v2892
        %v2899 = vunpack.c.l.b16 %v2884
        %v2900 = vunpack.c.l.b16 %v2885
        %v2901 = vunpack.c.l.b16 %v2886
        %v2902 = vunpack.c.l.b16 %v2887
        %v2903 = vpack.c.b16 %v2900, %v2899
        %v2904 = vpack.c.b16 %v2902, %v2901
        %v2908 = vsel %vm770, %v2883, 0
        %2910 = vmatprep.subr.bf16.mxu0 0
        %2911 = vmatpush1.bf16.msra.mxu0 0
        %2912 = vmatprep.subr.bf16.mxu0 0
        %2913 = vmatpush1.bf16.msra.mxu0 0
        %2914 = vmatprep.subr.bf16.mxu0 0
        %2915 = vmatpush1.bf16.msra.mxu0 0
        %2916 = vmatprep.subr.bf16.mxu0 0
        %2917 = vmatpush1.bf16.msra.mxu0 0
        %2918 = vmatprep.subr.bf16.mxu0 0
        %2919 = vmatpush1.bf16.msra.mxu0 0
        %2920 = vmatprep.subr.bf16.mxu0 0
        %2921 = vmatpush1.bf16.msra.mxu0 0
        %2922 = vmatprep.subr.bf16.mxu0 0
        %2923 = vmatpush1.bf16.msra.mxu0 %v2904
        %2924 = vmatprep.subr.bf16.mxu0 0
        %2925 = vmatpush1.bf16.msra.mxu0 %v2903
        %2926 = vmatprep.subr.bf16.mxu0 0
        %2927 = vmatpush2.bf16.msra.mxu0 0
        %2928 = vmatprep.subr.bf16.mxu0 0
        %2929 = vmatpush2.bf16.msra.mxu0 0
        %2930 = vmatprep.subr.bf16.mxu0 0
        %2931 = vmatpush2.bf16.msra.mxu0 0
        %2932 = vmatprep.subr.bf16.mxu0 0
        %2933 = vmatpush2.bf16.msra.mxu0 0
        %2934 = vmatprep.subr.bf16.mxu0 0
        %2935 = vmatpush2.bf16.msra.mxu0 0
        %2936 = vmatprep.subr.bf16.mxu0 0
        %2937 = vmatpush2.bf16.msra.mxu0 0
        %2938 = vmatprep.subr.bf16.mxu0 0
        %2939 = vmatpush2.bf16.msra.mxu0 0
        %2940 = vmatprep.subr.bf16.mxu0 0
        %2941 = vmatpush2.bf16.msra.mxu0 0
        %2942 = vmatprep.mubr.bf16.mxu0 0
        %2943 = vmatmul.mubr.bf16.gmra.mxu0 %v2908
        %v2944 = vpop.f32.mrf.mxu0
        %v2945 = vadd.f32 %v2893, %v2944
        %v2946 = vpop.f32.mrf.mxu0
        %v2947 = vpop.f32.mrf.mxu0
        %v2948 = vadd.f32 %v2893, %v2947
        %v2949 = vpop.f32.mrf.mxu0
        %2950 = vdwg.mxu0
        %v2951 = vadd.f32 %v744, %v2945
        %v2952 = vadd.f32 %v745, %v2948
        %v2953 = vld [vmem:[%s704] sm:$0x1]
        %v2954 = vld [vmem:[%s707] sm:$0x1]
        %v2955 = vsel %vm770, %v2951, 0.0
        %2956 = vadd.xlane.f32.xlu0 %v2955
        %v2957 = vpop.xlane.xlu0 %2956
        %v2958 = vsel %vm770, %v2952, 0.0
        %2959 = vadd.xlane.f32.xlu0 %v2958
        %v2960 = vpop.xlane.xlu0 %2959
        %v2961 = vrcp.pop 32.0
        %v2962 = vmul.f32 %v2957, %v2961
        %v2963 = vmul.f32 %v2960, %v2961
        %v2964 = vsub.f32 %v2951, %v2962
        %v2965 = vsub.f32 %v2952, %v2963
        %v2966 = vmul.f32 %v2964, %v2964
        %v2967 = vmul.f32 %v2965, %v2965
        %v2968 = vsel %vm770, %v2966, 0.0
        %2969 = vadd.xlane.f32.xlu0 %v2968
        %v2970 = vpop.xlane.xlu0 %2969
        %v2971 = vsel %vm770, %v2967, 0.0
        %2972 = vadd.xlane.f32.xlu0 %v2971
        %v2973 = vpop.xlane.xlu0 %2972
        %v2974 = vmul.f32 %v2970, %v2961
        %v2975 = vmul.f32 %v2973, %v2961
        %v2976 = vadd.f32 %v2974, 1e-05
        %v2977 = vadd.f32 %v2975, 1e-05
        %v2978 = vrsqrt.pop %v2976
        %v2979 = vrsqrt.pop %v2977
        %v2980 = vmul.f32 %v2964, %v2978
        %v2981 = vmul.f32 %v2965, %v2979
        %v2983 = vlaneseq
        %v2984 = vshrl.u32 %v2983, 7
        %v2985 = vsub.s32 0, %v2984
        %v2986 = vrot.slane %v2953, %v2985
        %v2988 = vmul.f32 %v2980, %v2986
        %v2989 = vmul.f32 %v2981, %v2986
        %v2991 = vlaneseq
        %v2992 = vshrl.u32 %v2991, 7
        %v2993 = vsub.s32 0, %v2992
        %v2994 = vrot.slane %v2954, %v2993
        %v2996 = vadd.f32 %v2988, %v2994
        %v2997 = vadd.f32 %v2989, %v2994
        %v2998 = vpack.c.bf16 %v2997, %v2996
        %v2999 = vld [vmem:[%s712] sm:$0xf]
        %v3000 = vld [vmem:[%s712 + $0x4] sm:$0xf]
        %v3001 = vld [vmem:[%s712 + $0x8] sm:$0xf]
        %v3002 = vld [vmem:[%s712 + $0xc] sm:$0xf]
        %v3003 = vld [vmem:[%s715] sm:$0x1]
        %v3005 = vlaneseq
        %v3006 = vshrl.u32 %v3005, 7
        %v3007 = vsub.s32 0, %v3006
        %v3008 = vrot.slane %v3003, %v3007
        %v3014 = vunpack.c.l.b16 %v2999
        %v3015 = vunpack.c.l.b16 %v3000
        %v3016 = vunpack.c.l.b16 %v3001
        %v3017 = vunpack.c.l.b16 %v3002
        %v3018 = vpack.c.b16 %v3015, %v3014
        %v3019 = vpack.c.b16 %v3017, %v3016
        %v3023 = vsel %vm770, %v2998, 0
        %3025 = vmatprep.subr.bf16.mxu0 0
        %3026 = vmatpush1.bf16.msra.mxu0 0
        %3027 = vmatprep.subr.bf16.mxu0 0
        %3028 = vmatpush1.bf16.msra.mxu0 0
        %3029 = vmatprep.subr.bf16.mxu0 0
        %3030 = vmatpush1.bf16.msra.mxu0 0
        %3031 = vmatprep.subr.bf16.mxu0 0
        %3032 = vmatpush1.bf16.msra.mxu0 0
        %3033 = vmatprep.subr.bf16.mxu0 0
        %3034 = vmatpush1.bf16.msra.mxu0 0
        %3035 = vmatprep.subr.bf16.mxu0 0
        %3036 = vmatpush1.bf16.msra.mxu0 0
        %3037 = vmatprep.subr.bf16.mxu0 0
        %3038 = vmatpush1.bf16.msra.mxu0 %v3019
        %3039 = vmatprep.subr.bf16.mxu0 0
        %3040 = vmatpush1.bf16.msra.mxu0 %v3018
        %3041 = vmatprep.subr.bf16.mxu0 0
        %3042 = vmatpush2.bf16.msra.mxu0 0
        %3043 = vmatprep.subr.bf16.mxu0 0
        %3044 = vmatpush2.bf16.msra.mxu0 0
        %3045 = vmatprep.subr.bf16.mxu0 0
        %3046 = vmatpush2.bf16.msra.mxu0 0
        %3047 = vmatprep.subr.bf16.mxu0 0
        %3048 = vmatpush2.bf16.msra.mxu0 0
        %3049 = vmatprep.subr.bf16.mxu0 0
        %3050 = vmatpush2.bf16.msra.mxu0 0
        %3051 = vmatprep.subr.bf16.mxu0 0
        %3052 = vmatpush2.bf16.msra.mxu0 0
        %3053 = vmatprep.subr.bf16.mxu0 0
        %3054 = vmatpush2.bf16.msra.mxu0 0
        %3055 = vmatprep.subr.bf16.mxu0 0
        %3056 = vmatpush2.bf16.msra.mxu0 0
        %3057 = vmatprep.mubr.bf16.mxu0 0
        %3058 = vmatmul.mubr.bf16.gmra.mxu0 %v3023
        %v3059 = vpop.f32.mrf.mxu0
        %v3060 = vadd.f32 %v3008, %v3059
        %v3061 = vpop.f32.mrf.mxu0
        %v3062 = vpop.f32.mrf.mxu0
        %v3063 = vadd.f32 %v3008, %v3062
        %v3064 = vpop.f32.mrf.mxu0
        %3065 = vdwg.mxu0
        %v3066 = vmax.f32 %v3060, 0.0
        %v3067 = vmax.f32 %v3063, 0.0
        %v3068 = vpack.c.bf16 %v3067, %v3066
        %v3069 = vld [vmem:[%s720] sm:$0xf]
        %v3070 = vld [vmem:[%s720 + $0x4] sm:$0xf]
        %v3071 = vld [vmem:[%s720 + $0x8] sm:$0xf]
        %v3072 = vld [vmem:[%s720 + $0xc] sm:$0xf]
        %v3073 = vld [vmem:[%s720 + $0x10] sm:$0xf]
        %v3074 = vld [vmem:[%s720 + $0x14] sm:$0xf]
        %v3075 = vld [vmem:[%s720 + $0x18] sm:$0xf]
        %v3076 = vld [vmem:[%s720 + $0x1c] sm:$0xf]
        %v3077 = vld [vmem:[%s723] sm:$0x1]
        %v3079 = vlaneseq
        %v3080 = vshrl.u32 %v3079, 7
        %v3081 = vsub.s32 0, %v3080
        %v3082 = vrot.slane %v3077, %v3081
        %v3092 = vunpack.c.l.b16 %v3069
        %v3093 = vunpack.c.l.b16 %v3070
        %v3094 = vunpack.c.l.b16 %v3071
        %v3095 = vunpack.c.l.b16 %v3072
        %v3096 = vunpack.c.l.b16 %v3073
        %v3097 = vunpack.c.l.b16 %v3074
        %v3098 = vunpack.c.l.b16 %v3075
        %v3099 = vunpack.c.l.b16 %v3076
        %v3100 = vpack.c.b16 %v3093, %v3092
        %v3101 = vpack.c.b16 %v3095, %v3094
        %v3102 = vpack.c.b16 %v3097, %v3096
        %v3103 = vpack.c.b16 %v3099, %v3098
        %vm3108 = vcmask 523264
        %v3110 = vsel %vm3108, %v3068, 0
        %3112 = vmatprep.subr.bf16.mxu0 0
        %3113 = vmatpush1.bf16.msra.mxu0 0
        %3114 = vmatprep.subr.bf16.mxu0 0
        %3115 = vmatpush1.bf16.msra.mxu0 0
        %3116 = vmatprep.subr.bf16.mxu0 0
        %3117 = vmatpush1.bf16.msra.mxu0 0
        %3118 = vmatprep.subr.bf16.mxu0 0
        %3119 = vmatpush1.bf16.msra.mxu0 0
        %3120 = vmatprep.subr.bf16.mxu0 0
        %3121 = vmatpush1.bf16.msra.mxu0 %v3103
        %3122 = vmatprep.subr.bf16.mxu0 0
        %3123 = vmatpush1.bf16.msra.mxu0 %v3102
        %3124 = vmatprep.subr.bf16.mxu0 0
        %3125 = vmatpush1.bf16.msra.mxu0 %v3101
        %3126 = vmatprep.subr.bf16.mxu0 0
        %3127 = vmatpush1.bf16.msra.mxu0 %v3100
        %3128 = vmatprep.subr.bf16.mxu0 0
        %3129 = vmatpush2.bf16.msra.mxu0 0
        %3130 = vmatprep.subr.bf16.mxu0 0
        %3131 = vmatpush2.bf16.msra.mxu0 0
        %3132 = vmatprep.subr.bf16.mxu0 0
        %3133 = vmatpush2.bf16.msra.mxu0 0
        %3134 = vmatprep.subr.bf16.mxu0 0
        %3135 = vmatpush2.bf16.msra.mxu0 0
        %3136 = vmatprep.subr.bf16.mxu0 0
        %3137 = vmatpush2.bf16.msra.mxu0 0
        %3138 = vmatprep.subr.bf16.mxu0 0
        %3139 = vmatpush2.bf16.msra.mxu0 0
        %3140 = vmatprep.subr.bf16.mxu0 0
        %3141 = vmatpush2.bf16.msra.mxu0 0
        %3142 = vmatprep.subr.bf16.mxu0 0
        %3143 = vmatpush2.bf16.msra.mxu0 0
        %3144 = vmatprep.mubr.bf16.mxu0 0
        %3145 = vmatmul.mubr.bf16.gmra.mxu0 %v3110
        %v3146 = vpop.f32.mrf.mxu0
        %v3147 = vadd.f32 %v3082, %v3146
        %v3148 = vpop.f32.mrf.mxu0
        %v3149 = vpop.f32.mrf.mxu0
        %v3150 = vadd.f32 %v3082, %v3149
        %v3151 = vpop.f32.mrf.mxu0
        %3152 = vdwg.mxu0
        %v3153 = vadd.f32 %v2996, %v3147
        %v3154 = vadd.f32 %v2997, %v3150
        %v3155 = vld [vmem:[%s726] sm:$0x1]
        %v3156 = vld [vmem:[%s729] sm:$0x1]
        %v3157 = vsel %vm770, %v3153, 0.0
        %3158 = vadd.xlane.f32.xlu0 %v3157
        %v3159 = vpop.xlane.xlu0 %3158
        %v3160 = vsel %vm770, %v3154, 0.0
        %3161 = vadd.xlane.f32.xlu0 %v3160
        %v3162 = vpop.xlane.xlu0 %3161
        %v3163 = vmul.f32 %v3159, %v2961
        %v3164 = vmul.f32 %v3162, %v2961
        %v3165 = vsub.f32 %v3153, %v3163
        %v3166 = vsub.f32 %v3154, %v3164
        %v3167 = vmul.f32 %v3165, %v3165
        %v3168 = vmul.f32 %v3166, %v3166
        %v3169 = vsel %vm770, %v3167, 0.0
        %3170 = vadd.xlane.f32.xlu0 %v3169
        %v3171 = vpop.xlane.xlu0 %3170
        %v3172 = vsel %vm770, %v3168, 0.0
        %3173 = vadd.xlane.f32.xlu0 %v3172
        %v3174 = vpop.xlane.xlu0 %3173
        %v3175 = vmul.f32 %v3171, %v2961
        %v3176 = vmul.f32 %v3174, %v2961
        %v3177 = vadd.f32 %v3175, 1e-05
        %v3178 = vadd.f32 %v3176, 1e-05
        %v3179 = vrsqrt.pop %v3177
        %v3180 = vrsqrt.pop %v3178
        %v3181 = vmul.f32 %v3165, %v3179
        %v3182 = vmul.f32 %v3166, %v3180
        %v3184 = vlaneseq
        %v3185 = vshrl.u32 %v3184, 7
        %v3186 = vsub.s32 0, %v3185
        %v3187 = vrot.slane %v3155, %v3186
        %v3189 = vmul.f32 %v3181, %v3187
        %v3190 = vmul.f32 %v3182, %v3187
        %v3192 = vlaneseq
        %v3193 = vshrl.u32 %v3192, 7
        %v3194 = vsub.s32 0, %v3193
        %v3195 = vrot.slane %v3156, %v3194
        %v3197 = vadd.f32 %v3189, %v3195
        %v3198 = vadd.f32 %v3190, %v3195
        %3199 = vst.msk [vmem:[#allocation8] sm:$0xff] %vm770, %v3197
        %3200 = vst.msk [vmem:[#allocation8 + $0x8] sm:$0xff] %vm770, %v3198
        // Predicated region
        $region97: #{tpu_custom_call.1} parent=79 // pred_check
          %p3201 = pneg %p444
        $region98: #{tpu_custom_call.1} parent=79 // pred_check_branch
          %3203 = sbr.rel (%p3201) target = $region100
        $region99: #{tpu_custom_call.1} parent=79 // pred_region
          %s3204 = smul.u32 2, %s33
          %s3206 = ssub.s32 256, 256
          %3207 = vsyncadd [#allocation4], %s3206
          %s3208 = smul.addr %s3204, 128
          %s3209 = scalar_lea.hbm %s15, %s3208
          %s3210 = sshll.u32 [#allocation8], 4
          %s3211 = int_to_ptr.vmem [resolvable:$true] %s3210
          %3216 = dma.vmem_to_hbm [thread:$0]  %s3211, 256, %s3209, [#allocation4], 128, 128, 8
        $region100: #{tpu_custom_call.1} parent=79 // pred_fallthru
          _
        // Predicated region
        $region101: #{tpu_custom_call.1} parent=79 // pred_check
          %p3217 = pneg %p444
        $region102: #{tpu_custom_call.1} parent=79 // pred_check_branch
          %3219 = sbr.rel (%p3217) target = $region104
        $region103: #{tpu_custom_call.1} parent=79 // pred_region
          %3220 = dma.done [#allocation4], 256
        $region104: #{tpu_custom_call.1} parent=79 // pred_fallthru
          _
      $region80: #{tpu_custom_call.1} parent=5 // pred_fallthru
        _
      %p3221 = scmp.le.s32.totalorder 2, %s24
      // Predicated region
      $region105: #{tpu_custom_call.1} parent=5 // pred_check
        %p3222 = pneg %p3221
      $region106: #{tpu_custom_call.1} parent=5 // pred_check_branch
        %3224 = sbr.rel (%p3222) target = $region108
      $region107: #{tpu_custom_call.1} parent=5 // pred_region
        %s3225 = ssub.s32 %s24, 2
      $region108: #{tpu_custom_call.1} parent=5 // pred_fallthru
        _
    $region6: #{tpu_custom_call.1} parent=1 // loop_footer
      %s28 = sadd.s32 1, %s24
    $region7: #{tpu_custom_call.1} parent=1 // loop_footer_branch
      %23 = sbr.rel target = $region3
    $region8: #{tpu_custom_call.1} parent=1 // loop_exit
      _
    %3226 = vsyncpa [#allocation3], 1
    %s3227 = scalar_lea.sflag [#allocation3], 1
    %3228 = vsyncpa %s3227, 1
    %3229 = vsyncpa [#allocation6], 1
    %3230 = vsyncpa [#allocation4], 1
    %s3231 = scalar_lea.sflag [#allocation4], 1
    %3232 = vsyncpa %s3231, 1

</llo_original>
